<compile_context>
chip_gen: v7x
topology: tpu7x:2x2x1
jax: 0.10.0
libtpu: 0.0.40
codegen_flags: <defaults>
</compile_context>

<pallas_src>
import functools

import jax
import jax.numpy as jnp
from jax import lax
from jax.experimental import pallas as pl
from jax.experimental.pallas import tpu as pltpu


# ----------------------------------------------------------------------------
# Stage 1: 4-layer MLP head with training-mode BatchNorm1d + ReLU
# ----------------------------------------------------------------------------
def _mlp_kernel(gf_ref,
                w1_ref, g1_ref, be1_ref,
                w2_ref, g2_ref, be2_ref,
                w3_ref, g3_ref, be3_ref,
                w4_ref, b4_ref,
                y3_ref, *, m_pad):
    eps = 1e-5

    def bn_relu(h, g, be):
        # BatchNorm1d training semantics: batch mean, biased batch variance.
        mu = jnp.mean(h, axis=0, keepdims=True)
        var = jnp.mean((h - mu) ** 2, axis=0, keepdims=True)
        return jnp.maximum((h - mu) * lax.rsqrt(var + eps) * g + be, 0.0)

    x = gf_ref[...]                                                     # (B, bottleneck)
    h = bn_relu(jnp.dot(x, w1_ref[...], preferred_element_type=jnp.float32),
                g1_ref[...], be1_ref[...])
    h = bn_relu(jnp.dot(h, w2_ref[...], preferred_element_type=jnp.float32),
                g2_ref[...], be2_ref[...])
    h = bn_relu(jnp.dot(h, w3_ref[...], preferred_element_type=jnp.float32),
                g3_ref[...], be3_ref[...])
    y = jnp.dot(h, w4_ref[...], preferred_element_type=jnp.float32) + b4_ref[...]  # (B, 3*m_pad)

    # Channel planes of the generated / query cloud, lane-dense on M_pad; slice starts are
    # multiples of 128 so these are tile-aligned, unmasked stores.
    y3_ref[0] = y[:, 0 * m_pad:1 * m_pad]
    y3_ref[1] = y[:, 1 * m_pad:2 * m_pad]
    y3_ref[2] = y[:, 2 * m_pad:3 * m_pad]


# ----------------------------------------------------------------------------
# Stage 2: SoftProjection over a tile of queries (gridded, parallel over M)
# ----------------------------------------------------------------------------
def _softproj_kernel(pts_ref, q_ref, proj_ref, *, group_size, inv_sigma):
    # pts_ref : (3, B, N)  point-cloud coordinate planes (resident: constant index_map)
    # q_ref   : (3, B, TM) query coordinate planes for this query tile
    # proj_ref: (3, B, TM) projected coordinates for this query tile
    px, py, pz = pts_ref[0], pts_ref[1], pts_ref[2]                     # (B, N)
    qx, qy, qz = q_ref[0], q_ref[1], q_ref[2]                           # (B, TM)

    # Squared distance minus the per-query constant |q|^2 (cancels in ranking and in the
    # group softmax): d_rel = |p|^2 - 2 q.p  -> (B, TM, N), three VPU broadcast passes.
    pn2 = px * px + py * py + pz * pz                                   # (B, N)
    d = pn2[:, None, :] - 2.0 * (qx[:, :, None] * px[:, None, :]
                                 + qy[:, :, None] * py[:, None, :]
                                 + qz[:, :, None] * pz[:, None, :])

    dmin = jnp.min(d, axis=-1, keepdims=True)                           # (B, TM, 1), stability shift

    # Top-k (k = group_size) via iterative masked min, with the softmax accumulation fused
    # into the same loop: exp runs only on the (B, TM, 1) threshold plane each iteration.
    # Assumes no exact distance ties (continuous inputs); reductions over the logical N
    # lanes rely on Mosaic masking when N is not a multiple of 128 (verified previously).
    B, TM = qx.shape

    def body(_, carry):
        thr, wsum, ax, ay, az = carry
        masked = jnp.where(d > thr, d, jnp.inf)
        thr = jnp.min(masked, axis=-1, keepdims=True)                   # next-smallest distance
        e = jnp.exp((dmin - thr) * inv_sigma)[:, :, 0]                  # (B, TM), in (0, 1]
        sel = d == thr                                                  # the newly picked neighbour
        ax = ax + e * jnp.sum(jnp.where(sel, px[:, None, :], 0.0), axis=-1)
        ay = ay + e * jnp.sum(jnp.where(sel, py[:, None, :], 0.0), axis=-1)
        az = az + e * jnp.sum(jnp.where(sel, pz[:, None, :], 0.0), axis=-1)
        wsum = wsum + e
        return thr, wsum, ax, ay, az

    zero = jnp.zeros((B, TM), jnp.float32)
    init = (jnp.full((B, TM, 1), -jnp.inf, jnp.float32), zero, zero, zero, zero)
    _, wsum, ax, ay, az = lax.fori_loop(0, group_size, body, init, unroll=True)

    inv_w = 1.0 / wsum                                                  # wsum >= 1: safe
    # Tile-aligned, lane-dense per-channel stores (no lane-axis concatenate).
    proj_ref[0] = ax * inv_w
    proj_ref[1] = ay * inv_w
    proj_ref[2] = az * inv_w


# ----------------------------------------------------------------------------
# Parameters (module layout) + fc4 lane padding + VMEM budget helper
# ----------------------------------------------------------------------------
def init_params(key, bottleneck_size, num_out_points):
    """Module-layout parameters; b1-b3 dropped (mathematically inert before training-mode BN)."""
    dims = [(bottleneck_size, 256), (256, 256), (256, 256), (256, 3 * num_out_points)]
    params = {}
    keys = jax.random.split(key, 8)
    for i, (fan_in, fan_out) in enumerate(dims, start=1):
        kw, kb = keys[2 * (i - 1)], keys[2 * (i - 1) + 1]
        bound = 1.0 / (fan_in ** 0.5)
        # stored already transposed: (in, out) so the kernel does x @ W
        params[f"w{i}"] = jax.random.uniform(kw, (fan_in, fan_out), jnp.float32, -bound, bound)
        if i == 4:
            params[f"b{i}"] = jax.random.uniform(kb, (1, fan_out), jnp.float32, -bound, bound)
    for i in range(1, 4):
        params[f"g{i}"] = jnp.ones((1, 256), jnp.float32)    # BN gamma
        params[f"be{i}"] = jnp.zeros((1, 256), jnp.float32)  # BN beta
    return params


def _pad_fc4(w4, b4, m, m_pad):
    """Zero-pad each of the three per-channel column blocks of fc4 from m to m_pad columns."""
    if m_pad == m:
        return w4, b4
    pad = ((0, 0), (0, 0), (0, m_pad - m))
    w4p = jnp.pad(w4.reshape(w4.shape[0], 3, m), pad).reshape(w4.shape[0], 3 * m_pad)
    b4p = jnp.pad(b4.reshape(1, 3, m), pad).reshape(1, 3 * m_pad)
    return w4p, b4p


def _vmem_limit_bytes():
    # ~96 MiB on v5e/v6e (128 MiB physical), ~48 MiB on v7x (64 MiB physical per TC).
    try:
        return int(pltpu.get_tpu_info().vmem_capacity_bytes) * 3 // 4
    except Exception:
        return 48 * 1024 * 1024


# ----------------------------------------------------------------------------
# Full forward (training-mode path)
# ----------------------------------------------------------------------------
def contact_samplenet_forward(x_bnc, global_feat, params, *, num_out_points, group_size,
                              initial_temperature=1.0, min_sigma=0.01, query_tile=128):
    B, N, C = x_bnc.shape
    assert C == 3, "input_shape='bnc' expects (B, N, 3)"
    assert group_size <= N, "group_size must not exceed the input cloud size"
    M = num_out_points
    M_pad = pl.cdiv(M, 128) * 128
    TM = min(query_tile, M_pad)
    assert M_pad % TM == 0 and TM % 128 == 0

    # sigma = max(temperature^2, min_sigma) (temperature not trainable here)
    sigma = max(float(initial_temperature) ** 2, float(min_sigma))

    # Coordinate-plane layout (3, B, N): no 3->8 sublane padding of the big input.
    pts3 = jnp.transpose(x_bnc, (2, 0, 1))

    w4p, b4p = _pad_fc4(params["w4"], params["b4"], M, M_pad)

    vmem_limit = _vmem_limit_bytes()
    vmem = pl.BlockSpec(memory_space=pltpu.MemorySpace.VMEM)

    # ---- Stage 1: MLP head (training-mode BN needs whole-batch stats => B stays whole) ----
    y3 = pl.pallas_call(
        functools.partial(_mlp_kernel, m_pad=M_pad),
        out_shape=jax.ShapeDtypeStruct((3, B, M_pad), jnp.float32),
        in_specs=[vmem] * 12,
        out_specs=vmem,
        compiler_params=pltpu.CompilerParams(vmem_limit_bytes=vmem_limit),
    )(global_feat,
      params["w1"], params["g1"], params["be1"],
      params["w2"], params["g2"], params["be2"],
      params["w3"], params["g3"], params["be3"],
      w4p, b4p)

    # ---- Stage 2: SoftProjection, gridded over query tiles (parallel => both v7x TCs) ----
    proj3 = pl.pallas_call(
        functools.partial(_softproj_kernel, group_size=int(group_size),
                          inv_sigma=1.0 / sigma),
        out_shape=jax.ShapeDtypeStruct((3, B, M_pad), jnp.float32),
        grid=(M_pad // TM,),
        in_specs=[pl.BlockSpec((3, B, N), lambda m: (0, 0, 0)),      # cloud: fetched once, resident
                  pl.BlockSpec((3, B, TM), lambda m: (0, 0, m))],    # queries: per tile
        out_specs=pl.BlockSpec((3, B, TM), lambda m: (0, 0, m)),
        compiler_params=pltpu.CompilerParams(
            dimension_semantics=("parallel",), vmem_limit_bytes=vmem_limit),
    )(pts3, y3)

    # output_shape='bnc': same final permute as the module; strip the lane padding.
    generated = jnp.transpose(y3, (1, 2, 0))[:, :M, :]     # (B, M, 3)
    sampled = jnp.transpose(proj3, (1, 2, 0))[:, :M, :]    # training mode: sampled = proj
    return generated, sampled


if __name__ == "__main__":
    # Small shapes consistent with the module's forward.
    B = 2
    N = 16               # input point-cloud size
    bottleneck_size = 32
    num_out_points = 8
    group_size = 4

    key = jax.random.PRNGKey(0)
    kx, kg, kp = jax.random.split(key, 3)

    x = jax.random.normal(kx, (B, N, 3), jnp.float32)                  # 'bnc' input
    global_feat = jax.random.normal(kg, (B, bottleneck_size), jnp.float32)
    params = init_params(kp, bottleneck_size, num_out_points)

    fwd = jax.jit(functools.partial(
        contact_samplenet_forward,
        num_out_points=num_out_points, group_size=group_size,
        initial_temperature=1.0, min_sigma=0.01))

    generated, sampled = fwd(x, global_feat, params)
    jax.block_until_ready((generated, sampled))
    assert generated.shape == (B, num_out_points, 3)
    assert sampled.shape == (B, num_out_points, 3)
    assert bool(jnp.all(jnp.isfinite(generated))) and bool(jnp.all(jnp.isfinite(sampled)))
    print("KERNEL_OK")
</pallas_src>

<mosaic_0001>
module attributes {stable_mosaic.version = 11 : i64} {
  func.func @_mlp_kernel(%arg0: memref<2x32xf32, #tpu.memory_space<vmem>>, %arg1: memref<32x256xf32, #tpu.memory_space<vmem>>, %arg2: memref<1x256xf32, #tpu.memory_space<vmem>>, %arg3: memref<1x256xf32, #tpu.memory_space<vmem>>, %arg4: memref<256x256xf32, #tpu.memory_space<vmem>>, %arg5: memref<1x256xf32, #tpu.memory_space<vmem>>, %arg6: memref<1x256xf32, #tpu.memory_space<vmem>>, %arg7: memref<256x256xf32, #tpu.memory_space<vmem>>, %arg8: memref<1x256xf32, #tpu.memory_space<vmem>>, %arg9: memref<1x256xf32, #tpu.memory_space<vmem>>, %arg10: memref<256x384xf32, #tpu.memory_space<vmem>>, %arg11: memref<1x384xf32, #tpu.memory_space<vmem>>, %arg12: memref<3x2x128xf32, #tpu.memory_space<vmem>>) attributes {dimension_semantics = [], scalar_prefetch = 0 : i64, scratch_operands = 0 : i64, tpu.core_type = #tpu.core_type<tc>} {
    %c0 = arith.constant 0 : index
    %c0_0 = arith.constant 0 : index
    %0 = vector.load %arg0[%c0, %c0_0] : memref<2x32xf32, #tpu.memory_space<vmem>>, vector<2x32xf32>
    %c0_1 = arith.constant 0 : index
    %c0_2 = arith.constant 0 : index
    %1 = vector.load %arg1[%c0_1, %c0_2] : memref<32x256xf32, #tpu.memory_space<vmem>>, vector<32x256xf32>
    %cst = arith.constant dense<0.000000e+00> : vector<2x256xf32>
    %2 = tpu.matmul %0, %1, %cst {dimension_numbers = #tpu.dot_dimension_numbers<[1], [0], [0], [1], [0, 0, 1, 1], [], []>} : vector<2x32xf32>, vector<32x256xf32>, vector<2x256xf32> -> vector<2x256xf32>
    %c0_3 = arith.constant 0 : index
    %c0_4 = arith.constant 0 : index
    %3 = vector.load %arg2[%c0_3, %c0_4] : memref<1x256xf32, #tpu.memory_space<vmem>>, vector<1x256xf32>
    %c0_5 = arith.constant 0 : index
    %c0_6 = arith.constant 0 : index
    %4 = vector.load %arg3[%c0_5, %c0_6] : memref<1x256xf32, #tpu.memory_space<vmem>>, vector<1x256xf32>
    %cst_7 = arith.constant dense<0.000000e+00> : vector<256xf32>
    %5 = vector.multi_reduction <add>, %2, %cst_7 [0] : vector<2x256xf32> to vector<256xf32>
    %6 = vector.shape_cast %5 : vector<256xf32> to vector<1x256xf32>
    %cst_8 = arith.constant 2.000000e+00 : f32
    %7 = vector.broadcast %cst_8 : f32 to vector<1x256xf32>
    %8 = arith.divf %6, %7 : vector<1x256xf32>
    %9 = vector.broadcast %8 : vector<1x256xf32> to vector<2x256xf32>
    %10 = arith.subf %2, %9 : vector<2x256xf32>
    %11 = arith.mulf %10, %10 : vector<2x256xf32>
    %cst_9 = arith.constant dense<0.000000e+00> : vector<256xf32>
    %12 = vector.multi_reduction <add>, %11, %cst_9 [0] : vector<2x256xf32> to vector<256xf32>
    %13 = vector.shape_cast %12 : vector<256xf32> to vector<1x256xf32>
    %cst_10 = arith.constant 2.000000e+00 : f32
    %14 = vector.broadcast %cst_10 : f32 to vector<1x256xf32>
    %15 = arith.divf %13, %14 : vector<1x256xf32>
    %16 = vector.broadcast %8 : vector<1x256xf32> to vector<2x256xf32>
    %17 = arith.subf %2, %16 : vector<2x256xf32>
    %cst_11 = arith.constant 9.99999974E-6 : f32
    %18 = vector.broadcast %cst_11 : f32 to vector<1x256xf32>
    %19 = arith.addf %15, %18 : vector<1x256xf32>
    %20 = math.rsqrt %19 : vector<1x256xf32>
    %21 = vector.broadcast %20 : vector<1x256xf32> to vector<2x256xf32>
    %22 = arith.mulf %17, %21 : vector<2x256xf32>
    %23 = vector.broadcast %3 : vector<1x256xf32> to vector<2x256xf32>
    %24 = arith.mulf %22, %23 : vector<2x256xf32>
    %25 = vector.broadcast %4 : vector<1x256xf32> to vector<2x256xf32>
    %26 = arith.addf %24, %25 : vector<2x256xf32>
    %cst_12 = arith.constant 0.000000e+00 : f32
    %27 = vector.broadcast %cst_12 : f32 to vector<2x256xf32>
    %28 = arith.maximumf %26, %27 : vector<2x256xf32>
    %c0_13 = arith.constant 0 : index
    %c0_14 = arith.constant 0 : index
    %29 = vector.load %arg4[%c0_13, %c0_14] : memref<256x256xf32, #tpu.memory_space<vmem>>, vector<256x256xf32>
    %cst_15 = arith.constant dense<0.000000e+00> : vector<2x256xf32>
    %30 = tpu.matmul %28, %29, %cst_15 {dimension_numbers = #tpu.dot_dimension_numbers<[1], [0], [0], [1], [0, 0, 1, 1], [], []>} : vector<2x256xf32>, vector<256x256xf32>, vector<2x256xf32> -> vector<2x256xf32>
    %c0_16 = arith.constant 0 : index
    %c0_17 = arith.constant 0 : index
    %31 = vector.load %arg5[%c0_16, %c0_17] : memref<1x256xf32, #tpu.memory_space<vmem>>, vector<1x256xf32>
    %c0_18 = arith.constant 0 : index
    %c0_19 = arith.constant 0 : index
    %32 = vector.load %arg6[%c0_18, %c0_19] : memref<1x256xf32, #tpu.memory_space<vmem>>, vector<1x256xf32>
    %cst_20 = arith.constant dense<0.000000e+00> : vector<256xf32>
    %33 = vector.multi_reduction <add>, %30, %cst_20 [0] : vector<2x256xf32> to vector<256xf32>
    %34 = vector.shape_cast %33 : vector<256xf32> to vector<1x256xf32>
    %cst_21 = arith.constant 2.000000e+00 : f32
    %35 = vector.broadcast %cst_21 : f32 to vector<1x256xf32>
    %36 = arith.divf %34, %35 : vector<1x256xf32>
    %37 = vector.broadcast %36 : vector<1x256xf32> to vector<2x256xf32>
    %38 = arith.subf %30, %37 : vector<2x256xf32>
    %39 = arith.mulf %38, %38 : vector<2x256xf32>
    %cst_22 = arith.constant dense<0.000000e+00> : vector<256xf32>
    %40 = vector.multi_reduction <add>, %39, %cst_22 [0] : vector<2x256xf32> to vector<256xf32>
    %41 = vector.shape_cast %40 : vector<256xf32> to vector<1x256xf32>
    %cst_23 = arith.constant 2.000000e+00 : f32
    %42 = vector.broadcast %cst_23 : f32 to vector<1x256xf32>
    %43 = arith.divf %41, %42 : vector<1x256xf32>
    %44 = vector.broadcast %36 : vector<1x256xf32> to vector<2x256xf32>
    %45 = arith.subf %30, %44 : vector<2x256xf32>
    %cst_24 = arith.constant 9.99999974E-6 : f32
    %46 = vector.broadcast %cst_24 : f32 to vector<1x256xf32>
    %47 = arith.addf %43, %46 : vector<1x256xf32>
    %48 = math.rsqrt %47 : vector<1x256xf32>
    %49 = vector.broadcast %48 : vector<1x256xf32> to vector<2x256xf32>
    %50 = arith.mulf %45, %49 : vector<2x256xf32>
    %51 = vector.broadcast %31 : vector<1x256xf32> to vector<2x256xf32>
    %52 = arith.mulf %50, %51 : vector<2x256xf32>
    %53 = vector.broadcast %32 : vector<1x256xf32> to vector<2x256xf32>
    %54 = arith.addf %52, %53 : vector<2x256xf32>
    %cst_25 = arith.constant 0.000000e+00 : f32
    %55 = vector.broadcast %cst_25 : f32 to vector<2x256xf32>
    %56 = arith.maximumf %54, %55 : vector<2x256xf32>
    %c0_26 = arith.constant 0 : index
    %c0_27 = arith.constant 0 : index
    %57 = vector.load %arg7[%c0_26, %c0_27] : memref<256x256xf32, #tpu.memory_space<vmem>>, vector<256x256xf32>
    %cst_28 = arith.constant dense<0.000000e+00> : vector<2x256xf32>
    %58 = tpu.matmul %56, %57, %cst_28 {dimension_numbers = #tpu.dot_dimension_numbers<[1], [0], [0], [1], [0, 0, 1, 1], [], []>} : vector<2x256xf32>, vector<256x256xf32>, vector<2x256xf32> -> vector<2x256xf32>
    %c0_29 = arith.constant 0 : index
    %c0_30 = arith.constant 0 : index
    %59 = vector.load %arg8[%c0_29, %c0_30] : memref<1x256xf32, #tpu.memory_space<vmem>>, vector<1x256xf32>
    %c0_31 = arith.constant 0 : index
    %c0_32 = arith.constant 0 : index
    %60 = vector.load %arg9[%c0_31, %c0_32] : memref<1x256xf32, #tpu.memory_space<vmem>>, vector<1x256xf32>
    %cst_33 = arith.constant dense<0.000000e+00> : vector<256xf32>
    %61 = vector.multi_reduction <add>, %58, %cst_33 [0] : vector<2x256xf32> to vector<256xf32>
    %62 = vector.shape_cast %61 : vector<256xf32> to vector<1x256xf32>
    %cst_34 = arith.constant 2.000000e+00 : f32
    %63 = vector.broadcast %cst_34 : f32 to vector<1x256xf32>
    %64 = arith.divf %62, %63 : vector<1x256xf32>
    %65 = vector.broadcast %64 : vector<1x256xf32> to vector<2x256xf32>
    %66 = arith.subf %58, %65 : vector<2x256xf32>
    %67 = arith.mulf %66, %66 : vector<2x256xf32>
    %cst_35 = arith.constant dense<0.000000e+00> : vector<256xf32>
    %68 = vector.multi_reduction <add>, %67, %cst_35 [0] : vector<2x256xf32> to vector<256xf32>
    %69 = vector.shape_cast %68 : vector<256xf32> to vector<1x256xf32>
    %cst_36 = arith.constant 2.000000e+00 : f32
    %70 = vector.broadcast %cst_36 : f32 to vector<1x256xf32>
    %71 = arith.divf %69, %70 : vector<1x256xf32>
    %72 = vector.broadcast %64 : vector<1x256xf32> to vector<2x256xf32>
    %73 = arith.subf %58, %72 : vector<2x256xf32>
    %cst_37 = arith.constant 9.99999974E-6 : f32
    %74 = vector.broadcast %cst_37 : f32 to vector<1x256xf32>
    %75 = arith.addf %71, %74 : vector<1x256xf32>
    %76 = math.rsqrt %75 : vector<1x256xf32>
    %77 = vector.broadcast %76 : vector<1x256xf32> to vector<2x256xf32>
    %78 = arith.mulf %73, %77 : vector<2x256xf32>
    %79 = vector.broadcast %59 : vector<1x256xf32> to vector<2x256xf32>
    %80 = arith.mulf %78, %79 : vector<2x256xf32>
    %81 = vector.broadcast %60 : vector<1x256xf32> to vector<2x256xf32>
    %82 = arith.addf %80, %81 : vector<2x256xf32>
    %cst_38 = arith.constant 0.000000e+00 : f32
    %83 = vector.broadcast %cst_38 : f32 to vector<2x256xf32>
    %84 = arith.maximumf %82, %83 : vector<2x256xf32>
    %c0_39 = arith.constant 0 : index
    %c0_40 = arith.constant 0 : index
    %85 = vector.load %arg10[%c0_39, %c0_40] : memref<256x384xf32, #tpu.memory_space<vmem>>, vector<256x384xf32>
    %cst_41 = arith.constant dense<0.000000e+00> : vector<2x384xf32>
    %86 = tpu.matmul %84, %85, %cst_41 {dimension_numbers = #tpu.dot_dimension_numbers<[1], [0], [0], [1], [0, 0, 1, 1], [], []>} : vector<2x256xf32>, vector<256x384xf32>, vector<2x384xf32> -> vector<2x384xf32>
    %c0_42 = arith.constant 0 : index
    %c0_43 = arith.constant 0 : index
    %87 = vector.load %arg11[%c0_42, %c0_43] : memref<1x384xf32, #tpu.memory_space<vmem>>, vector<1x384xf32>
    %88 = vector.broadcast %87 : vector<1x384xf32> to vector<2x384xf32>
    %89 = arith.addf %86, %88 : vector<2x384xf32>
    %90 = vector.extract_strided_slice %89 {offsets = [0, 0], sizes = [2, 128], strides = [1, 1]} : vector<2x384xf32> to vector<2x128xf32>
    %c0_44 = arith.constant 0 : index
    %c0_45 = arith.constant 0 : index
    %c0_46 = arith.constant 0 : index
    %91 = vector.load %arg12[%c0_44, %c0_45, %c0_46] : memref<3x2x128xf32, #tpu.memory_space<vmem>>, vector<1x2x128xf32>
    %92 = vector.shape_cast %91 : vector<1x2x128xf32> to vector<2x128xf32>
    %93 = vector.shape_cast %90 : vector<2x128xf32> to vector<1x2x128xf32>
    tpu.vector_store %arg12[%c0_44, %c0_45, %c0_46], %93 {strides = array<i32>} : memref<3x2x128xf32, #tpu.memory_space<vmem>>, vector<1x2x128xf32>,
    %94 = vector.extract_strided_slice %89 {offsets = [0, 128], sizes = [2, 128], strides = [1, 1]} : vector<2x384xf32> to vector<2x128xf32>
    %c1 = arith.constant 1 : index
    %c0_47 = arith.constant 0 : index
    %c0_48 = arith.constant 0 : index
    %95 = vector.load %arg12[%c1, %c0_47, %c0_48] : memref<3x2x128xf32, #tpu.memory_space<vmem>>, vector<1x2x128xf32>
    %96 = vector.shape_cast %95 : vector<1x2x128xf32> to vector<2x128xf32>
    %97 = vector.shape_cast %94 : vector<2x128xf32> to vector<1x2x128xf32>
    tpu.vector_store %arg12[%c1, %c0_47, %c0_48], %97 {strides = array<i32>} : memref<3x2x128xf32, #tpu.memory_space<vmem>>, vector<1x2x128xf32>,
    %98 = vector.extract_strided_slice %89 {offsets = [0, 256], sizes = [2, 128], strides = [1, 1]} : vector<2x384xf32> to vector<2x128xf32>
    %c2 = arith.constant 2 : index
    %c0_49 = arith.constant 0 : index
    %c0_50 = arith.constant 0 : index
    %99 = vector.load %arg12[%c2, %c0_49, %c0_50] : memref<3x2x128xf32, #tpu.memory_space<vmem>>, vector<1x2x128xf32>
    %100 = vector.shape_cast %99 : vector<1x2x128xf32> to vector<2x128xf32>
    %101 = vector.shape_cast %98 : vector<2x128xf32> to vector<1x2x128xf32>
    tpu.vector_store %arg12[%c2, %c0_49, %c0_50], %101 {strides = array<i32>} : memref<3x2x128xf32, #tpu.memory_space<vmem>>, vector<1x2x128xf32>,
    return
  }
}

module attributes {stable_mosaic.version = 11 : i64} {
  func.func @_softproj_kernel(%arg0: i32, %arg1: memref<3x2x16xf32, #tpu.memory_space<vmem>>, %arg2: memref<3x2x128xf32, #tpu.memory_space<vmem>>, %arg3: memref<3x2x128xf32, #tpu.memory_space<vmem>>) attributes {dimension_semantics = [#tpu.dimension_semantics<parallel>], iteration_bounds = array<i64: 1>, scalar_prefetch = 0 : i64, scratch_operands = 0 : i64, tpu.core_type = #tpu.core_type<tc>, window_params = [{pipeline_mode = #tpu.pipeline_mode<synchronous>, transform_indices = @transform_0, window_bounds = array<i64: 3, 2, 16>}, {transform_indices = @transform_1, window_bounds = array<i64: 3, 2, 128>}, {transform_indices = @transform_2, window_bounds = array<i64: 3, 2, 128>}]} {
    %c0 = arith.constant 0 : index
    %c0_0 = arith.constant 0 : index
    %c0_1 = arith.constant 0 : index
    %0 = vector.load %arg1[%c0, %c0_0, %c0_1] : memref<3x2x16xf32, #tpu.memory_space<vmem>>, vector<1x2x16xf32>
    %1 = vector.shape_cast %0 : vector<1x2x16xf32> to vector<2x16xf32>
    %c1 = arith.constant 1 : index
    %c0_2 = arith.constant 0 : index
    %c0_3 = arith.constant 0 : index
    %2 = vector.load %arg1[%c1, %c0_2, %c0_3] : memref<3x2x16xf32, #tpu.memory_space<vmem>>, vector<1x2x16xf32>
    %3 = vector.shape_cast %2 : vector<1x2x16xf32> to vector<2x16xf32>
    %c2 = arith.constant 2 : index
    %c0_4 = arith.constant 0 : index
    %c0_5 = arith.constant 0 : index
    %4 = vector.load %arg1[%c2, %c0_4, %c0_5] : memref<3x2x16xf32, #tpu.memory_space<vmem>>, vector<1x2x16xf32>
    %5 = vector.shape_cast %4 : vector<1x2x16xf32> to vector<2x16xf32>
    %c0_6 = arith.constant 0 : index
    %c0_7 = arith.constant 0 : index
    %c0_8 = arith.constant 0 : index
    %6 = vector.load %arg2[%c0_6, %c0_7, %c0_8] : memref<3x2x128xf32, #tpu.memory_space<vmem>>, vector<1x2x128xf32>
    %7 = vector.shape_cast %6 : vector<1x2x128xf32> to vector<2x128xf32>
    %c1_9 = arith.constant 1 : index
    %c0_10 = arith.constant 0 : index
    %c0_11 = arith.constant 0 : index
    %8 = vector.load %arg2[%c1_9, %c0_10, %c0_11] : memref<3x2x128xf32, #tpu.memory_space<vmem>>, vector<1x2x128xf32>
    %9 = vector.shape_cast %8 : vector<1x2x128xf32> to vector<2x128xf32>
    %c2_12 = arith.constant 2 : index
    %c0_13 = arith.constant 0 : index
    %c0_14 = arith.constant 0 : index
    %10 = vector.load %arg2[%c2_12, %c0_13, %c0_14] : memref<3x2x128xf32, #tpu.memory_space<vmem>>, vector<1x2x128xf32>
    %11 = vector.shape_cast %10 : vector<1x2x128xf32> to vector<2x128xf32>
    %12 = arith.mulf %1, %1 : vector<2x16xf32>
    %13 = arith.mulf %3, %3 : vector<2x16xf32>
    %14 = arith.addf %12, %13 : vector<2x16xf32>
    %15 = arith.mulf %5, %5 : vector<2x16xf32>
    %16 = arith.addf %14, %15 : vector<2x16xf32>
    %17 = vector.shape_cast %16 : vector<2x16xf32> to vector<2x1x16xf32>
    %18 = vector.shape_cast %7 : vector<2x128xf32> to vector<2x128x1xf32>
    %19 = vector.shape_cast %1 : vector<2x16xf32> to vector<2x1x16xf32>
    %20 = vector.broadcast %18 : vector<2x128x1xf32> to vector<2x128x16xf32>
    %21 = vector.broadcast %19 : vector<2x1x16xf32> to vector<2x128x16xf32>
    %22 = arith.mulf %20, %21 : vector<2x128x16xf32>
    %23 = vector.shape_cast %9 : vector<2x128xf32> to vector<2x128x1xf32>
    %24 = vector.shape_cast %3 : vector<2x16xf32> to vector<2x1x16xf32>
    %25 = vector.broadcast %23 : vector<2x128x1xf32> to vector<2x128x16xf32>
    %26 = vector.broadcast %24 : vector<2x1x16xf32> to vector<2x128x16xf32>
    %27 = arith.mulf %25, %26 : vector<2x128x16xf32>
    %28 = arith.addf %22, %27 : vector<2x128x16xf32>
    %29 = vector.shape_cast %11 : vector<2x128xf32> to vector<2x128x1xf32>
    %30 = vector.shape_cast %5 : vector<2x16xf32> to vector<2x1x16xf32>
    %31 = vector.broadcast %29 : vector<2x128x1xf32> to vector<2x128x16xf32>
    %32 = vector.broadcast %30 : vector<2x1x16xf32> to vector<2x128x16xf32>
    %33 = arith.mulf %31, %32 : vector<2x128x16xf32>
    %34 = arith.addf %28, %33 : vector<2x128x16xf32>
    %cst = arith.constant 2.000000e+00 : f32
    %35 = vector.broadcast %cst : f32 to vector<2x128x16xf32>
    %36 = arith.mulf %35, %34 : vector<2x128x16xf32>
    %37 = vector.broadcast %17 : vector<2x1x16xf32> to vector<2x128x16xf32>
    %38 = arith.subf %37, %36 : vector<2x128x16xf32>
    %cst_15 = arith.constant dense<0x7F800000> : vector<2x128xf32>
    %39 = vector.multi_reduction <minimumf>, %38, %cst_15 [2] : vector<2x128x16xf32> to vector<2x128xf32>
    %40 = vector.shape_cast %39 : vector<2x128xf32> to vector<2x128x1xf32>
    %cst_16 = arith.constant 0.000000e+00 : f32
    %41 = vector.broadcast %cst_16 : f32 to vector<2x128xf32>
    %cst_17 = arith.constant 0xFF800000 : f32
    %42 = vector.broadcast %cst_17 : f32 to vector<2x128x1xf32>
    %c0_i32 = arith.constant 0 : i32
    %43 = vector.broadcast %42 : vector<2x128x1xf32> to vector<2x128x16xf32>
    %44 = arith.cmpf ogt, %38, %43 : vector<2x128x16xf32>
    %cst_18 = arith.constant 0x7F800000 : f32
    %45 = vector.broadcast %cst_18 : f32 to vector<2x128x16xf32>
    %46 = arith.select %44, %38, %45 : vector<2x128x16xi1>, vector<2x128x16xf32>
    %cst_19 = arith.constant dense<0x7F800000> : vector<2x128xf32>
    %47 = vector.multi_reduction <minimumf>, %46, %cst_19 [2] : vector<2x128x16xf32> to vector<2x128xf32>
    %48 = vector.shape_cast %47 : vector<2x128xf32> to vector<2x128x1xf32>
    %49 = arith.subf %40, %48 : vector<2x128x1xf32>
    %cst_20 = arith.constant 1.000000e+00 : f32
    %50 = vector.broadcast %cst_20 : f32 to vector<2x128x1xf32>
    %51 = arith.mulf %49, %50 : vector<2x128x1xf32>
    %52 = math.exp %51 : vector<2x128x1xf32>
    %53 = vector.shape_cast %52 : vector<2x128x1xf32> to vector<2x128xf32>
    %54 = vector.broadcast %48 : vector<2x128x1xf32> to vector<2x128x16xf32>
    %55 = arith.cmpf oeq, %38, %54 : vector<2x128x16xf32>
    %56 = vector.shape_cast %1 : vector<2x16xf32> to vector<2x1x16xf32>
    %cst_21 = arith.constant 0.000000e+00 : f32
    %57 = vector.shape_cast %56 : vector<2x1x16xf32> to vector<2x1x16xf32>
    %58 = vector.broadcast %57 : vector<2x1x16xf32> to vector<2x128x16xf32>
    %59 = vector.broadcast %cst_21 : f32 to vector<2x128x16xf32>
    %60 = arith.select %55, %58, %59 : vector<2x128x16xi1>, vector<2x128x16xf32>
    %cst_22 = arith.constant dense<0.000000e+00> : vector<2x128xf32>
    %61 = vector.multi_reduction <add>, %60, %cst_22 [2] : vector<2x128x16xf32> to vector<2x128xf32>
    %62 = arith.mulf %53, %61 : vector<2x128xf32>
    %63 = arith.addf %41, %62 : vector<2x128xf32>
    %64 = vector.shape_cast %3 : vector<2x16xf32> to vector<2x1x16xf32>
    %cst_23 = arith.constant 0.000000e+00 : f32
    %65 = vector.shape_cast %64 : vector<2x1x16xf32> to vector<2x1x16xf32>
    %66 = vector.broadcast %65 : vector<2x1x16xf32> to vector<2x128x16xf32>
    %67 = vector.broadcast %cst_23 : f32 to vector<2x128x16xf32>
    %68 = arith.select %55, %66, %67 : vector<2x128x16xi1>, vector<2x128x16xf32>
    %cst_24 = arith.constant dense<0.000000e+00> : vector<2x128xf32>
    %69 = vector.multi_reduction <add>, %68, %cst_24 [2] : vector<2x128x16xf32> to vector<2x128xf32>
    %70 = arith.mulf %53, %69 : vector<2x128xf32>
    %71 = arith.addf %41, %70 : vector<2x128xf32>
    %72 = vector.shape_cast %5 : vector<2x16xf32> to vector<2x1x16xf32>
    %cst_25 = arith.constant 0.000000e+00 : f32
    %73 = vector.shape_cast %72 : vector<2x1x16xf32> to vector<2x1x16xf32>
    %74 = vector.broadcast %73 : vector<2x1x16xf32> to vector<2x128x16xf32>
    %75 = vector.broadcast %cst_25 : f32 to vector<2x128x16xf32>
    %76 = arith.select %55, %74, %75 : vector<2x128x16xi1>, vector<2x128x16xf32>
    %cst_26 = arith.constant dense<0.000000e+00> : vector<2x128xf32>
    %77 = vector.multi_reduction <add>, %76, %cst_26 [2] : vector<2x128x16xf32> to vector<2x128xf32>
    %78 = arith.mulf %53, %77 : vector<2x128xf32>
    %79 = arith.addf %41, %78 : vector<2x128xf32>
    %80 = arith.addf %41, %53 : vector<2x128xf32>
    %c1_i32 = arith.constant 1 : i32
    %81 = vector.broadcast %48 : vector<2x128x1xf32> to vector<2x128x16xf32>
    %82 = arith.cmpf ogt, %38, %81 : vector<2x128x16xf32>
    %cst_27 = arith.constant 0x7F800000 : f32
    %83 = vector.broadcast %cst_27 : f32 to vector<2x128x16xf32>
    %84 = arith.select %82, %38, %83 : vector<2x128x16xi1>, vector<2x128x16xf32>
    %cst_28 = arith.constant dense<0x7F800000> : vector<2x128xf32>
    %85 = vector.multi_reduction <minimumf>, %84, %cst_28 [2] : vector<2x128x16xf32> to vector<2x128xf32>
    %86 = vector.shape_cast %85 : vector<2x128xf32> to vector<2x128x1xf32>
    %87 = arith.subf %40, %86 : vector<2x128x1xf32>
    %cst_29 = arith.constant 1.000000e+00 : f32
    %88 = vector.broadcast %cst_29 : f32 to vector<2x128x1xf32>
    %89 = arith.mulf %87, %88 : vector<2x128x1xf32>
    %90 = math.exp %89 : vector<2x128x1xf32>
    %91 = vector.shape_cast %90 : vector<2x128x1xf32> to vector<2x128xf32>
    %92 = vector.broadcast %86 : vector<2x128x1xf32> to vector<2x128x16xf32>
    %93 = arith.cmpf oeq, %38, %92 : vector<2x128x16xf32>
    %94 = vector.shape_cast %1 : vector<2x16xf32> to vector<2x1x16xf32>
    %cst_30 = arith.constant 0.000000e+00 : f32
    %95 = vector.shape_cast %94 : vector<2x1x16xf32> to vector<2x1x16xf32>
    %96 = vector.broadcast %95 : vector<2x1x16xf32> to vector<2x128x16xf32>
    %97 = vector.broadcast %cst_30 : f32 to vector<2x128x16xf32>
    %98 = arith.select %93, %96, %97 : vector<2x128x16xi1>, vector<2x128x16xf32>
    %cst_31 = arith.constant dense<0.000000e+00> : vector<2x128xf32>
    %99 = vector.multi_reduction <add>, %98, %cst_31 [2] : vector<2x128x16xf32> to vector<2x128xf32>
    %100 = arith.mulf %91, %99 : vector<2x128xf32>
    %101 = arith.addf %63, %100 : vector<2x128xf32>
    %102 = vector.shape_cast %3 : vector<2x16xf32> to vector<2x1x16xf32>
    %cst_32 = arith.constant 0.000000e+00 : f32
    %103 = vector.shape_cast %102 : vector<2x1x16xf32> to vector<2x1x16xf32>
    %104 = vector.broadcast %103 : vector<2x1x16xf32> to vector<2x128x16xf32>
    %105 = vector.broadcast %cst_32 : f32 to vector<2x128x16xf32>
    %106 = arith.select %93, %104, %105 : vector<2x128x16xi1>, vector<2x128x16xf32>
    %cst_33 = arith.constant dense<0.000000e+00> : vector<2x128xf32>
    %107 = vector.multi_reduction <add>, %106, %cst_33 [2] : vector<2x128x16xf32> to vector<2x128xf32>
    %108 = arith.mulf %91, %107 : vector<2x128xf32>
    %109 = arith.addf %71, %108 : vector<2x128xf32>
    %110 = vector.shape_cast %5 : vector<2x16xf32> to vector<2x1x16xf32>
    %cst_34 = arith.constant 0.000000e+00 : f32
    %111 = vector.shape_cast %110 : vector<2x1x16xf32> to vector<2x1x16xf32>
    %112 = vector.broadcast %111 : vector<2x1x16xf32> to vector<2x128x16xf32>
    %113 = vector.broadcast %cst_34 : f32 to vector<2x128x16xf32>
    %114 = arith.select %93, %112, %113 : vector<2x128x16xi1>, vector<2x128x16xf32>
    %cst_35 = arith.constant dense<0.000000e+00> : vector<2x128xf32>
    %115 = vector.multi_reduction <add>, %114, %cst_35 [2] : vector<2x128x16xf32> to vector<2x128xf32>
    %116 = arith.mulf %91, %115 : vector<2x128xf32>
    %117 = arith.addf %79, %116 : vector<2x128xf32>
    %118 = arith.addf %80, %91 : vector<2x128xf32>
    %c2_i32 = arith.constant 2 : i32
    %119 = vector.broadcast %86 : vector<2x128x1xf32> to vector<2x128x16xf32>
    %120 = arith.cmpf ogt, %38, %119 : vector<2x128x16xf32>
    %cst_36 = arith.constant 0x7F800000 : f32
    %121 = vector.broadcast %cst_36 : f32 to vector<2x128x16xf32>
    %122 = arith.select %120, %38, %121 : vector<2x128x16xi1>, vector<2x128x16xf32>
    %cst_37 = arith.constant dense<0x7F800000> : vector<2x128xf32>
    %123 = vector.multi_reduction <minimumf>, %122, %cst_37 [2] : vector<2x128x16xf32> to vector<2x128xf32>
    %124 = vector.shape_cast %123 : vector<2x128xf32> to vector<2x128x1xf32>
    %125 = arith.subf %40, %124 : vector<2x128x1xf32>
    %cst_38 = arith.constant 1.000000e+00 : f32
    %126 = vector.broadcast %cst_38 : f32 to vector<2x128x1xf32>
    %127 = arith.mulf %125, %126 : vector<2x128x1xf32>
    %128 = math.exp %127 : vector<2x128x1xf32>
    %129 = vector.shape_cast %128 : vector<2x128x1xf32> to vector<2x128xf32>
    %130 = vector.broadcast %124 : vector<2x128x1xf32> to vector<2x128x16xf32>
    %131 = arith.cmpf oeq, %38, %130 : vector<2x128x16xf32>
    %132 = vector.shape_cast %1 : vector<2x16xf32> to vector<2x1x16xf32>
    %cst_39 = arith.constant 0.000000e+00 : f32
    %133 = vector.shape_cast %132 : vector<2x1x16xf32> to vector<2x1x16xf32>
    %134 = vector.broadcast %133 : vector<2x1x16xf32> to vector<2x128x16xf32>
    %135 = vector.broadcast %cst_39 : f32 to vector<2x128x16xf32>
    %136 = arith.select %131, %134, %135 : vector<2x128x16xi1>, vector<2x128x16xf32>
    %cst_40 = arith.constant dense<0.000000e+00> : vector<2x128xf32>
    %137 = vector.multi_reduction <add>, %136, %cst_40 [2] : vector<2x128x16xf32> to vector<2x128xf32>
    %138 = arith.mulf %129, %137 : vector<2x128xf32>
    %139 = arith.addf %101, %138 : vector<2x128xf32>
    %140 = vector.shape_cast %3 : vector<2x16xf32> to vector<2x1x16xf32>
    %cst_41 = arith.constant 0.000000e+00 : f32
    %141 = vector.shape_cast %140 : vector<2x1x16xf32> to vector<2x1x16xf32>
    %142 = vector.broadcast %141 : vector<2x1x16xf32> to vector<2x128x16xf32>
    %143 = vector.broadcast %cst_41 : f32 to vector<2x128x16xf32>
    %144 = arith.select %131, %142, %143 : vector<2x128x16xi1>, vector<2x128x16xf32>
    %cst_42 = arith.constant dense<0.000000e+00> : vector<2x128xf32>
    %145 = vector.multi_reduction <add>, %144, %cst_42 [2] : vector<2x128x16xf32> to vector<2x128xf32>
    %146 = arith.mulf %129, %145 : vector<2x128xf32>
    %147 = arith.addf %109, %146 : vector<2x128xf32>
    %148 = vector.shape_cast %5 : vector<2x16xf32> to vector<2x1x16xf32>
    %cst_43 = arith.constant 0.000000e+00 : f32
    %149 = vector.shape_cast %148 : vector<2x1x16xf32> to vector<2x1x16xf32>
    %150 = vector.broadcast %149 : vector<2x1x16xf32> to vector<2x128x16xf32>
    %151 = vector.broadcast %cst_43 : f32 to vector<2x128x16xf32>
    %152 = arith.select %131, %150, %151 : vector<2x128x16xi1>, vector<2x128x16xf32>
    %cst_44 = arith.constant dense<0.000000e+00> : vector<2x128xf32>
    %153 = vector.multi_reduction <add>, %152, %cst_44 [2] : vector<2x128x16xf32> to vector<2x128xf32>
    %154 = arith.mulf %129, %153 : vector<2x128xf32>
    %155 = arith.addf %117, %154 : vector<2x128xf32>
    %156 = arith.addf %118, %129 : vector<2x128xf32>
    %c3_i32 = arith.constant 3 : i32
    %157 = vector.broadcast %124 : vector<2x128x1xf32> to vector<2x128x16xf32>
    %158 = arith.cmpf ogt, %38, %157 : vector<2x128x16xf32>
    %cst_45 = arith.constant 0x7F800000 : f32
    %159 = vector.broadcast %cst_45 : f32 to vector<2x128x16xf32>
    %160 = arith.select %158, %38, %159 : vector<2x128x16xi1>, vector<2x128x16xf32>
    %cst_46 = arith.constant dense<0x7F800000> : vector<2x128xf32>
    %161 = vector.multi_reduction <minimumf>, %160, %cst_46 [2] : vector<2x128x16xf32> to vector<2x128xf32>
    %162 = vector.shape_cast %161 : vector<2x128xf32> to vector<2x128x1xf32>
    %163 = arith.subf %40, %162 : vector<2x128x1xf32>
    %cst_47 = arith.constant 1.000000e+00 : f32
    %164 = vector.broadcast %cst_47 : f32 to vector<2x128x1xf32>
    %165 = arith.mulf %163, %164 : vector<2x128x1xf32>
    %166 = math.exp %165 : vector<2x128x1xf32>
    %167 = vector.shape_cast %166 : vector<2x128x1xf32> to vector<2x128xf32>
    %168 = vector.broadcast %162 : vector<2x128x1xf32> to vector<2x128x16xf32>
    %169 = arith.cmpf oeq, %38, %168 : vector<2x128x16xf32>
    %170 = vector.shape_cast %1 : vector<2x16xf32> to vector<2x1x16xf32>
    %cst_48 = arith.constant 0.000000e+00 : f32
    %171 = vector.shape_cast %170 : vector<2x1x16xf32> to vector<2x1x16xf32>
    %172 = vector.broadcast %171 : vector<2x1x16xf32> to vector<2x128x16xf32>
    %173 = vector.broadcast %cst_48 : f32 to vector<2x128x16xf32>
    %174 = arith.select %169, %172, %173 : vector<2x128x16xi1>, vector<2x128x16xf32>
    %cst_49 = arith.constant dense<0.000000e+00> : vector<2x128xf32>
    %175 = vector.multi_reduction <add>, %174, %cst_49 [2] : vector<2x128x16xf32> to vector<2x128xf32>
    %176 = arith.mulf %167, %175 : vector<2x128xf32>
    %177 = arith.addf %139, %176 : vector<2x128xf32>
    %178 = vector.shape_cast %3 : vector<2x16xf32> to vector<2x1x16xf32>
    %cst_50 = arith.constant 0.000000e+00 : f32
    %179 = vector.shape_cast %178 : vector<2x1x16xf32> to vector<2x1x16xf32>
    %180 = vector.broadcast %179 : vector<2x1x16xf32> to vector<2x128x16xf32>
    %181 = vector.broadcast %cst_50 : f32 to vector<2x128x16xf32>
    %182 = arith.select %169, %180, %181 : vector<2x128x16xi1>, vector<2x128x16xf32>
    %cst_51 = arith.constant dense<0.000000e+00> : vector<2x128xf32>
    %183 = vector.multi_reduction <add>, %182, %cst_51 [2] : vector<2x128x16xf32> to vector<2x128xf32>
    %184 = arith.mulf %167, %183 : vector<2x128xf32>
    %185 = arith.addf %147, %184 : vector<2x128xf32>
    %186 = vector.shape_cast %5 : vector<2x16xf32> to vector<2x1x16xf32>
    %cst_52 = arith.constant 0.000000e+00 : f32
    %187 = vector.shape_cast %186 : vector<2x1x16xf32> to vector<2x1x16xf32>
    %188 = vector.broadcast %187 : vector<2x1x16xf32> to vector<2x128x16xf32>
    %189 = vector.broadcast %cst_52 : f32 to vector<2x128x16xf32>
    %190 = arith.select %169, %188, %189 : vector<2x128x16xi1>, vector<2x128x16xf32>
    %cst_53 = arith.constant dense<0.000000e+00> : vector<2x128xf32>
    %191 = vector.multi_reduction <add>, %190, %cst_53 [2] : vector<2x128x16xf32> to vector<2x128xf32>
    %192 = arith.mulf %167, %191 : vector<2x128xf32>
    %193 = arith.addf %155, %192 : vector<2x128xf32>
    %194 = arith.addf %156, %167 : vector<2x128xf32>
    %cst_54 = arith.constant 1.000000e+00 : f32
    %195 = vector.broadcast %cst_54 : f32 to vector<2x128xf32>
    %196 = arith.divf %195, %194 : vector<2x128xf32>
    %197 = arith.mulf %177, %196 : vector<2x128xf32>
    %c0_55 = arith.constant 0 : index
    %c0_56 = arith.constant 0 : index
    %c0_57 = arith.constant 0 : index
    %198 = vector.load %arg3[%c0_55, %c0_56, %c0_57] : memref<3x2x128xf32, #tpu.memory_space<vmem>>, vector<1x2x128xf32>
    %199 = vector.shape_cast %198 : vector<1x2x128xf32> to vector<2x128xf32>
    %200 = vector.shape_cast %197 : vector<2x128xf32> to vector<1x2x128xf32>
    tpu.vector_store %arg3[%c0_55, %c0_56, %c0_57], %200 {strides = array<i32>} : memref<3x2x128xf32, #tpu.memory_space<vmem>>, vector<1x2x128xf32>,
    %201 = arith.mulf %185, %196 : vector<2x128xf32>
    %c1_58 = arith.constant 1 : index
    %c0_59 = arith.constant 0 : index
    %c0_60 = arith.constant 0 : index
    %202 = vector.load %arg3[%c1_58, %c0_59, %c0_60] : memref<3x2x128xf32, #tpu.memory_space<vmem>>, vector<1x2x128xf32>
    %203 = vector.shape_cast %202 : vector<1x2x128xf32> to vector<2x128xf32>
    %204 = vector.shape_cast %201 : vector<2x128xf32> to vector<1x2x128xf32>
    tpu.vector_store %arg3[%c1_58, %c0_59, %c0_60], %204 {strides = array<i32>} : memref<3x2x128xf32, #tpu.memory_space<vmem>>, vector<1x2x128xf32>,
    %205 = arith.mulf %193, %196 : vector<2x128xf32>
    %c2_61 = arith.constant 2 : index
    %c0_62 = arith.constant 0 : index
    %c0_63 = arith.constant 0 : index
    %206 = vector.load %arg3[%c2_61, %c0_62, %c0_63] : memref<3x2x128xf32, #tpu.memory_space<vmem>>, vector<1x2x128xf32>
    %207 = vector.shape_cast %206 : vector<1x2x128xf32> to vector<2x128xf32>
    %208 = vector.shape_cast %205 : vector<2x128xf32> to vector<1x2x128xf32>
    tpu.vector_store %arg3[%c2_61, %c0_62, %c0_63], %208 {strides = array<i32>} : memref<3x2x128xf32, #tpu.memory_space<vmem>>, vector<1x2x128xf32>,
    return
  }
  func.func @transform_0(%arg0: i32) -> (i32, i32, i32) {
    %c0_i32 = arith.constant 0 : i32
    %c0_i32_0 = arith.constant 0 : i32
    %c0_i32_1 = arith.constant 0 : i32
    %c0_i32_2 = arith.constant 0 : i32
    return %c0_i32, %c0_i32_0, %c0_i32_1 : i32, i32, i32
  }
  func.func @transform_1(%arg0: i32) -> (i32, i32, i32) {
    %c0_i32 = arith.constant 0 : i32
    %c0_i32_0 = arith.constant 0 : i32
    %c0_i32_1 = arith.constant 0 : i32
    return %c0_i32, %c0_i32_0, %arg0 : i32, i32, i32
  }
  func.func @transform_2(%arg0: i32) -> (i32, i32, i32) {
    %c0_i32 = arith.constant 0 : i32
    %c0_i32_0 = arith.constant 0 : i32
    %c0_i32_1 = arith.constant 0 : i32
    return %c0_i32, %c0_i32_0, %arg0 : i32, i32, i32
  }
}

</mosaic_0001>

<llo_original>
// kernel: contact_samplenet_forward.2
$region0: #{contact_samplenet_forward.2}
  #allocation0 [shape = 'u32[]', space=smem, size = 0x4, offset = 0x4, fixed_abs, tag = 'smem constant byte address 0x4 - core index']
  #allocation1 [shape = 'u32[144,128]{1,0:T(1,128)}', space=vmem, size = 0x12000, scoped, tag = 'internal scratch']
  %s0 = inlined_call_operand.vmem [shape: f32[2,32], index: 0, kind: input, shape index: {}]
  %s1 = inlined_call_operand.vmem [shape: f32[32,256], index: 1, kind: input, shape index: {}]
  %s2 = inlined_call_operand.vmem [shape: f32[1,256], index: 2, kind: input, shape index: {}]
  %s3 = inlined_call_operand.vmem [shape: f32[1,256], index: 3, kind: input, shape index: {}]
  %s4 = inlined_call_operand.vmem [shape: f32[256,256], index: 4, kind: input, shape index: {}]
  %s5 = inlined_call_operand.vmem [shape: f32[1,256], index: 5, kind: input, shape index: {}]
  %s6 = inlined_call_operand.vmem [shape: f32[1,256], index: 6, kind: input, shape index: {}]
  %s7 = inlined_call_operand.vmem [shape: f32[256,256], index: 7, kind: input, shape index: {}]
  %s8 = inlined_call_operand.vmem [shape: f32[1,256], index: 8, kind: input, shape index: {}]
  %s9 = inlined_call_operand.vmem [shape: f32[1,256], index: 9, kind: input, shape index: {}]
  %s10 = inlined_call_operand.vmem [shape: f32[256,384], index: 10, kind: input, shape index: {}]
  %s11 = inlined_call_operand.vmem [shape: f32[1,384], index: 11, kind: input, shape index: {}]
  %s12 = inlined_call_operand.vmem [shape: f32[3,2,128], index: 12, kind: output, shape index: {}]
  %s13 = sld [smem:[#allocation0]]
  $region58: #{contact_samplenet_forward.2} parent=0
    _
  %s15 = ssub.s32 1, %s13
  %s16 = scalar_select 0, %s15, %s13
  // Predicated region
  $region2: #{contact_samplenet_forward.2} parent=0 // pred_check
    _
  $region3: #{contact_samplenet_forward.2} parent=0 // pred_check_branch
    %18 = sbr.rel (0) target = $region5
  $region4: #{contact_samplenet_forward.2} parent=0 // pred_region
    _
  $region5: #{contact_samplenet_forward.2} parent=0 // pred_fallthru
    _
  // Predicated region
  $region6: #{contact_samplenet_forward.2} parent=0 // pred_check
    _
  $region7: #{contact_samplenet_forward.2} parent=0 // pred_check_branch
    %20 = sbr.rel (0) target = $region9
  $region8: #{contact_samplenet_forward.2} parent=0 // pred_region
    _
  $region9: #{contact_samplenet_forward.2} parent=0 // pred_fallthru
    _
  // Predicated region
  $region10: #{contact_samplenet_forward.2} parent=0 // pred_check
    _
  $region11: #{contact_samplenet_forward.2} parent=0 // pred_check_branch
    %22 = sbr.rel (0) target = $region13
  $region12: #{contact_samplenet_forward.2} parent=0 // pred_region
    _
  $region13: #{contact_samplenet_forward.2} parent=0 // pred_fallthru
    _
  // Predicated region
  $region14: #{contact_samplenet_forward.2} parent=0 // pred_check
    _
  $region15: #{contact_samplenet_forward.2} parent=0 // pred_check_branch
    %24 = sbr.rel (0) target = $region17
  $region16: #{contact_samplenet_forward.2} parent=0 // pred_region
    _
  $region17: #{contact_samplenet_forward.2} parent=0 // pred_fallthru
    _
  // Predicated region
  $region18: #{contact_samplenet_forward.2} parent=0 // pred_check
    _
  $region19: #{contact_samplenet_forward.2} parent=0 // pred_check_branch
    %26 = sbr.rel (0) target = $region21
  $region20: #{contact_samplenet_forward.2} parent=0 // pred_region
    _
  $region21: #{contact_samplenet_forward.2} parent=0 // pred_fallthru
    _
  // Predicated region
  $region22: #{contact_samplenet_forward.2} parent=0 // pred_check
    _
  $region23: #{contact_samplenet_forward.2} parent=0 // pred_check_branch
    %28 = sbr.rel (0) target = $region25
  $region24: #{contact_samplenet_forward.2} parent=0 // pred_region
    _
  $region25: #{contact_samplenet_forward.2} parent=0 // pred_fallthru
    _
  // Predicated region
  $region26: #{contact_samplenet_forward.2} parent=0 // pred_check
    _
  $region27: #{contact_samplenet_forward.2} parent=0 // pred_check_branch
    %30 = sbr.rel (0) target = $region29
  $region28: #{contact_samplenet_forward.2} parent=0 // pred_region
    _
  $region29: #{contact_samplenet_forward.2} parent=0 // pred_fallthru
    _
  // Predicated region
  $region30: #{contact_samplenet_forward.2} parent=0 // pred_check
    _
  $region31: #{contact_samplenet_forward.2} parent=0 // pred_check_branch
    %32 = sbr.rel (0) target = $region33
  $region32: #{contact_samplenet_forward.2} parent=0 // pred_region
    _
  $region33: #{contact_samplenet_forward.2} parent=0 // pred_fallthru
    _
  // Predicated region
  $region34: #{contact_samplenet_forward.2} parent=0 // pred_check
    _
  $region35: #{contact_samplenet_forward.2} parent=0 // pred_check_branch
    %34 = sbr.rel (0) target = $region37
  $region36: #{contact_samplenet_forward.2} parent=0 // pred_region
    _
  $region37: #{contact_samplenet_forward.2} parent=0 // pred_fallthru
    _
  // Predicated region
  $region38: #{contact_samplenet_forward.2} parent=0 // pred_check
    _
  $region39: #{contact_samplenet_forward.2} parent=0 // pred_check_branch
    %36 = sbr.rel (0) target = $region41
  $region40: #{contact_samplenet_forward.2} parent=0 // pred_region
    _
  $region41: #{contact_samplenet_forward.2} parent=0 // pred_fallthru
    _
  // Predicated region
  $region42: #{contact_samplenet_forward.2} parent=0 // pred_check
    _
  $region43: #{contact_samplenet_forward.2} parent=0 // pred_check_branch
    %38 = sbr.rel (0) target = $region45
  $region44: #{contact_samplenet_forward.2} parent=0 // pred_region
    _
  $region45: #{contact_samplenet_forward.2} parent=0 // pred_fallthru
    _
  // Predicated region
  $region46: #{contact_samplenet_forward.2} parent=0 // pred_check
    _
  $region47: #{contact_samplenet_forward.2} parent=0 // pred_check_branch
    %40 = sbr.rel (0) target = $region49
  $region48: #{contact_samplenet_forward.2} parent=0 // pred_region
    _
  $region49: #{contact_samplenet_forward.2} parent=0 // pred_fallthru
    _
  %v41 = vld [vmem:[%s0] sm:$0x3]
  %v42 = vld [vmem:[%s1] sm:$0xff]
  %v43 = vld [vmem:[%s1 + $0x8] sm:$0xff]
  %v44 = vld [vmem:[%s1 + $0x10] sm:$0xff]
  %v45 = vld [vmem:[%s1 + $0x18] sm:$0xff]
  %v46 = vld [vmem:[%s1 + $0x20] sm:$0xff]
  %v47 = vld [vmem:[%s1 + $0x28] sm:$0xff]
  %v48 = vld [vmem:[%s1 + $0x30] sm:$0xff]
  %v49 = vld [vmem:[%s1 + $0x38] sm:$0xff]
  %vm50 = vcmask 261120
  %v52 = vsel %vm50, %v41, 0
  %54 = vmatprep.subr.mxu0 %v43
  %55 = vmatpush1.msra.mxu0 %v42
  %56 = vmatprep.subr.mxu0 %v45
  %57 = vmatpush1.msra.mxu0 %v44
  %58 = vmatprep.subr.mxu0 %v47
  %59 = vmatpush1.msra.mxu0 %v46
  %60 = vmatprep.subr.mxu0 %v49
  %61 = vmatpush1.msra.mxu0 %v48
  %62 = vmatprep.subr.mxu0 0.0
  %63 = vmatpush1.msra.mxu0 0.0
  %64 = vmatprep.subr.mxu0 0.0
  %65 = vmatpush1.msra.mxu0 0.0
  %66 = vmatprep.subr.mxu0 0.0
  %67 = vmatpush1.msra.mxu0 0.0
  %68 = vmatprep.subr.mxu0 0.0
  %69 = vmatpush1.msra.mxu0 0.0
  %70 = vmatprep.subr.mxu0 0.0
  %71 = vmatpush1.msra.mxu0 0.0
  %72 = vmatprep.subr.mxu0 0.0
  %73 = vmatpush1.msra.mxu0 0.0
  %74 = vmatprep.subr.mxu0 0.0
  %75 = vmatpush1.msra.mxu0 0.0
  %76 = vmatprep.subr.mxu0 0.0
  %77 = vmatpush1.msra.mxu0 0.0
  %78 = vmatprep.subr.mxu0 0.0
  %79 = vmatpush1.msra.mxu0 0.0
  %80 = vmatprep.subr.mxu0 0.0
  %81 = vmatpush1.msra.mxu0 0.0
  %82 = vmatprep.subr.mxu0 0.0
  %83 = vmatpush1.msra.mxu0 0.0
  %84 = vmatprep.subr.mxu0 0.0
  %85 = vmatpush1.msra.mxu0 0.0
  %86 = vmatprep.subr.mxu0 0.0
  %87 = vmatpush1.msra.mxu0 0.0
  %88 = vmatprep.subr.mxu0 0.0
  %89 = vmatpush1.msra.mxu0 0.0
  %90 = vmatprep.subr.mxu0 0.0
  %91 = vmatpush1.msra.mxu0 0.0
  %92 = vmatprep.subr.mxu0 0.0
  %93 = vmatpush1.msra.mxu0 0.0
  %94 = vmatprep.subr.mxu0 0.0
  %95 = vmatpush1.msra.mxu0 0.0
  %96 = vmatprep.subr.mxu0 0.0
  %97 = vmatpush1.msra.mxu0 0.0
  %98 = vmatprep.subr.mxu0 0.0
  %99 = vmatpush1.msra.mxu0 0.0
  %100 = vmatprep.subr.mxu0 0.0
  %101 = vmatpush1.msra.mxu0 0.0
  %102 = vmatprep.subr.mxu0 0.0
  %103 = vmatpush1.msra.mxu0 0.0
  %104 = vmatprep.subr.mxu0 0.0
  %105 = vmatpush1.msra.mxu0 0.0
  %106 = vmatprep.subr.mxu0 0.0
  %107 = vmatpush1.msra.mxu0 0.0
  %108 = vmatprep.subr.mxu0 0.0
  %109 = vmatpush1.msra.mxu0 0.0
  %110 = vmatprep.subr.mxu0 0.0
  %111 = vmatpush1.msra.mxu0 0.0
  %112 = vmatprep.subr.mxu0 0.0
  %113 = vmatpush1.msra.mxu0 0.0
  %114 = vmatprep.subr.mxu0 0.0
  %115 = vmatpush1.msra.mxu0 0.0
  %116 = vmatprep.subr.mxu0 0.0
  %117 = vmatpush1.msra.mxu0 0.0
  %118 = vmatprep.mubr.f32.mxu0 0.0
  %119 = vmatmul.mubr.f32.gmra.mrb[0].mxu0 %v52
  %v120 = vpop.f32.mrb[0].mxu0
  %v121 = vadd.f32 0.0, %v120
  %v122 = vpop.f32.mrb[0].mxu0
  %v123 = vadd.f32 0.0, %v122
  %124 = vdwg.mxu0
  %v125 = vld [vmem:[%s2] sm:$0x3]
  %v126 = vld [vmem:[%s3] sm:$0x3]
  %vm127 = vcmask 1041408
  %v128 = vsel %vm127, %v121, 0.0
  %v129 = vrot.slane %v128, 4
  %v130 = vadd.f32 %v128, %v129
  %v131 = vrot.slane %v130, 2
  %v132 = vadd.f32 %v130, %v131
  %v133 = vrot.slane %v132, 1
  %v134 = vadd.f32 %v132, %v133
  %v135 = vsel %vm127, %v123, 0.0
  %v136 = vrot.slane %v135, 4
  %v137 = vadd.f32 %v135, %v136
  %v138 = vrot.slane %v137, 2
  %v139 = vadd.f32 %v137, %v138
  %v140 = vrot.slane %v139, 1
  %v141 = vadd.f32 %v139, %v140
  %v142 = vrcp.pop 2.0
  %v143 = vmul.f32 %v134, %v142
  %v144 = vmul.f32 %v141, %v142
  %v145 = vsub.f32 %v121, %v143
  %v146 = vsub.f32 %v123, %v144
  %v147 = vmul.f32 %v145, %v145
  %v148 = vmul.f32 %v146, %v146
  %v149 = vsel %vm127, %v147, 0.0
  %v150 = vrot.slane %v149, 4
  %v151 = vadd.f32 %v149, %v150
  %v152 = vrot.slane %v151, 2
  %v153 = vadd.f32 %v151, %v152
  %v154 = vrot.slane %v153, 1
  %v155 = vadd.f32 %v153, %v154
  %v156 = vsel %vm127, %v148, 0.0
  %v157 = vrot.slane %v156, 4
  %v158 = vadd.f32 %v156, %v157
  %v159 = vrot.slane %v158, 2
  %v160 = vadd.f32 %v158, %v159
  %v161 = vrot.slane %v160, 1
  %v162 = vadd.f32 %v160, %v161
  %v163 = vmul.f32 %v155, %v142
  %v164 = vmul.f32 %v162, %v142
  %v165 = vadd.f32 %v163, 1e-05
  %v166 = vadd.f32 %v164, 1e-05
  %v167 = vrsqrt.pop %v165
  %v168 = vrsqrt.pop %v166
  %v169 = vmul.f32 %v145, %v167
  %v170 = vmul.f32 %v146, %v168
  %v172 = vlaneseq
  %v173 = vshrl.u32 %v172, 7
  %v174 = vsub.s32 0, %v173
  %v175 = vrot.slane %v125, %v174
  %v176 = vlaneseq
  %v177 = vshrl.u32 %v176, 7
  %v178 = vsub.s32 1, %v177
  %v179 = vrot.slane %v125, %v178
  %v182 = vmul.f32 %v169, %v175
  %v183 = vmul.f32 %v170, %v179
  %v185 = vlaneseq
  %v186 = vshrl.u32 %v185, 7
  %v187 = vsub.s32 0, %v186
  %v188 = vrot.slane %v126, %v187
  %v189 = vlaneseq
  %v190 = vshrl.u32 %v189, 7
  %v191 = vsub.s32 1, %v190
  %v192 = vrot.slane %v126, %v191
  %v195 = vadd.f32 %v182, %v188
  %v196 = vadd.f32 %v183, %v192
  %v197 = vmax.f32 %v195, 0.0
  %v198 = vmax.f32 %v196, 0.0
  %v199 = vld [vmem:[%s4] sm:$0xff]
  %v200 = vld [vmem:[%s4 + $0x8] sm:$0xff]
  %v201 = vld [vmem:[%s4 + $0x10] sm:$0xff]
  %v202 = vld [vmem:[%s4 + $0x18] sm:$0xff]
  %v203 = vld [vmem:[%s4 + $0x20] sm:$0xff]
  %v204 = vld [vmem:[%s4 + $0x28] sm:$0xff]
  %v205 = vld [vmem:[%s4 + $0x30] sm:$0xff]
  %v206 = vld [vmem:[%s4 + $0x38] sm:$0xff]
  %v207 = vld [vmem:[%s4 + $0x40] sm:$0xff]
  %v208 = vld [vmem:[%s4 + $0x48] sm:$0xff]
  %v209 = vld [vmem:[%s4 + $0x50] sm:$0xff]
  %v210 = vld [vmem:[%s4 + $0x58] sm:$0xff]
  %v211 = vld [vmem:[%s4 + $0x60] sm:$0xff]
  %v212 = vld [vmem:[%s4 + $0x68] sm:$0xff]
  %v213 = vld [vmem:[%s4 + $0x70] sm:$0xff]
  %v214 = vld [vmem:[%s4 + $0x78] sm:$0xff]
  %v215 = vld [vmem:[%s4 + $0x80] sm:$0xff]
  %v216 = vld [vmem:[%s4 + $0x88] sm:$0xff]
  %v217 = vld [vmem:[%s4 + $0x90] sm:$0xff]
  %v218 = vld [vmem:[%s4 + $0x98] sm:$0xff]
  %v219 = vld [vmem:[%s4 + $0xa0] sm:$0xff]
  %v220 = vld [vmem:[%s4 + $0xa8] sm:$0xff]
  %v221 = vld [vmem:[%s4 + $0xb0] sm:$0xff]
  %v222 = vld [vmem:[%s4 + $0xb8] sm:$0xff]
  %v223 = vld [vmem:[%s4 + $0xc0] sm:$0xff]
  %v224 = vld [vmem:[%s4 + $0xc8] sm:$0xff]
  %v225 = vld [vmem:[%s4 + $0xd0] sm:$0xff]
  %v226 = vld [vmem:[%s4 + $0xd8] sm:$0xff]
  %v227 = vld [vmem:[%s4 + $0xe0] sm:$0xff]
  %v228 = vld [vmem:[%s4 + $0xe8] sm:$0xff]
  %v229 = vld [vmem:[%s4 + $0xf0] sm:$0xff]
  %v230 = vld [vmem:[%s4 + $0xf8] sm:$0xff]
  %v231 = vld [vmem:[%s4 + $0x100] sm:$0xff]
  %v232 = vld [vmem:[%s4 + $0x108] sm:$0xff]
  %v233 = vld [vmem:[%s4 + $0x110] sm:$0xff]
  %v234 = vld [vmem:[%s4 + $0x118] sm:$0xff]
  %v235 = vld [vmem:[%s4 + $0x120] sm:$0xff]
  %v236 = vld [vmem:[%s4 + $0x128] sm:$0xff]
  %v237 = vld [vmem:[%s4 + $0x130] sm:$0xff]
  %v238 = vld [vmem:[%s4 + $0x138] sm:$0xff]
  %v239 = vld [vmem:[%s4 + $0x140] sm:$0xff]
  %v240 = vld [vmem:[%s4 + $0x148] sm:$0xff]
  %v241 = vld [vmem:[%s4 + $0x150] sm:$0xff]
  %v242 = vld [vmem:[%s4 + $0x158] sm:$0xff]
  %v243 = vld [vmem:[%s4 + $0x160] sm:$0xff]
  %v244 = vld [vmem:[%s4 + $0x168] sm:$0xff]
  %v245 = vld [vmem:[%s4 + $0x170] sm:$0xff]
  %v246 = vld [vmem:[%s4 + $0x178] sm:$0xff]
  %v247 = vld [vmem:[%s4 + $0x180] sm:$0xff]
  %v248 = vld [vmem:[%s4 + $0x188] sm:$0xff]
  %v249 = vld [vmem:[%s4 + $0x190] sm:$0xff]
  %v250 = vld [vmem:[%s4 + $0x198] sm:$0xff]
  %v251 = vld [vmem:[%s4 + $0x1a0] sm:$0xff]
  %v252 = vld [vmem:[%s4 + $0x1a8] sm:$0xff]
  %v253 = vld [vmem:[%s4 + $0x1b0] sm:$0xff]
  %v254 = vld [vmem:[%s4 + $0x1b8] sm:$0xff]
  %v255 = vld [vmem:[%s4 + $0x1c0] sm:$0xff]
  %v256 = vld [vmem:[%s4 + $0x1c8] sm:$0xff]
  %v257 = vld [vmem:[%s4 + $0x1d0] sm:$0xff]
  %v258 = vld [vmem:[%s4 + $0x1d8] sm:$0xff]
  %v259 = vld [vmem:[%s4 + $0x1e0] sm:$0xff]
  %v260 = vld [vmem:[%s4 + $0x1e8] sm:$0xff]
  %v261 = vld [vmem:[%s4 + $0x1f0] sm:$0xff]
  %v262 = vld [vmem:[%s4 + $0x1f8] sm:$0xff]
  %263 = vmatprep.subr.mxu0 %v200
  %264 = vmatpush1.msra.mxu0 %v199
  %265 = vmatprep.subr.mxu0 %v202
  %266 = vmatpush1.msra.mxu0 %v201
  %267 = vmatprep.subr.mxu0 %v204
  %268 = vmatpush1.msra.mxu0 %v203
  %269 = vmatprep.subr.mxu0 %v206
  %270 = vmatpush1.msra.mxu0 %v205
  %271 = vmatprep.subr.mxu0 %v208
  %272 = vmatpush1.msra.mxu0 %v207
  %273 = vmatprep.subr.mxu0 %v210
  %274 = vmatpush1.msra.mxu0 %v209
  %275 = vmatprep.subr.mxu0 %v212
  %276 = vmatpush1.msra.mxu0 %v211
  %277 = vmatprep.subr.mxu0 %v214
  %278 = vmatpush1.msra.mxu0 %v213
  %279 = vmatprep.subr.mxu0 %v216
  %280 = vmatpush1.msra.mxu0 %v215
  %281 = vmatprep.subr.mxu0 %v218
  %282 = vmatpush1.msra.mxu0 %v217
  %283 = vmatprep.subr.mxu0 %v220
  %284 = vmatpush1.msra.mxu0 %v219
  %285 = vmatprep.subr.mxu0 %v222
  %286 = vmatpush1.msra.mxu0 %v221
  %287 = vmatprep.subr.mxu0 %v224
  %288 = vmatpush1.msra.mxu0 %v223
  %289 = vmatprep.subr.mxu0 %v226
  %290 = vmatpush1.msra.mxu0 %v225
  %291 = vmatprep.subr.mxu0 %v228
  %292 = vmatpush1.msra.mxu0 %v227
  %293 = vmatprep.subr.mxu0 %v230
  %294 = vmatpush1.msra.mxu0 %v229
  %295 = vmatprep.subr.mxu0 %v232
  %296 = vmatpush1.msra.mxu0 %v231
  %297 = vmatprep.subr.mxu0 %v234
  %298 = vmatpush1.msra.mxu0 %v233
  %299 = vmatprep.subr.mxu0 %v236
  %300 = vmatpush1.msra.mxu0 %v235
  %301 = vmatprep.subr.mxu0 %v238
  %302 = vmatpush1.msra.mxu0 %v237
  %303 = vmatprep.subr.mxu0 %v240
  %304 = vmatpush1.msra.mxu0 %v239
  %305 = vmatprep.subr.mxu0 %v242
  %306 = vmatpush1.msra.mxu0 %v241
  %307 = vmatprep.subr.mxu0 %v244
  %308 = vmatpush1.msra.mxu0 %v243
  %309 = vmatprep.subr.mxu0 %v246
  %310 = vmatpush1.msra.mxu0 %v245
  %311 = vmatprep.subr.mxu0 %v248
  %312 = vmatpush1.msra.mxu0 %v247
  %313 = vmatprep.subr.mxu0 %v250
  %314 = vmatpush1.msra.mxu0 %v249
  %315 = vmatprep.subr.mxu0 %v252
  %316 = vmatpush1.msra.mxu0 %v251
  %317 = vmatprep.subr.mxu0 %v254
  %318 = vmatpush1.msra.mxu0 %v253
  %319 = vmatprep.subr.mxu0 %v256
  %320 = vmatpush1.msra.mxu0 %v255
  %321 = vmatprep.subr.mxu0 %v258
  %322 = vmatpush1.msra.mxu0 %v257
  %323 = vmatprep.subr.mxu0 %v260
  %324 = vmatpush1.msra.mxu0 %v259
  %325 = vmatprep.subr.mxu0 %v262
  %326 = vmatpush1.msra.mxu0 %v261
  %327 = vmatprep.mubr.f32.mxu0 %v198
  %328 = vmatmul.mubr.f32.gmra.mrb[0].mxu0 %v197
  %v329 = vpop.f32.mrb[0].mxu0
  %v330 = vadd.f32 0.0, %v329
  %v331 = vpop.f32.mrb[0].mxu0
  %v332 = vadd.f32 0.0, %v331
  %333 = vdwg.mxu0
  %v334 = vld [vmem:[%s5] sm:$0x3]
  %v335 = vld [vmem:[%s6] sm:$0x3]
  %v336 = vsel %vm127, %v330, 0.0
  %v337 = vrot.slane %v336, 4
  %v338 = vadd.f32 %v336, %v337
  %v339 = vrot.slane %v338, 2
  %v340 = vadd.f32 %v338, %v339
  %v341 = vrot.slane %v340, 1
  %v342 = vadd.f32 %v340, %v341
  %v343 = vsel %vm127, %v332, 0.0
  %v344 = vrot.slane %v343, 4
  %v345 = vadd.f32 %v343, %v344
  %v346 = vrot.slane %v345, 2
  %v347 = vadd.f32 %v345, %v346
  %v348 = vrot.slane %v347, 1
  %v349 = vadd.f32 %v347, %v348
  %v350 = vmul.f32 %v342, %v142
  %v351 = vmul.f32 %v349, %v142
  %v352 = vsub.f32 %v330, %v350
  %v353 = vsub.f32 %v332, %v351
  %v354 = vmul.f32 %v352, %v352
  %v355 = vmul.f32 %v353, %v353
  %v356 = vsel %vm127, %v354, 0.0
  %v357 = vrot.slane %v356, 4
  %v358 = vadd.f32 %v356, %v357
  %v359 = vrot.slane %v358, 2
  %v360 = vadd.f32 %v358, %v359
  %v361 = vrot.slane %v360, 1
  %v362 = vadd.f32 %v360, %v361
  %v363 = vsel %vm127, %v355, 0.0
  %v364 = vrot.slane %v363, 4
  %v365 = vadd.f32 %v363, %v364
  %v366 = vrot.slane %v365, 2
  %v367 = vadd.f32 %v365, %v366
  %v368 = vrot.slane %v367, 1
  %v369 = vadd.f32 %v367, %v368
  %v370 = vmul.f32 %v362, %v142
  %v371 = vmul.f32 %v369, %v142
  %v372 = vadd.f32 %v370, 1e-05
  %v373 = vadd.f32 %v371, 1e-05
  %v374 = vrsqrt.pop %v372
  %v375 = vrsqrt.pop %v373
  %v376 = vmul.f32 %v352, %v374
  %v377 = vmul.f32 %v353, %v375
  %v379 = vlaneseq
  %v380 = vshrl.u32 %v379, 7
  %v381 = vsub.s32 0, %v380
  %v382 = vrot.slane %v334, %v381
  %v383 = vlaneseq
  %v384 = vshrl.u32 %v383, 7
  %v385 = vsub.s32 1, %v384
  %v386 = vrot.slane %v334, %v385
  %v389 = vmul.f32 %v376, %v382
  %v390 = vmul.f32 %v377, %v386
  %v392 = vlaneseq
  %v393 = vshrl.u32 %v392, 7
  %v394 = vsub.s32 0, %v393
  %v395 = vrot.slane %v335, %v394
  %v396 = vlaneseq
  %v397 = vshrl.u32 %v396, 7
  %v398 = vsub.s32 1, %v397
  %v399 = vrot.slane %v335, %v398
  %v402 = vadd.f32 %v389, %v395
  %v403 = vadd.f32 %v390, %v399
  %v404 = vmax.f32 %v402, 0.0
  %v405 = vmax.f32 %v403, 0.0
  %v406 = vld [vmem:[%s7] sm:$0xff]
  %v407 = vld [vmem:[%s7 + $0x8] sm:$0xff]
  %v408 = vld [vmem:[%s7 + $0x10] sm:$0xff]
  %v409 = vld [vmem:[%s7 + $0x18] sm:$0xff]
  %v410 = vld [vmem:[%s7 + $0x20] sm:$0xff]
  %v411 = vld [vmem:[%s7 + $0x28] sm:$0xff]
  %v412 = vld [vmem:[%s7 + $0x30] sm:$0xff]
  %v413 = vld [vmem:[%s7 + $0x38] sm:$0xff]
  %v414 = vld [vmem:[%s7 + $0x40] sm:$0xff]
  %v415 = vld [vmem:[%s7 + $0x48] sm:$0xff]
  %v416 = vld [vmem:[%s7 + $0x50] sm:$0xff]
  %v417 = vld [vmem:[%s7 + $0x58] sm:$0xff]
  %v418 = vld [vmem:[%s7 + $0x60] sm:$0xff]
  %v419 = vld [vmem:[%s7 + $0x68] sm:$0xff]
  %v420 = vld [vmem:[%s7 + $0x70] sm:$0xff]
  %v421 = vld [vmem:[%s7 + $0x78] sm:$0xff]
  %v422 = vld [vmem:[%s7 + $0x80] sm:$0xff]
  %v423 = vld [vmem:[%s7 + $0x88] sm:$0xff]
  %v424 = vld [vmem:[%s7 + $0x90] sm:$0xff]
  %v425 = vld [vmem:[%s7 + $0x98] sm:$0xff]
  %v426 = vld [vmem:[%s7 + $0xa0] sm:$0xff]
  %v427 = vld [vmem:[%s7 + $0xa8] sm:$0xff]
  %v428 = vld [vmem:[%s7 + $0xb0] sm:$0xff]
  %v429 = vld [vmem:[%s7 + $0xb8] sm:$0xff]
  %v430 = vld [vmem:[%s7 + $0xc0] sm:$0xff]
  %v431 = vld [vmem:[%s7 + $0xc8] sm:$0xff]
  %v432 = vld [vmem:[%s7 + $0xd0] sm:$0xff]
  %v433 = vld [vmem:[%s7 + $0xd8] sm:$0xff]
  %v434 = vld [vmem:[%s7 + $0xe0] sm:$0xff]
  %v435 = vld [vmem:[%s7 + $0xe8] sm:$0xff]
  %v436 = vld [vmem:[%s7 + $0xf0] sm:$0xff]
  %v437 = vld [vmem:[%s7 + $0xf8] sm:$0xff]
  %v438 = vld [vmem:[%s7 + $0x100] sm:$0xff]
  %v439 = vld [vmem:[%s7 + $0x108] sm:$0xff]
  %v440 = vld [vmem:[%s7 + $0x110] sm:$0xff]
  %v441 = vld [vmem:[%s7 + $0x118] sm:$0xff]
  %v442 = vld [vmem:[%s7 + $0x120] sm:$0xff]
  %v443 = vld [vmem:[%s7 + $0x128] sm:$0xff]
  %v444 = vld [vmem:[%s7 + $0x130] sm:$0xff]
  %v445 = vld [vmem:[%s7 + $0x138] sm:$0xff]
  %v446 = vld [vmem:[%s7 + $0x140] sm:$0xff]
  %v447 = vld [vmem:[%s7 + $0x148] sm:$0xff]
  %v448 = vld [vmem:[%s7 + $0x150] sm:$0xff]
  %v449 = vld [vmem:[%s7 + $0x158] sm:$0xff]
  %v450 = vld [vmem:[%s7 + $0x160] sm:$0xff]
  %v451 = vld [vmem:[%s7 + $0x168] sm:$0xff]
  %v452 = vld [vmem:[%s7 + $0x170] sm:$0xff]
  %v453 = vld [vmem:[%s7 + $0x178] sm:$0xff]
  %v454 = vld [vmem:[%s7 + $0x180] sm:$0xff]
  %v455 = vld [vmem:[%s7 + $0x188] sm:$0xff]
  %v456 = vld [vmem:[%s7 + $0x190] sm:$0xff]
  %v457 = vld [vmem:[%s7 + $0x198] sm:$0xff]
  %v458 = vld [vmem:[%s7 + $0x1a0] sm:$0xff]
  %v459 = vld [vmem:[%s7 + $0x1a8] sm:$0xff]
  %v460 = vld [vmem:[%s7 + $0x1b0] sm:$0xff]
  %v461 = vld [vmem:[%s7 + $0x1b8] sm:$0xff]
  %v462 = vld [vmem:[%s7 + $0x1c0] sm:$0xff]
  %v463 = vld [vmem:[%s7 + $0x1c8] sm:$0xff]
  %v464 = vld [vmem:[%s7 + $0x1d0] sm:$0xff]
  %v465 = vld [vmem:[%s7 + $0x1d8] sm:$0xff]
  %v466 = vld [vmem:[%s7 + $0x1e0] sm:$0xff]
  %v467 = vld [vmem:[%s7 + $0x1e8] sm:$0xff]
  %v468 = vld [vmem:[%s7 + $0x1f0] sm:$0xff]
  %v469 = vld [vmem:[%s7 + $0x1f8] sm:$0xff]
  %470 = vmatprep.subr.mxu0 %v407
  %471 = vmatpush1.msra.mxu0 %v406
  %472 = vmatprep.subr.mxu0 %v409
  %473 = vmatpush1.msra.mxu0 %v408
  %474 = vmatprep.subr.mxu0 %v411
  %475 = vmatpush1.msra.mxu0 %v410
  %476 = vmatprep.subr.mxu0 %v413
  %477 = vmatpush1.msra.mxu0 %v412
  %478 = vmatprep.subr.mxu0 %v415
  %479 = vmatpush1.msra.mxu0 %v414
  %480 = vmatprep.subr.mxu0 %v417
  %481 = vmatpush1.msra.mxu0 %v416
  %482 = vmatprep.subr.mxu0 %v419
  %483 = vmatpush1.msra.mxu0 %v418
  %484 = vmatprep.subr.mxu0 %v421
  %485 = vmatpush1.msra.mxu0 %v420
  %486 = vmatprep.subr.mxu0 %v423
  %487 = vmatpush1.msra.mxu0 %v422
  %488 = vmatprep.subr.mxu0 %v425
  %489 = vmatpush1.msra.mxu0 %v424
  %490 = vmatprep.subr.mxu0 %v427
  %491 = vmatpush1.msra.mxu0 %v426
  %492 = vmatprep.subr.mxu0 %v429
  %493 = vmatpush1.msra.mxu0 %v428
  %494 = vmatprep.subr.mxu0 %v431
  %495 = vmatpush1.msra.mxu0 %v430
  %496 = vmatprep.subr.mxu0 %v433
  %497 = vmatpush1.msra.mxu0 %v432
  %498 = vmatprep.subr.mxu0 %v435
  %499 = vmatpush1.msra.mxu0 %v434
  %500 = vmatprep.subr.mxu0 %v437
  %501 = vmatpush1.msra.mxu0 %v436
  %502 = vmatprep.subr.mxu0 %v439
  %503 = vmatpush1.msra.mxu0 %v438
  %504 = vmatprep.subr.mxu0 %v441
  %505 = vmatpush1.msra.mxu0 %v440
  %506 = vmatprep.subr.mxu0 %v443
  %507 = vmatpush1.msra.mxu0 %v442
  %508 = vmatprep.subr.mxu0 %v445
  %509 = vmatpush1.msra.mxu0 %v444
  %510 = vmatprep.subr.mxu0 %v447
  %511 = vmatpush1.msra.mxu0 %v446
  %512 = vmatprep.subr.mxu0 %v449
  %513 = vmatpush1.msra.mxu0 %v448
  %514 = vmatprep.subr.mxu0 %v451
  %515 = vmatpush1.msra.mxu0 %v450
  %516 = vmatprep.subr.mxu0 %v453
  %517 = vmatpush1.msra.mxu0 %v452
  %518 = vmatprep.subr.mxu0 %v455
  %519 = vmatpush1.msra.mxu0 %v454
  %520 = vmatprep.subr.mxu0 %v457
  %521 = vmatpush1.msra.mxu0 %v456
  %522 = vmatprep.subr.mxu0 %v459
  %523 = vmatpush1.msra.mxu0 %v458
  %524 = vmatprep.subr.mxu0 %v461
  %525 = vmatpush1.msra.mxu0 %v460
  %526 = vmatprep.subr.mxu0 %v463
  %527 = vmatpush1.msra.mxu0 %v462
  %528 = vmatprep.subr.mxu0 %v465
  %529 = vmatpush1.msra.mxu0 %v464
  %530 = vmatprep.subr.mxu0 %v467
  %531 = vmatpush1.msra.mxu0 %v466
  %532 = vmatprep.subr.mxu0 %v469
  %533 = vmatpush1.msra.mxu0 %v468
  %534 = vmatprep.mubr.f32.mxu0 %v405
  %535 = vmatmul.mubr.f32.gmra.mrb[0].mxu0 %v404
  %v536 = vpop.f32.mrb[0].mxu0
  %v537 = vadd.f32 0.0, %v536
  %v538 = vpop.f32.mrb[0].mxu0
  %v539 = vadd.f32 0.0, %v538
  %540 = vdwg.mxu0
  %v541 = vld [vmem:[%s8] sm:$0x3]
  %v542 = vld [vmem:[%s9] sm:$0x3]
  %v543 = vsel %vm127, %v537, 0.0
  %v544 = vrot.slane %v543, 4
  %v545 = vadd.f32 %v543, %v544
  %v546 = vrot.slane %v545, 2
  %v547 = vadd.f32 %v545, %v546
  %v548 = vrot.slane %v547, 1
  %v549 = vadd.f32 %v547, %v548
  %v550 = vsel %vm127, %v539, 0.0
  %v551 = vrot.slane %v550, 4
  %v552 = vadd.f32 %v550, %v551
  %v553 = vrot.slane %v552, 2
  %v554 = vadd.f32 %v552, %v553
  %v555 = vrot.slane %v554, 1
  %v556 = vadd.f32 %v554, %v555
  %v557 = vmul.f32 %v549, %v142
  %v558 = vmul.f32 %v556, %v142
  %v559 = vsub.f32 %v537, %v557
  %v560 = vsub.f32 %v539, %v558
  %v561 = vmul.f32 %v559, %v559
  %v562 = vmul.f32 %v560, %v560
  %v563 = vsel %vm127, %v561, 0.0
  %v564 = vrot.slane %v563, 4
  %v565 = vadd.f32 %v563, %v564
  %v566 = vrot.slane %v565, 2
  %v567 = vadd.f32 %v565, %v566
  %v568 = vrot.slane %v567, 1
  %v569 = vadd.f32 %v567, %v568
  %v570 = vsel %vm127, %v562, 0.0
  %v571 = vrot.slane %v570, 4
  %v572 = vadd.f32 %v570, %v571
  %v573 = vrot.slane %v572, 2
  %v574 = vadd.f32 %v572, %v573
  %v575 = vrot.slane %v574, 1
  %v576 = vadd.f32 %v574, %v575
  %v577 = vmul.f32 %v569, %v142
  %v578 = vmul.f32 %v576, %v142
  %v579 = vadd.f32 %v577, 1e-05
  %v580 = vadd.f32 %v578, 1e-05
  %v581 = vrsqrt.pop %v579
  %v582 = vrsqrt.pop %v580
  %v583 = vmul.f32 %v559, %v581
  %v584 = vmul.f32 %v560, %v582
  %v586 = vlaneseq
  %v587 = vshrl.u32 %v586, 7
  %v588 = vsub.s32 0, %v587
  %v589 = vrot.slane %v541, %v588
  %v590 = vlaneseq
  %v591 = vshrl.u32 %v590, 7
  %v592 = vsub.s32 1, %v591
  %v593 = vrot.slane %v541, %v592
  %v596 = vmul.f32 %v583, %v589
  %v597 = vmul.f32 %v584, %v593
  %v599 = vlaneseq
  %v600 = vshrl.u32 %v599, 7
  %v601 = vsub.s32 0, %v600
  %v602 = vrot.slane %v542, %v601
  %v603 = vlaneseq
  %v604 = vshrl.u32 %v603, 7
  %v605 = vsub.s32 1, %v604
  %v606 = vrot.slane %v542, %v605
  %v609 = vadd.f32 %v596, %v602
  %v610 = vadd.f32 %v597, %v606
  %v611 = vmax.f32 %v609, 0.0
  %v612 = vmax.f32 %v610, 0.0
  %v613 = vld [vmem:[%s10] sm:$0xff]
  %v614 = vld [vmem:[%s10 + $0x8] sm:$0xff]
  %v615 = vld [vmem:[%s10 + $0x10] sm:$0xff]
  %v616 = vld [vmem:[%s10 + $0x18] sm:$0xff]
  %v617 = vld [vmem:[%s10 + $0x20] sm:$0xff]
  %v618 = vld [vmem:[%s10 + $0x28] sm:$0xff]
  %v619 = vld [vmem:[%s10 + $0x30] sm:$0xff]
  %v620 = vld [vmem:[%s10 + $0x38] sm:$0xff]
  %v621 = vld [vmem:[%s10 + $0x40] sm:$0xff]
  %v622 = vld [vmem:[%s10 + $0x48] sm:$0xff]
  %v623 = vld [vmem:[%s10 + $0x50] sm:$0xff]
  %v624 = vld [vmem:[%s10 + $0x58] sm:$0xff]
  %v625 = vld [vmem:[%s10 + $0x60] sm:$0xff]
  %v626 = vld [vmem:[%s10 + $0x68] sm:$0xff]
  %v627 = vld [vmem:[%s10 + $0x70] sm:$0xff]
  %v628 = vld [vmem:[%s10 + $0x78] sm:$0xff]
  %v629 = vld [vmem:[%s10 + $0x80] sm:$0xff]
  %v630 = vld [vmem:[%s10 + $0x88] sm:$0xff]
  %v631 = vld [vmem:[%s10 + $0x90] sm:$0xff]
  %v632 = vld [vmem:[%s10 + $0x98] sm:$0xff]
  %v633 = vld [vmem:[%s10 + $0xa0] sm:$0xff]
  %v634 = vld [vmem:[%s10 + $0xa8] sm:$0xff]
  %v635 = vld [vmem:[%s10 + $0xb0] sm:$0xff]
  %v636 = vld [vmem:[%s10 + $0xb8] sm:$0xff]
  %v637 = vld [vmem:[%s10 + $0xc0] sm:$0xff]
  %v638 = vld [vmem:[%s10 + $0xc8] sm:$0xff]
  %v639 = vld [vmem:[%s10 + $0xd0] sm:$0xff]
  %v640 = vld [vmem:[%s10 + $0xd8] sm:$0xff]
  %v641 = vld [vmem:[%s10 + $0xe0] sm:$0xff]
  %v642 = vld [vmem:[%s10 + $0xe8] sm:$0xff]
  %v643 = vld [vmem:[%s10 + $0xf0] sm:$0xff]
  %v644 = vld [vmem:[%s10 + $0xf8] sm:$0xff]
  %v645 = vld [vmem:[%s10 + $0x100] sm:$0xff]
  %v646 = vld [vmem:[%s10 + $0x108] sm:$0xff]
  %v647 = vld [vmem:[%s10 + $0x110] sm:$0xff]
  %v648 = vld [vmem:[%s10 + $0x118] sm:$0xff]
  %v649 = vld [vmem:[%s10 + $0x120] sm:$0xff]
  %v650 = vld [vmem:[%s10 + $0x128] sm:$0xff]
  %v651 = vld [vmem:[%s10 + $0x130] sm:$0xff]
  %v652 = vld [vmem:[%s10 + $0x138] sm:$0xff]
  %v653 = vld [vmem:[%s10 + $0x140] sm:$0xff]
  %v654 = vld [vmem:[%s10 + $0x148] sm:$0xff]
  %v655 = vld [vmem:[%s10 + $0x150] sm:$0xff]
  %v656 = vld [vmem:[%s10 + $0x158] sm:$0xff]
  %v657 = vld [vmem:[%s10 + $0x160] sm:$0xff]
  %v658 = vld [vmem:[%s10 + $0x168] sm:$0xff]
  %v659 = vld [vmem:[%s10 + $0x170] sm:$0xff]
  %v660 = vld [vmem:[%s10 + $0x178] sm:$0xff]
  %v661 = vld [vmem:[%s10 + $0x180] sm:$0xff]
  %v662 = vld [vmem:[%s10 + $0x188] sm:$0xff]
  %v663 = vld [vmem:[%s10 + $0x190] sm:$0xff]
  %v664 = vld [vmem:[%s10 + $0x198] sm:$0xff]
  %v665 = vld [vmem:[%s10 + $0x1a0] sm:$0xff]
  %v666 = vld [vmem:[%s10 + $0x1a8] sm:$0xff]
  %v667 = vld [vmem:[%s10 + $0x1b0] sm:$0xff]
  %v668 = vld [vmem:[%s10 + $0x1b8] sm:$0xff]
  %v669 = vld [vmem:[%s10 + $0x1c0] sm:$0xff]
  %v670 = vld [vmem:[%s10 + $0x1c8] sm:$0xff]
  %v671 = vld [vmem:[%s10 + $0x1d0] sm:$0xff]
  %v672 = vld [vmem:[%s10 + $0x1d8] sm:$0xff]
  %v673 = vld [vmem:[%s10 + $0x1e0] sm:$0xff]
  %v674 = vld [vmem:[%s10 + $0x1e8] sm:$0xff]
  %v675 = vld [vmem:[%s10 + $0x1f0] sm:$0xff]
  %v676 = vld [vmem:[%s10 + $0x1f8] sm:$0xff]
  %v677 = vld [vmem:[%s10 + $0x200] sm:$0xff]
  %v678 = vld [vmem:[%s10 + $0x208] sm:$0xff]
  %v679 = vld [vmem:[%s10 + $0x210] sm:$0xff]
  %v680 = vld [vmem:[%s10 + $0x218] sm:$0xff]
  %v681 = vld [vmem:[%s10 + $0x220] sm:$0xff]
  %v682 = vld [vmem:[%s10 + $0x228] sm:$0xff]
  %v683 = vld [vmem:[%s10 + $0x230] sm:$0xff]
  %v684 = vld [vmem:[%s10 + $0x238] sm:$0xff]
  %v685 = vld [vmem:[%s10 + $0x240] sm:$0xff]
  %v686 = vld [vmem:[%s10 + $0x248] sm:$0xff]
  %v687 = vld [vmem:[%s10 + $0x250] sm:$0xff]
  %v688 = vld [vmem:[%s10 + $0x258] sm:$0xff]
  %v689 = vld [vmem:[%s10 + $0x260] sm:$0xff]
  %v690 = vld [vmem:[%s10 + $0x268] sm:$0xff]
  %v691 = vld [vmem:[%s10 + $0x270] sm:$0xff]
  %v692 = vld [vmem:[%s10 + $0x278] sm:$0xff]
  %v693 = vld [vmem:[%s10 + $0x280] sm:$0xff]
  %v694 = vld [vmem:[%s10 + $0x288] sm:$0xff]
  %v695 = vld [vmem:[%s10 + $0x290] sm:$0xff]
  %v696 = vld [vmem:[%s10 + $0x298] sm:$0xff]
  %v697 = vld [vmem:[%s10 + $0x2a0] sm:$0xff]
  %v698 = vld [vmem:[%s10 + $0x2a8] sm:$0xff]
  %v699 = vld [vmem:[%s10 + $0x2b0] sm:$0xff]
  %v700 = vld [vmem:[%s10 + $0x2b8] sm:$0xff]
  %v701 = vld [vmem:[%s10 + $0x2c0] sm:$0xff]
  %v702 = vld [vmem:[%s10 + $0x2c8] sm:$0xff]
  %v703 = vld [vmem:[%s10 + $0x2d0] sm:$0xff]
  %v704 = vld [vmem:[%s10 + $0x2d8] sm:$0xff]
  %v705 = vld [vmem:[%s10 + $0x2e0] sm:$0xff]
  %v706 = vld [vmem:[%s10 + $0x2e8] sm:$0xff]
  %v707 = vld [vmem:[%s10 + $0x2f0] sm:$0xff]
  %v708 = vld [vmem:[%s10 + $0x2f8] sm:$0xff]
  %v709 = vld [vmem:[%s11] sm:$0x7]
  %v711 = vlaneseq
  %v712 = vshrl.u32 %v711, 7
  %v713 = vsub.s32 0, %v712
  %v714 = vrot.slane %v709, %v713
  %v715 = vlaneseq
  %v716 = vshrl.u32 %v715, 7
  %v717 = vsub.s32 1, %v716
  %v718 = vrot.slane %v709, %v717
  %v719 = vlaneseq
  %v720 = vshrl.u32 %v719, 7
  %v721 = vsub.s32 2, %v720
  %v722 = vrot.slane %v709, %v721
  %726 = vmatprep.subr.mxu0 %v614
  %727 = vmatpush1.msra.mxu0 %v613
  %728 = vmatprep.subr.mxu0 %v617
  %729 = vmatpush1.msra.mxu0 %v616
  %730 = vmatprep.subr.mxu0 %v620
  %731 = vmatpush1.msra.mxu0 %v619
  %732 = vmatprep.subr.mxu0 %v623
  %733 = vmatpush1.msra.mxu0 %v622
  %734 = vmatprep.subr.mxu0 %v626
  %735 = vmatpush1.msra.mxu0 %v625
  %736 = vmatprep.subr.mxu0 %v629
  %737 = vmatpush1.msra.mxu0 %v628
  %738 = vmatprep.subr.mxu0 %v632
  %739 = vmatpush1.msra.mxu0 %v631
  %740 = vmatprep.subr.mxu0 %v635
  %741 = vmatpush1.msra.mxu0 %v634
  %742 = vmatprep.subr.mxu0 %v638
  %743 = vmatpush1.msra.mxu0 %v637
  %744 = vmatprep.subr.mxu0 %v641
  %745 = vmatpush1.msra.mxu0 %v640
  %746 = vmatprep.subr.mxu0 %v644
  %747 = vmatpush1.msra.mxu0 %v643
  %748 = vmatprep.subr.mxu0 %v647
  %749 = vmatpush1.msra.mxu0 %v646
  %750 = vmatprep.subr.mxu0 %v650
  %751 = vmatpush1.msra.mxu0 %v649
  %752 = vmatprep.subr.mxu0 %v653
  %753 = vmatpush1.msra.mxu0 %v652
  %754 = vmatprep.subr.mxu0 %v656
  %755 = vmatpush1.msra.mxu0 %v655
  %756 = vmatprep.subr.mxu0 %v659
  %757 = vmatpush1.msra.mxu0 %v658
  %758 = vmatprep.subr.mxu0 %v662
  %759 = vmatpush1.msra.mxu0 %v661
  %760 = vmatprep.subr.mxu0 %v665
  %761 = vmatpush1.msra.mxu0 %v664
  %762 = vmatprep.subr.mxu0 %v668
  %763 = vmatpush1.msra.mxu0 %v667
  %764 = vmatprep.subr.mxu0 %v671
  %765 = vmatpush1.msra.mxu0 %v670
  %766 = vmatprep.subr.mxu0 %v674
  %767 = vmatpush1.msra.mxu0 %v673
  %768 = vmatprep.subr.mxu0 %v677
  %769 = vmatpush1.msra.mxu0 %v676
  %770 = vmatprep.subr.mxu0 %v680
  %771 = vmatpush1.msra.mxu0 %v679
  %772 = vmatprep.subr.mxu0 %v683
  %773 = vmatpush1.msra.mxu0 %v682
  %774 = vmatprep.subr.mxu0 %v686
  %775 = vmatpush1.msra.mxu0 %v685
  %776 = vmatprep.subr.mxu0 %v689
  %777 = vmatpush1.msra.mxu0 %v688
  %778 = vmatprep.subr.mxu0 %v692
  %779 = vmatpush1.msra.mxu0 %v691
  %780 = vmatprep.subr.mxu0 %v695
  %781 = vmatpush1.msra.mxu0 %v694
  %782 = vmatprep.subr.mxu0 %v698
  %783 = vmatpush1.msra.mxu0 %v697
  %784 = vmatprep.subr.mxu0 %v701
  %785 = vmatpush1.msra.mxu0 %v700
  %786 = vmatprep.subr.mxu0 %v704
  %787 = vmatpush1.msra.mxu0 %v703
  %788 = vmatprep.subr.mxu0 %v707
  %789 = vmatpush1.msra.mxu0 %v706
  %790 = vmatprep.mubr.f32.mxu0 %v612
  %791 = vmatmul.mubr.f32.gmra.mrb[0].mxu0 %v611
  %v792 = vpop.f32.mrb[0].mxu0
  %v793 = vadd.f32 %v714, %v792
  %v794 = vpop.f32.mrb[0].mxu0
  %v795 = vadd.f32 %v718, %v794
  %796 = vdwg.mxu0
  %797 = vmatprep.subr.mxu0 0.0
  %798 = vmatpush1.msra.mxu0 %v615
  %799 = vmatprep.subr.mxu0 0.0
  %800 = vmatpush1.msra.mxu0 %v618
  %801 = vmatprep.subr.mxu0 0.0
  %802 = vmatpush1.msra.mxu0 %v621
  %803 = vmatprep.subr.mxu0 0.0
  %804 = vmatpush1.msra.mxu0 %v624
  %805 = vmatprep.subr.mxu0 0.0
  %806 = vmatpush1.msra.mxu0 %v627
  %807 = vmatprep.subr.mxu0 0.0
  %808 = vmatpush1.msra.mxu0 %v630
  %809 = vmatprep.subr.mxu0 0.0
  %810 = vmatpush1.msra.mxu0 %v633
  %811 = vmatprep.subr.mxu0 0.0
  %812 = vmatpush1.msra.mxu0 %v636
  %813 = vmatprep.subr.mxu0 0.0
  %814 = vmatpush1.msra.mxu0 %v639
  %815 = vmatprep.subr.mxu0 0.0
  %816 = vmatpush1.msra.mxu0 %v642
  %817 = vmatprep.subr.mxu0 0.0
  %818 = vmatpush1.msra.mxu0 %v645
  %819 = vmatprep.subr.mxu0 0.0
  %820 = vmatpush1.msra.mxu0 %v648
  %821 = vmatprep.subr.mxu0 0.0
  %822 = vmatpush1.msra.mxu0 %v651
  %823 = vmatprep.subr.mxu0 0.0
  %824 = vmatpush1.msra.mxu0 %v654
  %825 = vmatprep.subr.mxu0 0.0
  %826 = vmatpush1.msra.mxu0 %v657
  %827 = vmatprep.subr.mxu0 0.0
  %828 = vmatpush1.msra.mxu0 %v660
  %829 = vmatprep.subr.mxu0 0.0
  %830 = vmatpush1.msra.mxu0 %v663
  %831 = vmatprep.subr.mxu0 0.0
  %832 = vmatpush1.msra.mxu0 %v666
  %833 = vmatprep.subr.mxu0 0.0
  %834 = vmatpush1.msra.mxu0 %v669
  %835 = vmatprep.subr.mxu0 0.0
  %836 = vmatpush1.msra.mxu0 %v672
  %837 = vmatprep.subr.mxu0 0.0
  %838 = vmatpush1.msra.mxu0 %v675
  %839 = vmatprep.subr.mxu0 0.0
  %840 = vmatpush1.msra.mxu0 %v678
  %841 = vmatprep.subr.mxu0 0.0
  %842 = vmatpush1.msra.mxu0 %v681
  %843 = vmatprep.subr.mxu0 0.0
  %844 = vmatpush1.msra.mxu0 %v684
  %845 = vmatprep.subr.mxu0 0.0
  %846 = vmatpush1.msra.mxu0 %v687
  %847 = vmatprep.subr.mxu0 0.0
  %848 = vmatpush1.msra.mxu0 %v690
  %849 = vmatprep.subr.mxu0 0.0
  %850 = vmatpush1.msra.mxu0 %v693
  %851 = vmatprep.subr.mxu0 0.0
  %852 = vmatpush1.msra.mxu0 %v696
  %853 = vmatprep.subr.mxu0 0.0
  %854 = vmatpush1.msra.mxu0 %v699
  %855 = vmatprep.subr.mxu0 0.0
  %856 = vmatpush1.msra.mxu0 %v702
  %857 = vmatprep.subr.mxu0 0.0
  %858 = vmatpush1.msra.mxu0 %v705
  %859 = vmatprep.subr.mxu0 0.0
  %860 = vmatpush1.msra.mxu0 %v708
  %861 = vmatprep.mubr.f32.mxu0 %v612
  %862 = vmatmul.mubr.f32.gmra.mrb[0].mxu0 %v611
  %v863 = vpop.f32.mrb[0].mxu0
  %v864 = vadd.f32 %v722, %v863
  %v865 = vpop.f32.mrb[0].mxu0
  %866 = vdwg.mxu0
  %867 = vst [vmem:[%s12] sm:$0x3] %v793
  %s868 = scalar_lea.vmem %s12, 2
  %869 = vst [vmem:[%s868] sm:$0x3] %v795
  %s870 = scalar_lea.vmem %s12, 4
  %871 = vst [vmem:[%s870] sm:$0x3] %v864
  // Predicated region
  $region50: #{contact_samplenet_forward.2} parent=0 // pred_check
    _
  $region51: #{contact_samplenet_forward.2} parent=0 // pred_check_branch
    %873 = sbr.rel (0) target = $region53
  $region52: #{contact_samplenet_forward.2} parent=0 // pred_region
    _
  $region53: #{contact_samplenet_forward.2} parent=0 // pred_fallthru
    _
  // Predicated region
  $region54: #{contact_samplenet_forward.2} parent=0 // pred_check
    _
  $region55: #{contact_samplenet_forward.2} parent=0 // pred_check_branch
    %875 = sbr.rel (0) target = $region57
  $region56: #{contact_samplenet_forward.2} parent=0 // pred_region
    _
  $region57: #{contact_samplenet_forward.2} parent=0 // pred_fallthru
    _

// kernel: contact_samplenet_forward.3
$region0: #{contact_samplenet_forward.3}
  #allocation0 [shape = 'u32[]', space=smem, size = 0x4, offset = 0x4, fixed_abs, tag = 'smem constant byte address 0x4 - core index']
  #allocation1 [shape = 'u32[144,128]{1,0:T(1,128)}', space=vmem, size = 0x12000, scoped, tag = 'internal scratch']
  %s0 = inlined_call_operand.vmem [shape: f32[3,2,16], index: 0, kind: input, shape index: {}]
  %s1 = inlined_call_operand.vmem [shape: f32[3,2,128], index: 1, kind: input, shape index: {}]
  %s2 = inlined_call_operand.hbm [shape: f32[3,2,128], index: 2, kind: output, shape index: {}]
  %s3 = sld [smem:[#allocation0]]
  $region18: #{contact_samplenet_forward.3} parent=0
    _
  %s5 = ssub.s32 1, %s3
  %s6 = scalar_select 0, %s5, %s3
  $region1: #{contact_samplenet_forward.3} parent=0
    #allocation2 [shape = 'u8[3072]{0}', space=vmem, size = 0xc00, scoped, tag = 'output window, operand 0, single buffered']
    #allocation3 [shape = 's32[1]{0}', space=sflag, size = 0x4, scoped, tag = 'scoped memory for contact_samplenet_forward.3']
    %7 = vsyncpa [#allocation3], 0
    // Predicated region
    $region2: #{contact_samplenet_forward.3} parent=1 // pred_check
      _
    $region3: #{contact_samplenet_forward.3} parent=1 // pred_check_branch
      %9 = sbr.rel (0) target = $region5
    $region4: #{contact_samplenet_forward.3} parent=1 // pred_region
      _
    $region5: #{contact_samplenet_forward.3} parent=1 // pred_fallthru
      _
    // Predicated region
    $region6: #{contact_samplenet_forward.3} parent=1 // pred_check
      _
    $region7: #{contact_samplenet_forward.3} parent=1 // pred_check_branch
      %11 = sbr.rel (0) target = $region9
    $region8: #{contact_samplenet_forward.3} parent=1 // pred_region
      _
    $region9: #{contact_samplenet_forward.3} parent=1 // pred_fallthru
      _
    %v12 = vld [vmem:[%s0] sm:$0x3]
    %s13 = scalar_lea.vmem %s0, 2
    %v14 = vld [vmem:[%s13] sm:$0x3]
    %s15 = scalar_lea.vmem %s0, 4
    %v16 = vld [vmem:[%s15] sm:$0x3]
    %v17 = vld [vmem:[%s1] sm:$0x3]
    %s18 = scalar_lea.vmem %s1, 2
    %v19 = vld [vmem:[%s18] sm:$0x3]
    %s20 = scalar_lea.vmem %s1, 4
    %v21 = vld [vmem:[%s20] sm:$0x3]
    %v22 = vmul.f32 %v12, %v12
    %v23 = vmul.f32 %v14, %v14
    %v24 = vadd.f32 %v22, %v23
    %v25 = vmul.f32 %v16, %v16
    %v26 = vadd.f32 %v24, %v25
    %v29 = vunpack.c.l.s4 1966171168
    %v30 = vunpack.c.0.s8 %v29
    %v31 = vlaneseq
    %v32 = vshrl.u32 %v31, 7
    %v33 = vsub.s32 %v30, %v32
    %v34 = vrot.slane %v26, %v33
    %v35 = vcombine.high %v34, %v34
    %v37 = vunpack.c.l.s4 1966171168
    %v38 = vunpack.c.0.s8 %v37
    %v39 = vlaneseq
    %v40 = vshrl.u32 %v39, 7
    %v41 = vsub.s32 %v38, %v40
    %v42 = vrot.slane %v34, %v41
    %v44 = vunpack.c.l.s4 1966171168
    %v45 = vunpack.c.0.s8 %v44
    %v46 = vlaneseq
    %v47 = vshrl.u32 %v46, 7
    %v48 = vsub.s32 %v45, %v47
    %v49 = vrot.slane %v35, %v48
    %v50 = vlaneseq
    %v51 = vshrl.u32 %v50, 7
    %v52 = vsub.s32 0, %v51
    %v53 = vrot.slane %v17, %v52
    %55 = vbcast.lane.b32.xlu0 %v53, 256
    %v56 = vpop.permute.xlu0 %55
    %s58 = sor.u32 256, 8
    %59 = vbcast.lane.b32.xlu0 %v53, %s58
    %v60 = vpop.permute.xlu0 %59
    %s62 = sor.u32 256, 16
    %63 = vbcast.lane.b32.xlu0 %v53, %s62
    %v64 = vpop.permute.xlu0 %63
    %s66 = sor.u32 256, 24
    %67 = vbcast.lane.b32.xlu0 %v53, %s66
    %v68 = vpop.permute.xlu0 %67
    %s70 = sor.u32 256, 32
    %71 = vbcast.lane.b32.xlu0 %v53, %s70
    %v72 = vpop.permute.xlu0 %71
    %s74 = sor.u32 256, 40
    %75 = vbcast.lane.b32.xlu0 %v53, %s74
    %v76 = vpop.permute.xlu0 %75
    %s78 = sor.u32 256, 48
    %79 = vbcast.lane.b32.xlu0 %v53, %s78
    %v80 = vpop.permute.xlu0 %79
    %s82 = sor.u32 256, 56
    %83 = vbcast.lane.b32.xlu0 %v53, %s82
    %v84 = vpop.permute.xlu0 %83
    %s86 = sor.u32 256, 64
    %87 = vbcast.lane.b32.xlu0 %v53, %s86
    %v88 = vpop.permute.xlu0 %87
    %s90 = sor.u32 256, 72
    %91 = vbcast.lane.b32.xlu0 %v53, %s90
    %v92 = vpop.permute.xlu0 %91
    %s94 = sor.u32 256, 80
    %95 = vbcast.lane.b32.xlu0 %v53, %s94
    %v96 = vpop.permute.xlu0 %95
    %s98 = sor.u32 256, 88
    %99 = vbcast.lane.b32.xlu0 %v53, %s98
    %v100 = vpop.permute.xlu0 %99
    %s102 = sor.u32 256, 96
    %103 = vbcast.lane.b32.xlu0 %v53, %s102
    %v104 = vpop.permute.xlu0 %103
    %s106 = sor.u32 256, 104
    %107 = vbcast.lane.b32.xlu0 %v53, %s106
    %v108 = vpop.permute.xlu0 %107
    %s110 = sor.u32 256, 112
    %111 = vbcast.lane.b32.xlu0 %v53, %s110
    %v112 = vpop.permute.xlu0 %111
    %s114 = sor.u32 256, 120
    %115 = vbcast.lane.b32.xlu0 %v53, %s114
    %v116 = vpop.permute.xlu0 %115
    %v117 = vlaneseq
    %v118 = vshrl.u32 %v117, 7
    %v119 = vsub.s32 1, %v118
    %v120 = vrot.slane %v17, %v119
    %122 = vbcast.lane.b32.xlu0 %v120, 256
    %v123 = vpop.permute.xlu0 %122
    %s125 = sor.u32 256, 8
    %126 = vbcast.lane.b32.xlu0 %v120, %s125
    %v127 = vpop.permute.xlu0 %126
    %s129 = sor.u32 256, 16
    %130 = vbcast.lane.b32.xlu0 %v120, %s129
    %v131 = vpop.permute.xlu0 %130
    %s133 = sor.u32 256, 24
    %134 = vbcast.lane.b32.xlu0 %v120, %s133
    %v135 = vpop.permute.xlu0 %134
    %s137 = sor.u32 256, 32
    %138 = vbcast.lane.b32.xlu0 %v120, %s137
    %v139 = vpop.permute.xlu0 %138
    %s141 = sor.u32 256, 40
    %142 = vbcast.lane.b32.xlu0 %v120, %s141
    %v143 = vpop.permute.xlu0 %142
    %s145 = sor.u32 256, 48
    %146 = vbcast.lane.b32.xlu0 %v120, %s145
    %v147 = vpop.permute.xlu0 %146
    %s149 = sor.u32 256, 56
    %150 = vbcast.lane.b32.xlu0 %v120, %s149
    %v151 = vpop.permute.xlu0 %150
    %s153 = sor.u32 256, 64
    %154 = vbcast.lane.b32.xlu0 %v120, %s153
    %v155 = vpop.permute.xlu0 %154
    %s157 = sor.u32 256, 72
    %158 = vbcast.lane.b32.xlu0 %v120, %s157
    %v159 = vpop.permute.xlu0 %158
    %s161 = sor.u32 256, 80
    %162 = vbcast.lane.b32.xlu0 %v120, %s161
    %v163 = vpop.permute.xlu0 %162
    %s165 = sor.u32 256, 88
    %166 = vbcast.lane.b32.xlu0 %v120, %s165
    %v167 = vpop.permute.xlu0 %166
    %s169 = sor.u32 256, 96
    %170 = vbcast.lane.b32.xlu0 %v120, %s169
    %v171 = vpop.permute.xlu0 %170
    %s173 = sor.u32 256, 104
    %174 = vbcast.lane.b32.xlu0 %v120, %s173
    %v175 = vpop.permute.xlu0 %174
    %s177 = sor.u32 256, 112
    %178 = vbcast.lane.b32.xlu0 %v120, %s177
    %v179 = vpop.permute.xlu0 %178
    %s181 = sor.u32 256, 120
    %182 = vbcast.lane.b32.xlu0 %v120, %s181
    %v183 = vpop.permute.xlu0 %182
    %v186 = vunpack.c.l.s4 1966171168
    %v187 = vunpack.c.0.s8 %v186
    %v188 = vlaneseq
    %v189 = vshrl.u32 %v188, 7
    %v190 = vsub.s32 %v187, %v189
    %v191 = vrot.slane %v12, %v190
    %v192 = vcombine.high %v191, %v191
    %v194 = vunpack.c.l.s4 1966171168
    %v195 = vunpack.c.0.s8 %v194
    %v196 = vlaneseq
    %v197 = vshrl.u32 %v196, 7
    %v198 = vsub.s32 %v195, %v197
    %v199 = vrot.slane %v191, %v198
    %v201 = vunpack.c.l.s4 1966171168
    %v202 = vunpack.c.0.s8 %v201
    %v203 = vlaneseq
    %v204 = vshrl.u32 %v203, 7
    %v205 = vsub.s32 %v202, %v204
    %v206 = vrot.slane %v192, %v205
    %v207 = vlaneseq
    %v208 = vshrl.u32 %v207, 7
    %v209 = vsub.s32 0, %v208
    %v210 = vrot.slane %v199, %v209
    %v211 = vlaneseq
    %v212 = vshrl.u32 %v211, 7
    %v213 = vsub.s32 0, %v212
    %v214 = vrot.slane %v206, %v213
    %v217 = vmul.f32 %v56, %v210
    %v218 = vmul.f32 %v60, %v210
    %v219 = vmul.f32 %v64, %v210
    %v220 = vmul.f32 %v68, %v210
    %v221 = vmul.f32 %v72, %v210
    %v222 = vmul.f32 %v76, %v210
    %v223 = vmul.f32 %v80, %v210
    %v224 = vmul.f32 %v84, %v210
    %v225 = vmul.f32 %v88, %v210
    %v226 = vmul.f32 %v92, %v210
    %v227 = vmul.f32 %v96, %v210
    %v228 = vmul.f32 %v100, %v210
    %v229 = vmul.f32 %v104, %v210
    %v230 = vmul.f32 %v108, %v210
    %v231 = vmul.f32 %v112, %v210
    %v232 = vmul.f32 %v116, %v210
    %v233 = vmul.f32 %v123, %v214
    %v234 = vmul.f32 %v127, %v214
    %v235 = vmul.f32 %v131, %v214
    %v236 = vmul.f32 %v135, %v214
    %v237 = vmul.f32 %v139, %v214
    %v238 = vmul.f32 %v143, %v214
    %v239 = vmul.f32 %v147, %v214
    %v240 = vmul.f32 %v151, %v214
    %v241 = vmul.f32 %v155, %v214
    %v242 = vmul.f32 %v159, %v214
    %v243 = vmul.f32 %v163, %v214
    %v244 = vmul.f32 %v167, %v214
    %v245 = vmul.f32 %v171, %v214
    %v246 = vmul.f32 %v175, %v214
    %v247 = vmul.f32 %v179, %v214
    %v248 = vmul.f32 %v183, %v214
    %v249 = vlaneseq
    %v250 = vshrl.u32 %v249, 7
    %v251 = vsub.s32 0, %v250
    %v252 = vrot.slane %v19, %v251
    %254 = vbcast.lane.b32.xlu0 %v252, 256
    %v255 = vpop.permute.xlu0 %254
    %s257 = sor.u32 256, 8
    %258 = vbcast.lane.b32.xlu0 %v252, %s257
    %v259 = vpop.permute.xlu0 %258
    %s261 = sor.u32 256, 16
    %262 = vbcast.lane.b32.xlu0 %v252, %s261
    %v263 = vpop.permute.xlu0 %262
    %s265 = sor.u32 256, 24
    %266 = vbcast.lane.b32.xlu0 %v252, %s265
    %v267 = vpop.permute.xlu0 %266
    %s269 = sor.u32 256, 32
    %270 = vbcast.lane.b32.xlu0 %v252, %s269
    %v271 = vpop.permute.xlu0 %270
    %s273 = sor.u32 256, 40
    %274 = vbcast.lane.b32.xlu0 %v252, %s273
    %v275 = vpop.permute.xlu0 %274
    %s277 = sor.u32 256, 48
    %278 = vbcast.lane.b32.xlu0 %v252, %s277
    %v279 = vpop.permute.xlu0 %278
    %s281 = sor.u32 256, 56
    %282 = vbcast.lane.b32.xlu0 %v252, %s281
    %v283 = vpop.permute.xlu0 %282
    %s285 = sor.u32 256, 64
    %286 = vbcast.lane.b32.xlu0 %v252, %s285
    %v287 = vpop.permute.xlu0 %286
    %s289 = sor.u32 256, 72
    %290 = vbcast.lane.b32.xlu0 %v252, %s289
    %v291 = vpop.permute.xlu0 %290
    %s293 = sor.u32 256, 80
    %294 = vbcast.lane.b32.xlu0 %v252, %s293
    %v295 = vpop.permute.xlu0 %294
    %s297 = sor.u32 256, 88
    %298 = vbcast.lane.b32.xlu0 %v252, %s297
    %v299 = vpop.permute.xlu0 %298
    %s301 = sor.u32 256, 96
    %302 = vbcast.lane.b32.xlu0 %v252, %s301
    %v303 = vpop.permute.xlu0 %302
    %s305 = sor.u32 256, 104
    %306 = vbcast.lane.b32.xlu0 %v252, %s305
    %v307 = vpop.permute.xlu0 %306
    %s309 = sor.u32 256, 112
    %310 = vbcast.lane.b32.xlu0 %v252, %s309
    %v311 = vpop.permute.xlu0 %310
    %s313 = sor.u32 256, 120
    %314 = vbcast.lane.b32.xlu0 %v252, %s313
    %v315 = vpop.permute.xlu0 %314
    %v316 = vlaneseq
    %v317 = vshrl.u32 %v316, 7
    %v318 = vsub.s32 1, %v317
    %v319 = vrot.slane %v19, %v318
    %321 = vbcast.lane.b32.xlu0 %v319, 256
    %v322 = vpop.permute.xlu0 %321
    %s324 = sor.u32 256, 8
    %325 = vbcast.lane.b32.xlu0 %v319, %s324
    %v326 = vpop.permute.xlu0 %325
    %s328 = sor.u32 256, 16
    %329 = vbcast.lane.b32.xlu0 %v319, %s328
    %v330 = vpop.permute.xlu0 %329
    %s332 = sor.u32 256, 24
    %333 = vbcast.lane.b32.xlu0 %v319, %s332
    %v334 = vpop.permute.xlu0 %333
    %s336 = sor.u32 256, 32
    %337 = vbcast.lane.b32.xlu0 %v319, %s336
    %v338 = vpop.permute.xlu0 %337
    %s340 = sor.u32 256, 40
    %341 = vbcast.lane.b32.xlu0 %v319, %s340
    %v342 = vpop.permute.xlu0 %341
    %s344 = sor.u32 256, 48
    %345 = vbcast.lane.b32.xlu0 %v319, %s344
    %v346 = vpop.permute.xlu0 %345
    %s348 = sor.u32 256, 56
    %349 = vbcast.lane.b32.xlu0 %v319, %s348
    %v350 = vpop.permute.xlu0 %349
    %s352 = sor.u32 256, 64
    %353 = vbcast.lane.b32.xlu0 %v319, %s352
    %v354 = vpop.permute.xlu0 %353
    %s356 = sor.u32 256, 72
    %357 = vbcast.lane.b32.xlu0 %v319, %s356
    %v358 = vpop.permute.xlu0 %357
    %s360 = sor.u32 256, 80
    %361 = vbcast.lane.b32.xlu0 %v319, %s360
    %v362 = vpop.permute.xlu0 %361
    %s364 = sor.u32 256, 88
    %365 = vbcast.lane.b32.xlu0 %v319, %s364
    %v366 = vpop.permute.xlu0 %365
    %s368 = sor.u32 256, 96
    %369 = vbcast.lane.b32.xlu0 %v319, %s368
    %v370 = vpop.permute.xlu0 %369
    %s372 = sor.u32 256, 104
    %373 = vbcast.lane.b32.xlu0 %v319, %s372
    %v374 = vpop.permute.xlu0 %373
    %s376 = sor.u32 256, 112
    %377 = vbcast.lane.b32.xlu0 %v319, %s376
    %v378 = vpop.permute.xlu0 %377
    %s380 = sor.u32 256, 120
    %381 = vbcast.lane.b32.xlu0 %v319, %s380
    %v382 = vpop.permute.xlu0 %381
    %v385 = vunpack.c.l.s4 1966171168
    %v386 = vunpack.c.0.s8 %v385
    %v387 = vlaneseq
    %v388 = vshrl.u32 %v387, 7
    %v389 = vsub.s32 %v386, %v388
    %v390 = vrot.slane %v14, %v389
    %v391 = vcombine.high %v390, %v390
    %v393 = vunpack.c.l.s4 1966171168
    %v394 = vunpack.c.0.s8 %v393
    %v395 = vlaneseq
    %v396 = vshrl.u32 %v395, 7
    %v397 = vsub.s32 %v394, %v396
    %v398 = vrot.slane %v390, %v397
    %v400 = vunpack.c.l.s4 1966171168
    %v401 = vunpack.c.0.s8 %v400
    %v402 = vlaneseq
    %v403 = vshrl.u32 %v402, 7
    %v404 = vsub.s32 %v401, %v403
    %v405 = vrot.slane %v391, %v404
    %v406 = vlaneseq
    %v407 = vshrl.u32 %v406, 7
    %v408 = vsub.s32 0, %v407
    %v409 = vrot.slane %v398, %v408
    %v410 = vlaneseq
    %v411 = vshrl.u32 %v410, 7
    %v412 = vsub.s32 0, %v411
    %v413 = vrot.slane %v405, %v412
    %v416 = vmul.f32 %v255, %v409
    %v417 = vmul.f32 %v259, %v409
    %v418 = vmul.f32 %v263, %v409
    %v419 = vmul.f32 %v267, %v409
    %v420 = vmul.f32 %v271, %v409
    %v421 = vmul.f32 %v275, %v409
    %v422 = vmul.f32 %v279, %v409
    %v423 = vmul.f32 %v283, %v409
    %v424 = vmul.f32 %v287, %v409
    %v425 = vmul.f32 %v291, %v409
    %v426 = vmul.f32 %v295, %v409
    %v427 = vmul.f32 %v299, %v409
    %v428 = vmul.f32 %v303, %v409
    %v429 = vmul.f32 %v307, %v409
    %v430 = vmul.f32 %v311, %v409
    %v431 = vmul.f32 %v315, %v409
    %v432 = vmul.f32 %v322, %v413
    %v433 = vmul.f32 %v326, %v413
    %v434 = vmul.f32 %v330, %v413
    %v435 = vmul.f32 %v334, %v413
    %v436 = vmul.f32 %v338, %v413
    %v437 = vmul.f32 %v342, %v413
    %v438 = vmul.f32 %v346, %v413
    %v439 = vmul.f32 %v350, %v413
    %v440 = vmul.f32 %v354, %v413
    %v441 = vmul.f32 %v358, %v413
    %v442 = vmul.f32 %v362, %v413
    %v443 = vmul.f32 %v366, %v413
    %v444 = vmul.f32 %v370, %v413
    %v445 = vmul.f32 %v374, %v413
    %v446 = vmul.f32 %v378, %v413
    %v447 = vmul.f32 %v382, %v413
    %v448 = vadd.f32 %v217, %v416
    %v449 = vadd.f32 %v218, %v417
    %v450 = vadd.f32 %v219, %v418
    %v451 = vadd.f32 %v220, %v419
    %v452 = vadd.f32 %v221, %v420
    %v453 = vadd.f32 %v222, %v421
    %v454 = vadd.f32 %v223, %v422
    %v455 = vadd.f32 %v224, %v423
    %v456 = vadd.f32 %v225, %v424
    %v457 = vadd.f32 %v226, %v425
    %v458 = vadd.f32 %v227, %v426
    %v459 = vadd.f32 %v228, %v427
    %v460 = vadd.f32 %v229, %v428
    %v461 = vadd.f32 %v230, %v429
    %v462 = vadd.f32 %v231, %v430
    %v463 = vadd.f32 %v232, %v431
    %v464 = vadd.f32 %v233, %v432
    %v465 = vadd.f32 %v234, %v433
    %v466 = vadd.f32 %v235, %v434
    %v467 = vadd.f32 %v236, %v435
    %v468 = vadd.f32 %v237, %v436
    %v469 = vadd.f32 %v238, %v437
    %v470 = vadd.f32 %v239, %v438
    %v471 = vadd.f32 %v240, %v439
    %v472 = vadd.f32 %v241, %v440
    %v473 = vadd.f32 %v242, %v441
    %v474 = vadd.f32 %v243, %v442
    %v475 = vadd.f32 %v244, %v443
    %v476 = vadd.f32 %v245, %v444
    %v477 = vadd.f32 %v246, %v445
    %v478 = vadd.f32 %v247, %v446
    %v479 = vadd.f32 %v248, %v447
    %v480 = vlaneseq
    %v481 = vshrl.u32 %v480, 7
    %v482 = vsub.s32 0, %v481
    %v483 = vrot.slane %v21, %v482
    %485 = vbcast.lane.b32.xlu0 %v483, 256
    %v486 = vpop.permute.xlu0 %485
    %s488 = sor.u32 256, 8
    %489 = vbcast.lane.b32.xlu0 %v483, %s488
    %v490 = vpop.permute.xlu0 %489
    %s492 = sor.u32 256, 16
    %493 = vbcast.lane.b32.xlu0 %v483, %s492
    %v494 = vpop.permute.xlu0 %493
    %s496 = sor.u32 256, 24
    %497 = vbcast.lane.b32.xlu0 %v483, %s496
    %v498 = vpop.permute.xlu0 %497
    %s500 = sor.u32 256, 32
    %501 = vbcast.lane.b32.xlu0 %v483, %s500
    %v502 = vpop.permute.xlu0 %501
    %s504 = sor.u32 256, 40
    %505 = vbcast.lane.b32.xlu0 %v483, %s504
    %v506 = vpop.permute.xlu0 %505
    %s508 = sor.u32 256, 48
    %509 = vbcast.lane.b32.xlu0 %v483, %s508
    %v510 = vpop.permute.xlu0 %509
    %s512 = sor.u32 256, 56
    %513 = vbcast.lane.b32.xlu0 %v483, %s512
    %v514 = vpop.permute.xlu0 %513
    %s516 = sor.u32 256, 64
    %517 = vbcast.lane.b32.xlu0 %v483, %s516
    %v518 = vpop.permute.xlu0 %517
    %s520 = sor.u32 256, 72
    %521 = vbcast.lane.b32.xlu0 %v483, %s520
    %v522 = vpop.permute.xlu0 %521
    %s524 = sor.u32 256, 80
    %525 = vbcast.lane.b32.xlu0 %v483, %s524
    %v526 = vpop.permute.xlu0 %525
    %s528 = sor.u32 256, 88
    %529 = vbcast.lane.b32.xlu0 %v483, %s528
    %v530 = vpop.permute.xlu0 %529
    %s532 = sor.u32 256, 96
    %533 = vbcast.lane.b32.xlu0 %v483, %s532
    %v534 = vpop.permute.xlu0 %533
    %s536 = sor.u32 256, 104
    %537 = vbcast.lane.b32.xlu0 %v483, %s536
    %v538 = vpop.permute.xlu0 %537
    %s540 = sor.u32 256, 112
    %541 = vbcast.lane.b32.xlu0 %v483, %s540
    %v542 = vpop.permute.xlu0 %541
    %s544 = sor.u32 256, 120
    %545 = vbcast.lane.b32.xlu0 %v483, %s544
    %v546 = vpop.permute.xlu0 %545
    %v547 = vlaneseq
    %v548 = vshrl.u32 %v547, 7
    %v549 = vsub.s32 1, %v548
    %v550 = vrot.slane %v21, %v549
    %552 = vbcast.lane.b32.xlu0 %v550, 256
    %v553 = vpop.permute.xlu0 %552
    %s555 = sor.u32 256, 8
    %556 = vbcast.lane.b32.xlu0 %v550, %s555
    %v557 = vpop.permute.xlu0 %556
    %s559 = sor.u32 256, 16
    %560 = vbcast.lane.b32.xlu0 %v550, %s559
    %v561 = vpop.permute.xlu0 %560
    %s563 = sor.u32 256, 24
    %564 = vbcast.lane.b32.xlu0 %v550, %s563
    %v565 = vpop.permute.xlu0 %564
    %s567 = sor.u32 256, 32
    %568 = vbcast.lane.b32.xlu0 %v550, %s567
    %v569 = vpop.permute.xlu0 %568
    %s571 = sor.u32 256, 40
    %572 = vbcast.lane.b32.xlu0 %v550, %s571
    %v573 = vpop.permute.xlu0 %572
    %s575 = sor.u32 256, 48
    %576 = vbcast.lane.b32.xlu0 %v550, %s575
    %v577 = vpop.permute.xlu0 %576
    %s579 = sor.u32 256, 56
    %580 = vbcast.lane.b32.xlu0 %v550, %s579
    %v581 = vpop.permute.xlu0 %580
    %s583 = sor.u32 256, 64
    %584 = vbcast.lane.b32.xlu0 %v550, %s583
    %v585 = vpop.permute.xlu0 %584
    %s587 = sor.u32 256, 72
    %588 = vbcast.lane.b32.xlu0 %v550, %s587
    %v589 = vpop.permute.xlu0 %588
    %s591 = sor.u32 256, 80
    %592 = vbcast.lane.b32.xlu0 %v550, %s591
    %v593 = vpop.permute.xlu0 %592
    %s595 = sor.u32 256, 88
    %596 = vbcast.lane.b32.xlu0 %v550, %s595
    %v597 = vpop.permute.xlu0 %596
    %s599 = sor.u32 256, 96
    %600 = vbcast.lane.b32.xlu0 %v550, %s599
    %v601 = vpop.permute.xlu0 %600
    %s603 = sor.u32 256, 104
    %604 = vbcast.lane.b32.xlu0 %v550, %s603
    %v605 = vpop.permute.xlu0 %604
    %s607 = sor.u32 256, 112
    %608 = vbcast.lane.b32.xlu0 %v550, %s607
    %v609 = vpop.permute.xlu0 %608
    %s611 = sor.u32 256, 120
    %612 = vbcast.lane.b32.xlu0 %v550, %s611
    %v613 = vpop.permute.xlu0 %612
    %v616 = vunpack.c.l.s4 1966171168
    %v617 = vunpack.c.0.s8 %v616
    %v618 = vlaneseq
    %v619 = vshrl.u32 %v618, 7
    %v620 = vsub.s32 %v617, %v619
    %v621 = vrot.slane %v16, %v620
    %v622 = vcombine.high %v621, %v621
    %v624 = vunpack.c.l.s4 1966171168
    %v625 = vunpack.c.0.s8 %v624
    %v626 = vlaneseq
    %v627 = vshrl.u32 %v626, 7
    %v628 = vsub.s32 %v625, %v627
    %v629 = vrot.slane %v621, %v628
    %v631 = vunpack.c.l.s4 1966171168
    %v632 = vunpack.c.0.s8 %v631
    %v633 = vlaneseq
    %v634 = vshrl.u32 %v633, 7
    %v635 = vsub.s32 %v632, %v634
    %v636 = vrot.slane %v622, %v635
    %v637 = vlaneseq
    %v638 = vshrl.u32 %v637, 7
    %v639 = vsub.s32 0, %v638
    %v640 = vrot.slane %v629, %v639
    %v641 = vlaneseq
    %v642 = vshrl.u32 %v641, 7
    %v643 = vsub.s32 0, %v642
    %v644 = vrot.slane %v636, %v643
    %v647 = vmul.f32 %v486, %v640
    %v648 = vmul.f32 %v490, %v640
    %v649 = vmul.f32 %v494, %v640
    %v650 = vmul.f32 %v498, %v640
    %v651 = vmul.f32 %v502, %v640
    %v652 = vmul.f32 %v506, %v640
    %v653 = vmul.f32 %v510, %v640
    %v654 = vmul.f32 %v514, %v640
    %v655 = vmul.f32 %v518, %v640
    %v656 = vmul.f32 %v522, %v640
    %v657 = vmul.f32 %v526, %v640
    %v658 = vmul.f32 %v530, %v640
    %v659 = vmul.f32 %v534, %v640
    %v660 = vmul.f32 %v538, %v640
    %v661 = vmul.f32 %v542, %v640
    %v662 = vmul.f32 %v546, %v640
    %v663 = vmul.f32 %v553, %v644
    %v664 = vmul.f32 %v557, %v644
    %v665 = vmul.f32 %v561, %v644
    %v666 = vmul.f32 %v565, %v644
    %v667 = vmul.f32 %v569, %v644
    %v668 = vmul.f32 %v573, %v644
    %v669 = vmul.f32 %v577, %v644
    %v670 = vmul.f32 %v581, %v644
    %v671 = vmul.f32 %v585, %v644
    %v672 = vmul.f32 %v589, %v644
    %v673 = vmul.f32 %v593, %v644
    %v674 = vmul.f32 %v597, %v644
    %v675 = vmul.f32 %v601, %v644
    %v676 = vmul.f32 %v605, %v644
    %v677 = vmul.f32 %v609, %v644
    %v678 = vmul.f32 %v613, %v644
    %v679 = vadd.f32 %v448, %v647
    %v680 = vadd.f32 %v449, %v648
    %v681 = vadd.f32 %v450, %v649
    %v682 = vadd.f32 %v451, %v650
    %v683 = vadd.f32 %v452, %v651
    %v684 = vadd.f32 %v453, %v652
    %v685 = vadd.f32 %v454, %v653
    %v686 = vadd.f32 %v455, %v654
    %v687 = vadd.f32 %v456, %v655
    %v688 = vadd.f32 %v457, %v656
    %v689 = vadd.f32 %v458, %v657
    %v690 = vadd.f32 %v459, %v658
    %v691 = vadd.f32 %v460, %v659
    %v692 = vadd.f32 %v461, %v660
    %v693 = vadd.f32 %v462, %v661
    %v694 = vadd.f32 %v463, %v662
    %v695 = vadd.f32 %v464, %v663
    %v696 = vadd.f32 %v465, %v664
    %v697 = vadd.f32 %v466, %v665
    %v698 = vadd.f32 %v467, %v666
    %v699 = vadd.f32 %v468, %v667
    %v700 = vadd.f32 %v469, %v668
    %v701 = vadd.f32 %v470, %v669
    %v702 = vadd.f32 %v471, %v670
    %v703 = vadd.f32 %v472, %v671
    %v704 = vadd.f32 %v473, %v672
    %v705 = vadd.f32 %v474, %v673
    %v706 = vadd.f32 %v475, %v674
    %v707 = vadd.f32 %v476, %v675
    %v708 = vadd.f32 %v477, %v676
    %v709 = vadd.f32 %v478, %v677
    %v710 = vadd.f32 %v479, %v678
    %v711 = vmul.f32 %v679, 2.0
    %v712 = vmul.f32 %v680, 2.0
    %v713 = vmul.f32 %v681, 2.0
    %v714 = vmul.f32 %v682, 2.0
    %v715 = vmul.f32 %v683, 2.0
    %v716 = vmul.f32 %v684, 2.0
    %v717 = vmul.f32 %v685, 2.0
    %v718 = vmul.f32 %v686, 2.0
    %v719 = vmul.f32 %v687, 2.0
    %v720 = vmul.f32 %v688, 2.0
    %v721 = vmul.f32 %v689, 2.0
    %v722 = vmul.f32 %v690, 2.0
    %v723 = vmul.f32 %v691, 2.0
    %v724 = vmul.f32 %v692, 2.0
    %v725 = vmul.f32 %v693, 2.0
    %v726 = vmul.f32 %v694, 2.0
    %v727 = vmul.f32 %v695, 2.0
    %v728 = vmul.f32 %v696, 2.0
    %v729 = vmul.f32 %v697, 2.0
    %v730 = vmul.f32 %v698, 2.0
    %v731 = vmul.f32 %v699, 2.0
    %v732 = vmul.f32 %v700, 2.0
    %v733 = vmul.f32 %v701, 2.0
    %v734 = vmul.f32 %v702, 2.0
    %v735 = vmul.f32 %v703, 2.0
    %v736 = vmul.f32 %v704, 2.0
    %v737 = vmul.f32 %v705, 2.0
    %v738 = vmul.f32 %v706, 2.0
    %v739 = vmul.f32 %v707, 2.0
    %v740 = vmul.f32 %v708, 2.0
    %v741 = vmul.f32 %v709, 2.0
    %v742 = vmul.f32 %v710, 2.0
    %v743 = vlaneseq
    %v744 = vshrl.u32 %v743, 7
    %v745 = vsub.s32 0, %v744
    %v746 = vrot.slane %v42, %v745
    %v747 = vlaneseq
    %v748 = vshrl.u32 %v747, 7
    %v749 = vsub.s32 0, %v748
    %v750 = vrot.slane %v49, %v749
    %v753 = vsub.f32 %v746, %v711
    %v754 = vsub.f32 %v746, %v712
    %v755 = vsub.f32 %v746, %v713
    %v756 = vsub.f32 %v746, %v714
    %v757 = vsub.f32 %v746, %v715
    %v758 = vsub.f32 %v746, %v716
    %v759 = vsub.f32 %v746, %v717
    %v760 = vsub.f32 %v746, %v718
    %v761 = vsub.f32 %v746, %v719
    %v762 = vsub.f32 %v746, %v720
    %v763 = vsub.f32 %v746, %v721
    %v764 = vsub.f32 %v746, %v722
    %v765 = vsub.f32 %v746, %v723
    %v766 = vsub.f32 %v746, %v724
    %v767 = vsub.f32 %v746, %v725
    %v768 = vsub.f32 %v746, %v726
    %v769 = vsub.f32 %v750, %v727
    %v770 = vsub.f32 %v750, %v728
    %v771 = vsub.f32 %v750, %v729
    %v772 = vsub.f32 %v750, %v730
    %v773 = vsub.f32 %v750, %v731
    %v774 = vsub.f32 %v750, %v732
    %v775 = vsub.f32 %v750, %v733
    %v776 = vsub.f32 %v750, %v734
    %v777 = vsub.f32 %v750, %v735
    %v778 = vsub.f32 %v750, %v736
    %v779 = vsub.f32 %v750, %v737
    %v780 = vsub.f32 %v750, %v738
    %v781 = vsub.f32 %v750, %v739
    %v782 = vsub.f32 %v750, %v740
    %v783 = vsub.f32 %v750, %v741
    %v784 = vsub.f32 %v750, %v742
    %vm785 = vcmask 130048
    %v786 = vsel %vm785, %v753, inf
    %787 = vmin.xlane.f32.xlu0 %v786
    %v788 = vpop.xlane.xlu0 %787
    %v789 = vsel %vm785, %v754, inf
    %790 = vmin.xlane.f32.xlu0 %v789
    %v791 = vpop.xlane.xlu0 %790
    %v792 = vsel %vm785, %v755, inf
    %793 = vmin.xlane.f32.xlu0 %v792
    %v794 = vpop.xlane.xlu0 %793
    %v795 = vsel %vm785, %v756, inf
    %796 = vmin.xlane.f32.xlu0 %v795
    %v797 = vpop.xlane.xlu0 %796
    %v798 = vsel %vm785, %v757, inf
    %799 = vmin.xlane.f32.xlu0 %v798
    %v800 = vpop.xlane.xlu0 %799
    %v801 = vsel %vm785, %v758, inf
    %802 = vmin.xlane.f32.xlu0 %v801
    %v803 = vpop.xlane.xlu0 %802
    %v804 = vsel %vm785, %v759, inf
    %805 = vmin.xlane.f32.xlu0 %v804
    %v806 = vpop.xlane.xlu0 %805
    %v807 = vsel %vm785, %v760, inf
    %808 = vmin.xlane.f32.xlu0 %v807
    %v809 = vpop.xlane.xlu0 %808
    %v810 = vsel %vm785, %v761, inf
    %811 = vmin.xlane.f32.xlu0 %v810
    %v812 = vpop.xlane.xlu0 %811
    %v813 = vsel %vm785, %v762, inf
    %814 = vmin.xlane.f32.xlu0 %v813
    %v815 = vpop.xlane.xlu0 %814
    %v816 = vsel %vm785, %v763, inf
    %817 = vmin.xlane.f32.xlu0 %v816
    %v818 = vpop.xlane.xlu0 %817
    %v819 = vsel %vm785, %v764, inf
    %820 = vmin.xlane.f32.xlu0 %v819
    %v821 = vpop.xlane.xlu0 %820
    %v822 = vsel %vm785, %v765, inf
    %823 = vmin.xlane.f32.xlu0 %v822
    %v824 = vpop.xlane.xlu0 %823
    %v825 = vsel %vm785, %v766, inf
    %826 = vmin.xlane.f32.xlu0 %v825
    %v827 = vpop.xlane.xlu0 %826
    %v828 = vsel %vm785, %v767, inf
    %829 = vmin.xlane.f32.xlu0 %v828
    %v830 = vpop.xlane.xlu0 %829
    %v831 = vsel %vm785, %v768, inf
    %832 = vmin.xlane.f32.xlu0 %v831
    %v833 = vpop.xlane.xlu0 %832
    %v834 = vsel %vm785, %v769, inf
    %835 = vmin.xlane.f32.xlu0 %v834
    %v836 = vpop.xlane.xlu0 %835
    %v837 = vsel %vm785, %v770, inf
    %838 = vmin.xlane.f32.xlu0 %v837
    %v839 = vpop.xlane.xlu0 %838
    %v840 = vsel %vm785, %v771, inf
    %841 = vmin.xlane.f32.xlu0 %v840
    %v842 = vpop.xlane.xlu0 %841
    %v843 = vsel %vm785, %v772, inf
    %844 = vmin.xlane.f32.xlu0 %v843
    %v845 = vpop.xlane.xlu0 %844
    %v846 = vsel %vm785, %v773, inf
    %847 = vmin.xlane.f32.xlu0 %v846
    %v848 = vpop.xlane.xlu0 %847
    %v849 = vsel %vm785, %v774, inf
    %850 = vmin.xlane.f32.xlu0 %v849
    %v851 = vpop.xlane.xlu0 %850
    %v852 = vsel %vm785, %v775, inf
    %853 = vmin.xlane.f32.xlu0 %v852
    %v854 = vpop.xlane.xlu0 %853
    %v855 = vsel %vm785, %v776, inf
    %856 = vmin.xlane.f32.xlu0 %v855
    %v857 = vpop.xlane.xlu0 %856
    %v858 = vsel %vm785, %v777, inf
    %859 = vmin.xlane.f32.xlu0 %v858
    %v860 = vpop.xlane.xlu0 %859
    %v861 = vsel %vm785, %v778, inf
    %862 = vmin.xlane.f32.xlu0 %v861
    %v863 = vpop.xlane.xlu0 %862
    %v864 = vsel %vm785, %v779, inf
    %865 = vmin.xlane.f32.xlu0 %v864
    %v866 = vpop.xlane.xlu0 %865
    %v867 = vsel %vm785, %v780, inf
    %868 = vmin.xlane.f32.xlu0 %v867
    %v869 = vpop.xlane.xlu0 %868
    %v870 = vsel %vm785, %v781, inf
    %871 = vmin.xlane.f32.xlu0 %v870
    %v872 = vpop.xlane.xlu0 %871
    %v873 = vsel %vm785, %v782, inf
    %874 = vmin.xlane.f32.xlu0 %v873
    %v875 = vpop.xlane.xlu0 %874
    %v876 = vsel %vm785, %v783, inf
    %877 = vmin.xlane.f32.xlu0 %v876
    %v878 = vpop.xlane.xlu0 %877
    %v879 = vsel %vm785, %v784, inf
    %880 = vmin.xlane.f32.xlu0 %v879
    %v881 = vpop.xlane.xlu0 %880
    %vm882 = vcmp.gt.f32.partialorder %v753, -inf
    %vm883 = vcmp.gt.f32.partialorder %v754, -inf
    %vm884 = vcmp.gt.f32.partialorder %v755, -inf
    %vm885 = vcmp.gt.f32.partialorder %v756, -inf
    %vm886 = vcmp.gt.f32.partialorder %v757, -inf
    %vm887 = vcmp.gt.f32.partialorder %v758, -inf
    %vm888 = vcmp.gt.f32.partialorder %v759, -inf
    %vm889 = vcmp.gt.f32.partialorder %v760, -inf
    %vm890 = vcmp.gt.f32.partialorder %v761, -inf
    %vm891 = vcmp.gt.f32.partialorder %v762, -inf
    %vm892 = vcmp.gt.f32.partialorder %v763, -inf
    %vm893 = vcmp.gt.f32.partialorder %v764, -inf
    %vm894 = vcmp.gt.f32.partialorder %v765, -inf
    %vm895 = vcmp.gt.f32.partialorder %v766, -inf
    %vm896 = vcmp.gt.f32.partialorder %v767, -inf
    %vm897 = vcmp.gt.f32.partialorder %v768, -inf
    %vm898 = vcmp.gt.f32.partialorder %v769, -inf
    %vm899 = vcmp.gt.f32.partialorder %v770, -inf
    %vm900 = vcmp.gt.f32.partialorder %v771, -inf
    %vm901 = vcmp.gt.f32.partialorder %v772, -inf
    %vm902 = vcmp.gt.f32.partialorder %v773, -inf
    %vm903 = vcmp.gt.f32.partialorder %v774, -inf
    %vm904 = vcmp.gt.f32.partialorder %v775, -inf
    %vm905 = vcmp.gt.f32.partialorder %v776, -inf
    %vm906 = vcmp.gt.f32.partialorder %v777, -inf
    %vm907 = vcmp.gt.f32.partialorder %v778, -inf
    %vm908 = vcmp.gt.f32.partialorder %v779, -inf
    %vm909 = vcmp.gt.f32.partialorder %v780, -inf
    %vm910 = vcmp.gt.f32.partialorder %v781, -inf
    %vm911 = vcmp.gt.f32.partialorder %v782, -inf
    %vm912 = vcmp.gt.f32.partialorder %v783, -inf
    %vm913 = vcmp.gt.f32.partialorder %v784, -inf
    %v914 = vsel %vm882, %v753, inf
    %v915 = vsel %vm883, %v754, inf
    %v916 = vsel %vm884, %v755, inf
    %v917 = vsel %vm885, %v756, inf
    %v918 = vsel %vm886, %v757, inf
    %v919 = vsel %vm887, %v758, inf
    %v920 = vsel %vm888, %v759, inf
    %v921 = vsel %vm889, %v760, inf
    %v922 = vsel %vm890, %v761, inf
    %v923 = vsel %vm891, %v762, inf
    %v924 = vsel %vm892, %v763, inf
    %v925 = vsel %vm893, %v764, inf
    %v926 = vsel %vm894, %v765, inf
    %v927 = vsel %vm895, %v766, inf
    %v928 = vsel %vm896, %v767, inf
    %v929 = vsel %vm897, %v768, inf
    %v930 = vsel %vm898, %v769, inf
    %v931 = vsel %vm899, %v770, inf
    %v932 = vsel %vm900, %v771, inf
    %v933 = vsel %vm901, %v772, inf
    %v934 = vsel %vm902, %v773, inf
    %v935 = vsel %vm903, %v774, inf
    %v936 = vsel %vm904, %v775, inf
    %v937 = vsel %vm905, %v776, inf
    %v938 = vsel %vm906, %v777, inf
    %v939 = vsel %vm907, %v778, inf
    %v940 = vsel %vm908, %v779, inf
    %v941 = vsel %vm909, %v780, inf
    %v942 = vsel %vm910, %v781, inf
    %v943 = vsel %vm911, %v782, inf
    %v944 = vsel %vm912, %v783, inf
    %v945 = vsel %vm913, %v784, inf
    %v946 = vsel %vm785, %v914, inf
    %947 = vmin.xlane.f32.xlu0 %v946
    %v948 = vpop.xlane.xlu0 %947
    %v949 = vsel %vm785, %v915, inf
    %950 = vmin.xlane.f32.xlu0 %v949
    %v951 = vpop.xlane.xlu0 %950
    %v952 = vsel %vm785, %v916, inf
    %953 = vmin.xlane.f32.xlu0 %v952
    %v954 = vpop.xlane.xlu0 %953
    %v955 = vsel %vm785, %v917, inf
    %956 = vmin.xlane.f32.xlu0 %v955
    %v957 = vpop.xlane.xlu0 %956
    %v958 = vsel %vm785, %v918, inf
    %959 = vmin.xlane.f32.xlu0 %v958
    %v960 = vpop.xlane.xlu0 %959
    %v961 = vsel %vm785, %v919, inf
    %962 = vmin.xlane.f32.xlu0 %v961
    %v963 = vpop.xlane.xlu0 %962
    %v964 = vsel %vm785, %v920, inf
    %965 = vmin.xlane.f32.xlu0 %v964
    %v966 = vpop.xlane.xlu0 %965
    %v967 = vsel %vm785, %v921, inf
    %968 = vmin.xlane.f32.xlu0 %v967
    %v969 = vpop.xlane.xlu0 %968
    %v970 = vsel %vm785, %v922, inf
    %971 = vmin.xlane.f32.xlu0 %v970
    %v972 = vpop.xlane.xlu0 %971
    %v973 = vsel %vm785, %v923, inf
    %974 = vmin.xlane.f32.xlu0 %v973
    %v975 = vpop.xlane.xlu0 %974
    %v976 = vsel %vm785, %v924, inf
    %977 = vmin.xlane.f32.xlu0 %v976
    %v978 = vpop.xlane.xlu0 %977
    %v979 = vsel %vm785, %v925, inf
    %980 = vmin.xlane.f32.xlu0 %v979
    %v981 = vpop.xlane.xlu0 %980
    %v982 = vsel %vm785, %v926, inf
    %983 = vmin.xlane.f32.xlu0 %v982
    %v984 = vpop.xlane.xlu0 %983
    %v985 = vsel %vm785, %v927, inf
    %986 = vmin.xlane.f32.xlu0 %v985
    %v987 = vpop.xlane.xlu0 %986
    %v988 = vsel %vm785, %v928, inf
    %989 = vmin.xlane.f32.xlu0 %v988
    %v990 = vpop.xlane.xlu0 %989
    %v991 = vsel %vm785, %v929, inf
    %992 = vmin.xlane.f32.xlu0 %v991
    %v993 = vpop.xlane.xlu0 %992
    %v994 = vsel %vm785, %v930, inf
    %995 = vmin.xlane.f32.xlu0 %v994
    %v996 = vpop.xlane.xlu0 %995
    %v997 = vsel %vm785, %v931, inf
    %998 = vmin.xlane.f32.xlu0 %v997
    %v999 = vpop.xlane.xlu0 %998
    %v1000 = vsel %vm785, %v932, inf
    %1001 = vmin.xlane.f32.xlu0 %v1000
    %v1002 = vpop.xlane.xlu0 %1001
    %v1003 = vsel %vm785, %v933, inf
    %1004 = vmin.xlane.f32.xlu0 %v1003
    %v1005 = vpop.xlane.xlu0 %1004
    %v1006 = vsel %vm785, %v934, inf
    %1007 = vmin.xlane.f32.xlu0 %v1006
    %v1008 = vpop.xlane.xlu0 %1007
    %v1009 = vsel %vm785, %v935, inf
    %1010 = vmin.xlane.f32.xlu0 %v1009
    %v1011 = vpop.xlane.xlu0 %1010
    %v1012 = vsel %vm785, %v936, inf
    %1013 = vmin.xlane.f32.xlu0 %v1012
    %v1014 = vpop.xlane.xlu0 %1013
    %v1015 = vsel %vm785, %v937, inf
    %1016 = vmin.xlane.f32.xlu0 %v1015
    %v1017 = vpop.xlane.xlu0 %1016
    %v1018 = vsel %vm785, %v938, inf
    %1019 = vmin.xlane.f32.xlu0 %v1018
    %v1020 = vpop.xlane.xlu0 %1019
    %v1021 = vsel %vm785, %v939, inf
    %1022 = vmin.xlane.f32.xlu0 %v1021
    %v1023 = vpop.xlane.xlu0 %1022
    %v1024 = vsel %vm785, %v940, inf
    %1025 = vmin.xlane.f32.xlu0 %v1024
    %v1026 = vpop.xlane.xlu0 %1025
    %v1027 = vsel %vm785, %v941, inf
    %1028 = vmin.xlane.f32.xlu0 %v1027
    %v1029 = vpop.xlane.xlu0 %1028
    %v1030 = vsel %vm785, %v942, inf
    %1031 = vmin.xlane.f32.xlu0 %v1030
    %v1032 = vpop.xlane.xlu0 %1031
    %v1033 = vsel %vm785, %v943, inf
    %1034 = vmin.xlane.f32.xlu0 %v1033
    %v1035 = vpop.xlane.xlu0 %1034
    %v1036 = vsel %vm785, %v944, inf
    %1037 = vmin.xlane.f32.xlu0 %v1036
    %v1038 = vpop.xlane.xlu0 %1037
    %v1039 = vsel %vm785, %v945, inf
    %1040 = vmin.xlane.f32.xlu0 %v1039
    %v1041 = vpop.xlane.xlu0 %1040
    %v1042 = vsub.f32 %v788, %v948
    %v1043 = vsub.f32 %v791, %v951
    %v1044 = vsub.f32 %v794, %v954
    %v1045 = vsub.f32 %v797, %v957
    %v1046 = vsub.f32 %v800, %v960
    %v1047 = vsub.f32 %v803, %v963
    %v1048 = vsub.f32 %v806, %v966
    %v1049 = vsub.f32 %v809, %v969
    %v1050 = vsub.f32 %v812, %v972
    %v1051 = vsub.f32 %v815, %v975
    %v1052 = vsub.f32 %v818, %v978
    %v1053 = vsub.f32 %v821, %v981
    %v1054 = vsub.f32 %v824, %v984
    %v1055 = vsub.f32 %v827, %v987
    %v1056 = vsub.f32 %v830, %v990
    %v1057 = vsub.f32 %v833, %v993
    %v1058 = vsub.f32 %v836, %v996
    %v1059 = vsub.f32 %v839, %v999
    %v1060 = vsub.f32 %v842, %v1002
    %v1061 = vsub.f32 %v845, %v1005
    %v1062 = vsub.f32 %v848, %v1008
    %v1063 = vsub.f32 %v851, %v1011
    %v1064 = vsub.f32 %v854, %v1014
    %v1065 = vsub.f32 %v857, %v1017
    %v1066 = vsub.f32 %v860, %v1020
    %v1067 = vsub.f32 %v863, %v1023
    %v1068 = vsub.f32 %v866, %v1026
    %v1069 = vsub.f32 %v869, %v1029
    %v1070 = vsub.f32 %v872, %v1032
    %v1071 = vsub.f32 %v875, %v1035
    %v1072 = vsub.f32 %v878, %v1038
    %v1073 = vsub.f32 %v881, %v1041
    %v1074 = vmul.f32 %v1042, 1.442695
    %v1075 = vpow.pop %v1074
    %v1076 = vmul.f32 %v1043, 1.442695
    %v1077 = vpow.pop %v1076
    %v1078 = vmul.f32 %v1044, 1.442695
    %v1079 = vpow.pop %v1078
    %v1080 = vmul.f32 %v1045, 1.442695
    %v1081 = vpow.pop %v1080
    %v1082 = vmul.f32 %v1046, 1.442695
    %v1083 = vpow.pop %v1082
    %v1084 = vmul.f32 %v1047, 1.442695
    %v1085 = vpow.pop %v1084
    %v1086 = vmul.f32 %v1048, 1.442695
    %v1087 = vpow.pop %v1086
    %v1088 = vmul.f32 %v1049, 1.442695
    %v1089 = vpow.pop %v1088
    %v1090 = vmul.f32 %v1050, 1.442695
    %v1091 = vpow.pop %v1090
    %v1092 = vmul.f32 %v1051, 1.442695
    %v1093 = vpow.pop %v1092
    %v1094 = vmul.f32 %v1052, 1.442695
    %v1095 = vpow.pop %v1094
    %v1096 = vmul.f32 %v1053, 1.442695
    %v1097 = vpow.pop %v1096
    %v1098 = vmul.f32 %v1054, 1.442695
    %v1099 = vpow.pop %v1098
    %v1100 = vmul.f32 %v1055, 1.442695
    %v1101 = vpow.pop %v1100
    %v1102 = vmul.f32 %v1056, 1.442695
    %v1103 = vpow.pop %v1102
    %v1104 = vmul.f32 %v1057, 1.442695
    %v1105 = vpow.pop %v1104
    %v1106 = vmul.f32 %v1058, 1.442695
    %v1107 = vpow.pop %v1106
    %v1108 = vmul.f32 %v1059, 1.442695
    %v1109 = vpow.pop %v1108
    %v1110 = vmul.f32 %v1060, 1.442695
    %v1111 = vpow.pop %v1110
    %v1112 = vmul.f32 %v1061, 1.442695
    %v1113 = vpow.pop %v1112
    %v1114 = vmul.f32 %v1062, 1.442695
    %v1115 = vpow.pop %v1114
    %v1116 = vmul.f32 %v1063, 1.442695
    %v1117 = vpow.pop %v1116
    %v1118 = vmul.f32 %v1064, 1.442695
    %v1119 = vpow.pop %v1118
    %v1120 = vmul.f32 %v1065, 1.442695
    %v1121 = vpow.pop %v1120
    %v1122 = vmul.f32 %v1066, 1.442695
    %v1123 = vpow.pop %v1122
    %v1124 = vmul.f32 %v1067, 1.442695
    %v1125 = vpow.pop %v1124
    %v1126 = vmul.f32 %v1068, 1.442695
    %v1127 = vpow.pop %v1126
    %v1128 = vmul.f32 %v1069, 1.442695
    %v1129 = vpow.pop %v1128
    %v1130 = vmul.f32 %v1070, 1.442695
    %v1131 = vpow.pop %v1130
    %v1132 = vmul.f32 %v1071, 1.442695
    %v1133 = vpow.pop %v1132
    %v1134 = vmul.f32 %v1072, 1.442695
    %v1135 = vpow.pop %v1134
    %v1136 = vmul.f32 %v1073, 1.442695
    %v1137 = vpow.pop %v1136
    %vm1138 = vcmp.eq.f32.partialorder %v753, %v948
    %vm1139 = vcmp.eq.f32.partialorder %v754, %v951
    %vm1140 = vcmp.eq.f32.partialorder %v755, %v954
    %vm1141 = vcmp.eq.f32.partialorder %v756, %v957
    %vm1142 = vcmp.eq.f32.partialorder %v757, %v960
    %vm1143 = vcmp.eq.f32.partialorder %v758, %v963
    %vm1144 = vcmp.eq.f32.partialorder %v759, %v966
    %vm1145 = vcmp.eq.f32.partialorder %v760, %v969
    %vm1146 = vcmp.eq.f32.partialorder %v761, %v972
    %vm1147 = vcmp.eq.f32.partialorder %v762, %v975
    %vm1148 = vcmp.eq.f32.partialorder %v763, %v978
    %vm1149 = vcmp.eq.f32.partialorder %v764, %v981
    %vm1150 = vcmp.eq.f32.partialorder %v765, %v984
    %vm1151 = vcmp.eq.f32.partialorder %v766, %v987
    %vm1152 = vcmp.eq.f32.partialorder %v767, %v990
    %vm1153 = vcmp.eq.f32.partialorder %v768, %v993
    %vm1154 = vcmp.eq.f32.partialorder %v769, %v996
    %vm1155 = vcmp.eq.f32.partialorder %v770, %v999
    %vm1156 = vcmp.eq.f32.partialorder %v771, %v1002
    %vm1157 = vcmp.eq.f32.partialorder %v772, %v1005
    %vm1158 = vcmp.eq.f32.partialorder %v773, %v1008
    %vm1159 = vcmp.eq.f32.partialorder %v774, %v1011
    %vm1160 = vcmp.eq.f32.partialorder %v775, %v1014
    %vm1161 = vcmp.eq.f32.partialorder %v776, %v1017
    %vm1162 = vcmp.eq.f32.partialorder %v777, %v1020
    %vm1163 = vcmp.eq.f32.partialorder %v778, %v1023
    %vm1164 = vcmp.eq.f32.partialorder %v779, %v1026
    %vm1165 = vcmp.eq.f32.partialorder %v780, %v1029
    %vm1166 = vcmp.eq.f32.partialorder %v781, %v1032
    %vm1167 = vcmp.eq.f32.partialorder %v782, %v1035
    %vm1168 = vcmp.eq.f32.partialorder %v783, %v1038
    %vm1169 = vcmp.eq.f32.partialorder %v784, %v1041
    %v1170 = vsel %vm1138, %v210, 0.0
    %v1171 = vsel %vm1139, %v210, 0.0
    %v1172 = vsel %vm1140, %v210, 0.0
    %v1173 = vsel %vm1141, %v210, 0.0
    %v1174 = vsel %vm1142, %v210, 0.0
    %v1175 = vsel %vm1143, %v210, 0.0
    %v1176 = vsel %vm1144, %v210, 0.0
    %v1177 = vsel %vm1145, %v210, 0.0
    %v1178 = vsel %vm1146, %v210, 0.0
    %v1179 = vsel %vm1147, %v210, 0.0
    %v1180 = vsel %vm1148, %v210, 0.0
    %v1181 = vsel %vm1149, %v210, 0.0
    %v1182 = vsel %vm1150, %v210, 0.0
    %v1183 = vsel %vm1151, %v210, 0.0
    %v1184 = vsel %vm1152, %v210, 0.0
    %v1185 = vsel %vm1153, %v210, 0.0
    %v1186 = vsel %vm1154, %v214, 0.0
    %v1187 = vsel %vm1155, %v214, 0.0
    %v1188 = vsel %vm1156, %v214, 0.0
    %v1189 = vsel %vm1157, %v214, 0.0
    %v1190 = vsel %vm1158, %v214, 0.0
    %v1191 = vsel %vm1159, %v214, 0.0
    %v1192 = vsel %vm1160, %v214, 0.0
    %v1193 = vsel %vm1161, %v214, 0.0
    %v1194 = vsel %vm1162, %v214, 0.0
    %v1195 = vsel %vm1163, %v214, 0.0
    %v1196 = vsel %vm1164, %v214, 0.0
    %v1197 = vsel %vm1165, %v214, 0.0
    %v1198 = vsel %vm1166, %v214, 0.0
    %v1199 = vsel %vm1167, %v214, 0.0
    %v1200 = vsel %vm1168, %v214, 0.0
    %v1201 = vsel %vm1169, %v214, 0.0
    %v1202 = vsel %vm785, %v1170, 0.0
    %1203 = vadd.xlane.f32.xlu0 %v1202
    %v1204 = vpop.xlane.xlu0 %1203
    %v1205 = vsel %vm785, %v1171, 0.0
    %1206 = vadd.xlane.f32.xlu0 %v1205
    %v1207 = vpop.xlane.xlu0 %1206
    %v1208 = vsel %vm785, %v1172, 0.0
    %1209 = vadd.xlane.f32.xlu0 %v1208
    %v1210 = vpop.xlane.xlu0 %1209
    %v1211 = vsel %vm785, %v1173, 0.0
    %1212 = vadd.xlane.f32.xlu0 %v1211
    %v1213 = vpop.xlane.xlu0 %1212
    %v1214 = vsel %vm785, %v1174, 0.0
    %1215 = vadd.xlane.f32.xlu0 %v1214
    %v1216 = vpop.xlane.xlu0 %1215
    %v1217 = vsel %vm785, %v1175, 0.0
    %1218 = vadd.xlane.f32.xlu0 %v1217
    %v1219 = vpop.xlane.xlu0 %1218
    %v1220 = vsel %vm785, %v1176, 0.0
    %1221 = vadd.xlane.f32.xlu0 %v1220
    %v1222 = vpop.xlane.xlu0 %1221
    %v1223 = vsel %vm785, %v1177, 0.0
    %1224 = vadd.xlane.f32.xlu0 %v1223
    %v1225 = vpop.xlane.xlu0 %1224
    %v1226 = vsel %vm785, %v1178, 0.0
    %1227 = vadd.xlane.f32.xlu0 %v1226
    %v1228 = vpop.xlane.xlu0 %1227
    %v1229 = vsel %vm785, %v1179, 0.0
    %1230 = vadd.xlane.f32.xlu0 %v1229
    %v1231 = vpop.xlane.xlu0 %1230
    %v1232 = vsel %vm785, %v1180, 0.0
    %1233 = vadd.xlane.f32.xlu0 %v1232
    %v1234 = vpop.xlane.xlu0 %1233
    %v1235 = vsel %vm785, %v1181, 0.0
    %1236 = vadd.xlane.f32.xlu0 %v1235
    %v1237 = vpop.xlane.xlu0 %1236
    %v1238 = vsel %vm785, %v1182, 0.0
    %1239 = vadd.xlane.f32.xlu0 %v1238
    %v1240 = vpop.xlane.xlu0 %1239
    %v1241 = vsel %vm785, %v1183, 0.0
    %1242 = vadd.xlane.f32.xlu0 %v1241
    %v1243 = vpop.xlane.xlu0 %1242
    %v1244 = vsel %vm785, %v1184, 0.0
    %1245 = vadd.xlane.f32.xlu0 %v1244
    %v1246 = vpop.xlane.xlu0 %1245
    %v1247 = vsel %vm785, %v1185, 0.0
    %1248 = vadd.xlane.f32.xlu0 %v1247
    %v1249 = vpop.xlane.xlu0 %1248
    %v1250 = vsel %vm785, %v1186, 0.0
    %1251 = vadd.xlane.f32.xlu0 %v1250
    %v1252 = vpop.xlane.xlu0 %1251
    %v1253 = vsel %vm785, %v1187, 0.0
    %1254 = vadd.xlane.f32.xlu0 %v1253
    %v1255 = vpop.xlane.xlu0 %1254
    %v1256 = vsel %vm785, %v1188, 0.0
    %1257 = vadd.xlane.f32.xlu0 %v1256
    %v1258 = vpop.xlane.xlu0 %1257
    %v1259 = vsel %vm785, %v1189, 0.0
    %1260 = vadd.xlane.f32.xlu0 %v1259
    %v1261 = vpop.xlane.xlu0 %1260
    %v1262 = vsel %vm785, %v1190, 0.0
    %1263 = vadd.xlane.f32.xlu0 %v1262
    %v1264 = vpop.xlane.xlu0 %1263
    %v1265 = vsel %vm785, %v1191, 0.0
    %1266 = vadd.xlane.f32.xlu0 %v1265
    %v1267 = vpop.xlane.xlu0 %1266
    %v1268 = vsel %vm785, %v1192, 0.0
    %1269 = vadd.xlane.f32.xlu0 %v1268
    %v1270 = vpop.xlane.xlu0 %1269
    %v1271 = vsel %vm785, %v1193, 0.0
    %1272 = vadd.xlane.f32.xlu0 %v1271
    %v1273 = vpop.xlane.xlu0 %1272
    %v1274 = vsel %vm785, %v1194, 0.0
    %1275 = vadd.xlane.f32.xlu0 %v1274
    %v1276 = vpop.xlane.xlu0 %1275
    %v1277 = vsel %vm785, %v1195, 0.0
    %1278 = vadd.xlane.f32.xlu0 %v1277
    %v1279 = vpop.xlane.xlu0 %1278
    %v1280 = vsel %vm785, %v1196, 0.0
    %1281 = vadd.xlane.f32.xlu0 %v1280
    %v1282 = vpop.xlane.xlu0 %1281
    %v1283 = vsel %vm785, %v1197, 0.0
    %1284 = vadd.xlane.f32.xlu0 %v1283
    %v1285 = vpop.xlane.xlu0 %1284
    %v1286 = vsel %vm785, %v1198, 0.0
    %1287 = vadd.xlane.f32.xlu0 %v1286
    %v1288 = vpop.xlane.xlu0 %1287
    %v1289 = vsel %vm785, %v1199, 0.0
    %1290 = vadd.xlane.f32.xlu0 %v1289
    %v1291 = vpop.xlane.xlu0 %1290
    %v1292 = vsel %vm785, %v1200, 0.0
    %1293 = vadd.xlane.f32.xlu0 %v1292
    %v1294 = vpop.xlane.xlu0 %1293
    %v1295 = vsel %vm785, %v1201, 0.0
    %1296 = vadd.xlane.f32.xlu0 %v1295
    %v1297 = vpop.xlane.xlu0 %1296
    %v1298 = vmul.f32 %v1075, %v1204
    %v1299 = vmul.f32 %v1077, %v1207
    %v1300 = vmul.f32 %v1079, %v1210
    %v1301 = vmul.f32 %v1081, %v1213
    %v1302 = vmul.f32 %v1083, %v1216
    %v1303 = vmul.f32 %v1085, %v1219
    %v1304 = vmul.f32 %v1087, %v1222
    %v1305 = vmul.f32 %v1089, %v1225
    %v1306 = vmul.f32 %v1091, %v1228
    %v1307 = vmul.f32 %v1093, %v1231
    %v1308 = vmul.f32 %v1095, %v1234
    %v1309 = vmul.f32 %v1097, %v1237
    %v1310 = vmul.f32 %v1099, %v1240
    %v1311 = vmul.f32 %v1101, %v1243
    %v1312 = vmul.f32 %v1103, %v1246
    %v1313 = vmul.f32 %v1105, %v1249
    %v1314 = vmul.f32 %v1107, %v1252
    %v1315 = vmul.f32 %v1109, %v1255
    %v1316 = vmul.f32 %v1111, %v1258
    %v1317 = vmul.f32 %v1113, %v1261
    %v1318 = vmul.f32 %v1115, %v1264
    %v1319 = vmul.f32 %v1117, %v1267
    %v1320 = vmul.f32 %v1119, %v1270
    %v1321 = vmul.f32 %v1121, %v1273
    %v1322 = vmul.f32 %v1123, %v1276
    %v1323 = vmul.f32 %v1125, %v1279
    %v1324 = vmul.f32 %v1127, %v1282
    %v1325 = vmul.f32 %v1129, %v1285
    %v1326 = vmul.f32 %v1131, %v1288
    %v1327 = vmul.f32 %v1133, %v1291
    %v1328 = vmul.f32 %v1135, %v1294
    %v1329 = vmul.f32 %v1137, %v1297
    %v1330 = vadd.f32 %v1298, 0.0
    %v1331 = vadd.f32 %v1299, 0.0
    %v1332 = vadd.f32 %v1300, 0.0
    %v1333 = vadd.f32 %v1301, 0.0
    %v1334 = vadd.f32 %v1302, 0.0
    %v1335 = vadd.f32 %v1303, 0.0
    %v1336 = vadd.f32 %v1304, 0.0
    %v1337 = vadd.f32 %v1305, 0.0
    %v1338 = vadd.f32 %v1306, 0.0
    %v1339 = vadd.f32 %v1307, 0.0
    %v1340 = vadd.f32 %v1308, 0.0
    %v1341 = vadd.f32 %v1309, 0.0
    %v1342 = vadd.f32 %v1310, 0.0
    %v1343 = vadd.f32 %v1311, 0.0
    %v1344 = vadd.f32 %v1312, 0.0
    %v1345 = vadd.f32 %v1313, 0.0
    %v1346 = vadd.f32 %v1314, 0.0
    %v1347 = vadd.f32 %v1315, 0.0
    %v1348 = vadd.f32 %v1316, 0.0
    %v1349 = vadd.f32 %v1317, 0.0
    %v1350 = vadd.f32 %v1318, 0.0
    %v1351 = vadd.f32 %v1319, 0.0
    %v1352 = vadd.f32 %v1320, 0.0
    %v1353 = vadd.f32 %v1321, 0.0
    %v1354 = vadd.f32 %v1322, 0.0
    %v1355 = vadd.f32 %v1323, 0.0
    %v1356 = vadd.f32 %v1324, 0.0
    %v1357 = vadd.f32 %v1325, 0.0
    %v1358 = vadd.f32 %v1326, 0.0
    %v1359 = vadd.f32 %v1327, 0.0
    %v1360 = vadd.f32 %v1328, 0.0
    %v1361 = vadd.f32 %v1329, 0.0
    %v1362 = vsel %vm1138, %v409, 0.0
    %v1363 = vsel %vm1139, %v409, 0.0
    %v1364 = vsel %vm1140, %v409, 0.0
    %v1365 = vsel %vm1141, %v409, 0.0
    %v1366 = vsel %vm1142, %v409, 0.0
    %v1367 = vsel %vm1143, %v409, 0.0
    %v1368 = vsel %vm1144, %v409, 0.0
    %v1369 = vsel %vm1145, %v409, 0.0
    %v1370 = vsel %vm1146, %v409, 0.0
    %v1371 = vsel %vm1147, %v409, 0.0
    %v1372 = vsel %vm1148, %v409, 0.0
    %v1373 = vsel %vm1149, %v409, 0.0
    %v1374 = vsel %vm1150, %v409, 0.0
    %v1375 = vsel %vm1151, %v409, 0.0
    %v1376 = vsel %vm1152, %v409, 0.0
    %v1377 = vsel %vm1153, %v409, 0.0
    %v1378 = vsel %vm1154, %v413, 0.0
    %v1379 = vsel %vm1155, %v413, 0.0
    %v1380 = vsel %vm1156, %v413, 0.0
    %v1381 = vsel %vm1157, %v413, 0.0
    %v1382 = vsel %vm1158, %v413, 0.0
    %v1383 = vsel %vm1159, %v413, 0.0
    %v1384 = vsel %vm1160, %v413, 0.0
    %v1385 = vsel %vm1161, %v413, 0.0
    %v1386 = vsel %vm1162, %v413, 0.0
    %v1387 = vsel %vm1163, %v413, 0.0
    %v1388 = vsel %vm1164, %v413, 0.0
    %v1389 = vsel %vm1165, %v413, 0.0
    %v1390 = vsel %vm1166, %v413, 0.0
    %v1391 = vsel %vm1167, %v413, 0.0
    %v1392 = vsel %vm1168, %v413, 0.0
    %v1393 = vsel %vm1169, %v413, 0.0
    %v1394 = vsel %vm785, %v1362, 0.0
    %1395 = vadd.xlane.f32.xlu0 %v1394
    %v1396 = vpop.xlane.xlu0 %1395
    %v1397 = vsel %vm785, %v1363, 0.0
    %1398 = vadd.xlane.f32.xlu0 %v1397
    %v1399 = vpop.xlane.xlu0 %1398
    %v1400 = vsel %vm785, %v1364, 0.0
    %1401 = vadd.xlane.f32.xlu0 %v1400
    %v1402 = vpop.xlane.xlu0 %1401
    %v1403 = vsel %vm785, %v1365, 0.0
    %1404 = vadd.xlane.f32.xlu0 %v1403
    %v1405 = vpop.xlane.xlu0 %1404
    %v1406 = vsel %vm785, %v1366, 0.0
    %1407 = vadd.xlane.f32.xlu0 %v1406
    %v1408 = vpop.xlane.xlu0 %1407
    %v1409 = vsel %vm785, %v1367, 0.0
    %1410 = vadd.xlane.f32.xlu0 %v1409
    %v1411 = vpop.xlane.xlu0 %1410
    %v1412 = vsel %vm785, %v1368, 0.0
    %1413 = vadd.xlane.f32.xlu0 %v1412
    %v1414 = vpop.xlane.xlu0 %1413
    %v1415 = vsel %vm785, %v1369, 0.0
    %1416 = vadd.xlane.f32.xlu0 %v1415
    %v1417 = vpop.xlane.xlu0 %1416
    %v1418 = vsel %vm785, %v1370, 0.0
    %1419 = vadd.xlane.f32.xlu0 %v1418
    %v1420 = vpop.xlane.xlu0 %1419
    %v1421 = vsel %vm785, %v1371, 0.0
    %1422 = vadd.xlane.f32.xlu0 %v1421
    %v1423 = vpop.xlane.xlu0 %1422
    %v1424 = vsel %vm785, %v1372, 0.0
    %1425 = vadd.xlane.f32.xlu0 %v1424
    %v1426 = vpop.xlane.xlu0 %1425
    %v1427 = vsel %vm785, %v1373, 0.0
    %1428 = vadd.xlane.f32.xlu0 %v1427
    %v1429 = vpop.xlane.xlu0 %1428
    %v1430 = vsel %vm785, %v1374, 0.0
    %1431 = vadd.xlane.f32.xlu0 %v1430
    %v1432 = vpop.xlane.xlu0 %1431
    %v1433 = vsel %vm785, %v1375, 0.0
    %1434 = vadd.xlane.f32.xlu0 %v1433
    %v1435 = vpop.xlane.xlu0 %1434
    %v1436 = vsel %vm785, %v1376, 0.0
    %1437 = vadd.xlane.f32.xlu0 %v1436
    %v1438 = vpop.xlane.xlu0 %1437
    %v1439 = vsel %vm785, %v1377, 0.0
    %1440 = vadd.xlane.f32.xlu0 %v1439
    %v1441 = vpop.xlane.xlu0 %1440
    %v1442 = vsel %vm785, %v1378, 0.0
    %1443 = vadd.xlane.f32.xlu0 %v1442
    %v1444 = vpop.xlane.xlu0 %1443
    %v1445 = vsel %vm785, %v1379, 0.0
    %1446 = vadd.xlane.f32.xlu0 %v1445
    %v1447 = vpop.xlane.xlu0 %1446
    %v1448 = vsel %vm785, %v1380, 0.0
    %1449 = vadd.xlane.f32.xlu0 %v1448
    %v1450 = vpop.xlane.xlu0 %1449
    %v1451 = vsel %vm785, %v1381, 0.0
    %1452 = vadd.xlane.f32.xlu0 %v1451
    %v1453 = vpop.xlane.xlu0 %1452
    %v1454 = vsel %vm785, %v1382, 0.0
    %1455 = vadd.xlane.f32.xlu0 %v1454
    %v1456 = vpop.xlane.xlu0 %1455
    %v1457 = vsel %vm785, %v1383, 0.0
    %1458 = vadd.xlane.f32.xlu0 %v1457
    %v1459 = vpop.xlane.xlu0 %1458
    %v1460 = vsel %vm785, %v1384, 0.0
    %1461 = vadd.xlane.f32.xlu0 %v1460
    %v1462 = vpop.xlane.xlu0 %1461
    %v1463 = vsel %vm785, %v1385, 0.0
    %1464 = vadd.xlane.f32.xlu0 %v1463
    %v1465 = vpop.xlane.xlu0 %1464
    %v1466 = vsel %vm785, %v1386, 0.0
    %1467 = vadd.xlane.f32.xlu0 %v1466
    %v1468 = vpop.xlane.xlu0 %1467
    %v1469 = vsel %vm785, %v1387, 0.0
    %1470 = vadd.xlane.f32.xlu0 %v1469
    %v1471 = vpop.xlane.xlu0 %1470
    %v1472 = vsel %vm785, %v1388, 0.0
    %1473 = vadd.xlane.f32.xlu0 %v1472
    %v1474 = vpop.xlane.xlu0 %1473
    %v1475 = vsel %vm785, %v1389, 0.0
    %1476 = vadd.xlane.f32.xlu0 %v1475
    %v1477 = vpop.xlane.xlu0 %1476
    %v1478 = vsel %vm785, %v1390, 0.0
    %1479 = vadd.xlane.f32.xlu0 %v1478
    %v1480 = vpop.xlane.xlu0 %1479
    %v1481 = vsel %vm785, %v1391, 0.0
    %1482 = vadd.xlane.f32.xlu0 %v1481
    %v1483 = vpop.xlane.xlu0 %1482
    %v1484 = vsel %vm785, %v1392, 0.0
    %1485 = vadd.xlane.f32.xlu0 %v1484
    %v1486 = vpop.xlane.xlu0 %1485
    %v1487 = vsel %vm785, %v1393, 0.0
    %1488 = vadd.xlane.f32.xlu0 %v1487
    %v1489 = vpop.xlane.xlu0 %1488
    %v1490 = vmul.f32 %v1075, %v1396
    %v1491 = vmul.f32 %v1077, %v1399
    %v1492 = vmul.f32 %v1079, %v1402
    %v1493 = vmul.f32 %v1081, %v1405
    %v1494 = vmul.f32 %v1083, %v1408
    %v1495 = vmul.f32 %v1085, %v1411
    %v1496 = vmul.f32 %v1087, %v1414
    %v1497 = vmul.f32 %v1089, %v1417
    %v1498 = vmul.f32 %v1091, %v1420
    %v1499 = vmul.f32 %v1093, %v1423
    %v1500 = vmul.f32 %v1095, %v1426
    %v1501 = vmul.f32 %v1097, %v1429
    %v1502 = vmul.f32 %v1099, %v1432
    %v1503 = vmul.f32 %v1101, %v1435
    %v1504 = vmul.f32 %v1103, %v1438
    %v1505 = vmul.f32 %v1105, %v1441
    %v1506 = vmul.f32 %v1107, %v1444
    %v1507 = vmul.f32 %v1109, %v1447
    %v1508 = vmul.f32 %v1111, %v1450
    %v1509 = vmul.f32 %v1113, %v1453
    %v1510 = vmul.f32 %v1115, %v1456
    %v1511 = vmul.f32 %v1117, %v1459
    %v1512 = vmul.f32 %v1119, %v1462
    %v1513 = vmul.f32 %v1121, %v1465
    %v1514 = vmul.f32 %v1123, %v1468
    %v1515 = vmul.f32 %v1125, %v1471
    %v1516 = vmul.f32 %v1127, %v1474
    %v1517 = vmul.f32 %v1129, %v1477
    %v1518 = vmul.f32 %v1131, %v1480
    %v1519 = vmul.f32 %v1133, %v1483
    %v1520 = vmul.f32 %v1135, %v1486
    %v1521 = vmul.f32 %v1137, %v1489
    %v1522 = vadd.f32 %v1490, 0.0
    %v1523 = vadd.f32 %v1491, 0.0
    %v1524 = vadd.f32 %v1492, 0.0
    %v1525 = vadd.f32 %v1493, 0.0
    %v1526 = vadd.f32 %v1494, 0.0
    %v1527 = vadd.f32 %v1495, 0.0
    %v1528 = vadd.f32 %v1496, 0.0
    %v1529 = vadd.f32 %v1497, 0.0
    %v1530 = vadd.f32 %v1498, 0.0
    %v1531 = vadd.f32 %v1499, 0.0
    %v1532 = vadd.f32 %v1500, 0.0
    %v1533 = vadd.f32 %v1501, 0.0
    %v1534 = vadd.f32 %v1502, 0.0
    %v1535 = vadd.f32 %v1503, 0.0
    %v1536 = vadd.f32 %v1504, 0.0
    %v1537 = vadd.f32 %v1505, 0.0
    %v1538 = vadd.f32 %v1506, 0.0
    %v1539 = vadd.f32 %v1507, 0.0
    %v1540 = vadd.f32 %v1508, 0.0
    %v1541 = vadd.f32 %v1509, 0.0
    %v1542 = vadd.f32 %v1510, 0.0
    %v1543 = vadd.f32 %v1511, 0.0
    %v1544 = vadd.f32 %v1512, 0.0
    %v1545 = vadd.f32 %v1513, 0.0
    %v1546 = vadd.f32 %v1514, 0.0
    %v1547 = vadd.f32 %v1515, 0.0
    %v1548 = vadd.f32 %v1516, 0.0
    %v1549 = vadd.f32 %v1517, 0.0
    %v1550 = vadd.f32 %v1518, 0.0
    %v1551 = vadd.f32 %v1519, 0.0
    %v1552 = vadd.f32 %v1520, 0.0
    %v1553 = vadd.f32 %v1521, 0.0
    %v1554 = vsel %vm1138, %v640, 0.0
    %v1555 = vsel %vm1139, %v640, 0.0
    %v1556 = vsel %vm1140, %v640, 0.0
    %v1557 = vsel %vm1141, %v640, 0.0
    %v1558 = vsel %vm1142, %v640, 0.0
    %v1559 = vsel %vm1143, %v640, 0.0
    %v1560 = vsel %vm1144, %v640, 0.0
    %v1561 = vsel %vm1145, %v640, 0.0
    %v1562 = vsel %vm1146, %v640, 0.0
    %v1563 = vsel %vm1147, %v640, 0.0
    %v1564 = vsel %vm1148, %v640, 0.0
    %v1565 = vsel %vm1149, %v640, 0.0
    %v1566 = vsel %vm1150, %v640, 0.0
    %v1567 = vsel %vm1151, %v640, 0.0
    %v1568 = vsel %vm1152, %v640, 0.0
    %v1569 = vsel %vm1153, %v640, 0.0
    %v1570 = vsel %vm1154, %v644, 0.0
    %v1571 = vsel %vm1155, %v644, 0.0
    %v1572 = vsel %vm1156, %v644, 0.0
    %v1573 = vsel %vm1157, %v644, 0.0
    %v1574 = vsel %vm1158, %v644, 0.0
    %v1575 = vsel %vm1159, %v644, 0.0
    %v1576 = vsel %vm1160, %v644, 0.0
    %v1577 = vsel %vm1161, %v644, 0.0
    %v1578 = vsel %vm1162, %v644, 0.0
    %v1579 = vsel %vm1163, %v644, 0.0
    %v1580 = vsel %vm1164, %v644, 0.0
    %v1581 = vsel %vm1165, %v644, 0.0
    %v1582 = vsel %vm1166, %v644, 0.0
    %v1583 = vsel %vm1167, %v644, 0.0
    %v1584 = vsel %vm1168, %v644, 0.0
    %v1585 = vsel %vm1169, %v644, 0.0
    %v1586 = vsel %vm785, %v1554, 0.0
    %1587 = vadd.xlane.f32.xlu0 %v1586
    %v1588 = vpop.xlane.xlu0 %1587
    %v1589 = vsel %vm785, %v1555, 0.0
    %1590 = vadd.xlane.f32.xlu0 %v1589
    %v1591 = vpop.xlane.xlu0 %1590
    %v1592 = vsel %vm785, %v1556, 0.0
    %1593 = vadd.xlane.f32.xlu0 %v1592
    %v1594 = vpop.xlane.xlu0 %1593
    %v1595 = vsel %vm785, %v1557, 0.0
    %1596 = vadd.xlane.f32.xlu0 %v1595
    %v1597 = vpop.xlane.xlu0 %1596
    %v1598 = vsel %vm785, %v1558, 0.0
    %1599 = vadd.xlane.f32.xlu0 %v1598
    %v1600 = vpop.xlane.xlu0 %1599
    %v1601 = vsel %vm785, %v1559, 0.0
    %1602 = vadd.xlane.f32.xlu0 %v1601
    %v1603 = vpop.xlane.xlu0 %1602
    %v1604 = vsel %vm785, %v1560, 0.0
    %1605 = vadd.xlane.f32.xlu0 %v1604
    %v1606 = vpop.xlane.xlu0 %1605
    %v1607 = vsel %vm785, %v1561, 0.0
    %1608 = vadd.xlane.f32.xlu0 %v1607
    %v1609 = vpop.xlane.xlu0 %1608
    %v1610 = vsel %vm785, %v1562, 0.0
    %1611 = vadd.xlane.f32.xlu0 %v1610
    %v1612 = vpop.xlane.xlu0 %1611
    %v1613 = vsel %vm785, %v1563, 0.0
    %1614 = vadd.xlane.f32.xlu0 %v1613
    %v1615 = vpop.xlane.xlu0 %1614
    %v1616 = vsel %vm785, %v1564, 0.0
    %1617 = vadd.xlane.f32.xlu0 %v1616
    %v1618 = vpop.xlane.xlu0 %1617
    %v1619 = vsel %vm785, %v1565, 0.0
    %1620 = vadd.xlane.f32.xlu0 %v1619
    %v1621 = vpop.xlane.xlu0 %1620
    %v1622 = vsel %vm785, %v1566, 0.0
    %1623 = vadd.xlane.f32.xlu0 %v1622
    %v1624 = vpop.xlane.xlu0 %1623
    %v1625 = vsel %vm785, %v1567, 0.0
    %1626 = vadd.xlane.f32.xlu0 %v1625
    %v1627 = vpop.xlane.xlu0 %1626
    %v1628 = vsel %vm785, %v1568, 0.0
    %1629 = vadd.xlane.f32.xlu0 %v1628
    %v1630 = vpop.xlane.xlu0 %1629
    %v1631 = vsel %vm785, %v1569, 0.0
    %1632 = vadd.xlane.f32.xlu0 %v1631
    %v1633 = vpop.xlane.xlu0 %1632
    %v1634 = vsel %vm785, %v1570, 0.0
    %1635 = vadd.xlane.f32.xlu0 %v1634
    %v1636 = vpop.xlane.xlu0 %1635
    %v1637 = vsel %vm785, %v1571, 0.0
    %1638 = vadd.xlane.f32.xlu0 %v1637
    %v1639 = vpop.xlane.xlu0 %1638
    %v1640 = vsel %vm785, %v1572, 0.0
    %1641 = vadd.xlane.f32.xlu0 %v1640
    %v1642 = vpop.xlane.xlu0 %1641
    %v1643 = vsel %vm785, %v1573, 0.0
    %1644 = vadd.xlane.f32.xlu0 %v1643
    %v1645 = vpop.xlane.xlu0 %1644
    %v1646 = vsel %vm785, %v1574, 0.0
    %1647 = vadd.xlane.f32.xlu0 %v1646
    %v1648 = vpop.xlane.xlu0 %1647
    %v1649 = vsel %vm785, %v1575, 0.0
    %1650 = vadd.xlane.f32.xlu0 %v1649
    %v1651 = vpop.xlane.xlu0 %1650
    %v1652 = vsel %vm785, %v1576, 0.0
    %1653 = vadd.xlane.f32.xlu0 %v1652
    %v1654 = vpop.xlane.xlu0 %1653
    %v1655 = vsel %vm785, %v1577, 0.0
    %1656 = vadd.xlane.f32.xlu0 %v1655
    %v1657 = vpop.xlane.xlu0 %1656
    %v1658 = vsel %vm785, %v1578, 0.0
    %1659 = vadd.xlane.f32.xlu0 %v1658
    %v1660 = vpop.xlane.xlu0 %1659
    %v1661 = vsel %vm785, %v1579, 0.0
    %1662 = vadd.xlane.f32.xlu0 %v1661
    %v1663 = vpop.xlane.xlu0 %1662
    %v1664 = vsel %vm785, %v1580, 0.0
    %1665 = vadd.xlane.f32.xlu0 %v1664
    %v1666 = vpop.xlane.xlu0 %1665
    %v1667 = vsel %vm785, %v1581, 0.0
    %1668 = vadd.xlane.f32.xlu0 %v1667
    %v1669 = vpop.xlane.xlu0 %1668
    %v1670 = vsel %vm785, %v1582, 0.0
    %1671 = vadd.xlane.f32.xlu0 %v1670
    %v1672 = vpop.xlane.xlu0 %1671
    %v1673 = vsel %vm785, %v1583, 0.0
    %1674 = vadd.xlane.f32.xlu0 %v1673
    %v1675 = vpop.xlane.xlu0 %1674
    %v1676 = vsel %vm785, %v1584, 0.0
    %1677 = vadd.xlane.f32.xlu0 %v1676
    %v1678 = vpop.xlane.xlu0 %1677
    %v1679 = vsel %vm785, %v1585, 0.0
    %1680 = vadd.xlane.f32.xlu0 %v1679
    %v1681 = vpop.xlane.xlu0 %1680
    %v1682 = vmul.f32 %v1075, %v1588
    %v1683 = vmul.f32 %v1077, %v1591
    %v1684 = vmul.f32 %v1079, %v1594
    %v1685 = vmul.f32 %v1081, %v1597
    %v1686 = vmul.f32 %v1083, %v1600
    %v1687 = vmul.f32 %v1085, %v1603
    %v1688 = vmul.f32 %v1087, %v1606
    %v1689 = vmul.f32 %v1089, %v1609
    %v1690 = vmul.f32 %v1091, %v1612
    %v1691 = vmul.f32 %v1093, %v1615
    %v1692 = vmul.f32 %v1095, %v1618
    %v1693 = vmul.f32 %v1097, %v1621
    %v1694 = vmul.f32 %v1099, %v1624
    %v1695 = vmul.f32 %v1101, %v1627
    %v1696 = vmul.f32 %v1103, %v1630
    %v1697 = vmul.f32 %v1105, %v1633
    %v1698 = vmul.f32 %v1107, %v1636
    %v1699 = vmul.f32 %v1109, %v1639
    %v1700 = vmul.f32 %v1111, %v1642
    %v1701 = vmul.f32 %v1113, %v1645
    %v1702 = vmul.f32 %v1115, %v1648
    %v1703 = vmul.f32 %v1117, %v1651
    %v1704 = vmul.f32 %v1119, %v1654
    %v1705 = vmul.f32 %v1121, %v1657
    %v1706 = vmul.f32 %v1123, %v1660
    %v1707 = vmul.f32 %v1125, %v1663
    %v1708 = vmul.f32 %v1127, %v1666
    %v1709 = vmul.f32 %v1129, %v1669
    %v1710 = vmul.f32 %v1131, %v1672
    %v1711 = vmul.f32 %v1133, %v1675
    %v1712 = vmul.f32 %v1135, %v1678
    %v1713 = vmul.f32 %v1137, %v1681
    %v1714 = vadd.f32 %v1682, 0.0
    %v1715 = vadd.f32 %v1683, 0.0
    %v1716 = vadd.f32 %v1684, 0.0
    %v1717 = vadd.f32 %v1685, 0.0
    %v1718 = vadd.f32 %v1686, 0.0
    %v1719 = vadd.f32 %v1687, 0.0
    %v1720 = vadd.f32 %v1688, 0.0
    %v1721 = vadd.f32 %v1689, 0.0
    %v1722 = vadd.f32 %v1690, 0.0
    %v1723 = vadd.f32 %v1691, 0.0
    %v1724 = vadd.f32 %v1692, 0.0
    %v1725 = vadd.f32 %v1693, 0.0
    %v1726 = vadd.f32 %v1694, 0.0
    %v1727 = vadd.f32 %v1695, 0.0
    %v1728 = vadd.f32 %v1696, 0.0
    %v1729 = vadd.f32 %v1697, 0.0
    %v1730 = vadd.f32 %v1698, 0.0
    %v1731 = vadd.f32 %v1699, 0.0
    %v1732 = vadd.f32 %v1700, 0.0
    %v1733 = vadd.f32 %v1701, 0.0
    %v1734 = vadd.f32 %v1702, 0.0
    %v1735 = vadd.f32 %v1703, 0.0
    %v1736 = vadd.f32 %v1704, 0.0
    %v1737 = vadd.f32 %v1705, 0.0
    %v1738 = vadd.f32 %v1706, 0.0
    %v1739 = vadd.f32 %v1707, 0.0
    %v1740 = vadd.f32 %v1708, 0.0
    %v1741 = vadd.f32 %v1709, 0.0
    %v1742 = vadd.f32 %v1710, 0.0
    %v1743 = vadd.f32 %v1711, 0.0
    %v1744 = vadd.f32 %v1712, 0.0
    %v1745 = vadd.f32 %v1713, 0.0
    %v1746 = vadd.f32 %v1075, 0.0
    %v1747 = vadd.f32 %v1077, 0.0
    %v1748 = vadd.f32 %v1079, 0.0
    %v1749 = vadd.f32 %v1081, 0.0
    %v1750 = vadd.f32 %v1083, 0.0
    %v1751 = vadd.f32 %v1085, 0.0
    %v1752 = vadd.f32 %v1087, 0.0
    %v1753 = vadd.f32 %v1089, 0.0
    %v1754 = vadd.f32 %v1091, 0.0
    %v1755 = vadd.f32 %v1093, 0.0
    %v1756 = vadd.f32 %v1095, 0.0
    %v1757 = vadd.f32 %v1097, 0.0
    %v1758 = vadd.f32 %v1099, 0.0
    %v1759 = vadd.f32 %v1101, 0.0
    %v1760 = vadd.f32 %v1103, 0.0
    %v1761 = vadd.f32 %v1105, 0.0
    %v1762 = vadd.f32 %v1107, 0.0
    %v1763 = vadd.f32 %v1109, 0.0
    %v1764 = vadd.f32 %v1111, 0.0
    %v1765 = vadd.f32 %v1113, 0.0
    %v1766 = vadd.f32 %v1115, 0.0
    %v1767 = vadd.f32 %v1117, 0.0
    %v1768 = vadd.f32 %v1119, 0.0
    %v1769 = vadd.f32 %v1121, 0.0
    %v1770 = vadd.f32 %v1123, 0.0
    %v1771 = vadd.f32 %v1125, 0.0
    %v1772 = vadd.f32 %v1127, 0.0
    %v1773 = vadd.f32 %v1129, 0.0
    %v1774 = vadd.f32 %v1131, 0.0
    %v1775 = vadd.f32 %v1133, 0.0
    %v1776 = vadd.f32 %v1135, 0.0
    %v1777 = vadd.f32 %v1137, 0.0
    %vm1778 = vcmp.gt.f32.partialorder %v753, %v948
    %vm1779 = vcmp.gt.f32.partialorder %v754, %v951
    %vm1780 = vcmp.gt.f32.partialorder %v755, %v954
    %vm1781 = vcmp.gt.f32.partialorder %v756, %v957
    %vm1782 = vcmp.gt.f32.partialorder %v757, %v960
    %vm1783 = vcmp.gt.f32.partialorder %v758, %v963
    %vm1784 = vcmp.gt.f32.partialorder %v759, %v966
    %vm1785 = vcmp.gt.f32.partialorder %v760, %v969
    %vm1786 = vcmp.gt.f32.partialorder %v761, %v972
    %vm1787 = vcmp.gt.f32.partialorder %v762, %v975
    %vm1788 = vcmp.gt.f32.partialorder %v763, %v978
    %vm1789 = vcmp.gt.f32.partialorder %v764, %v981
    %vm1790 = vcmp.gt.f32.partialorder %v765, %v984
    %vm1791 = vcmp.gt.f32.partialorder %v766, %v987
    %vm1792 = vcmp.gt.f32.partialorder %v767, %v990
    %vm1793 = vcmp.gt.f32.partialorder %v768, %v993
    %vm1794 = vcmp.gt.f32.partialorder %v769, %v996
    %vm1795 = vcmp.gt.f32.partialorder %v770, %v999
    %vm1796 = vcmp.gt.f32.partialorder %v771, %v1002
    %vm1797 = vcmp.gt.f32.partialorder %v772, %v1005
    %vm1798 = vcmp.gt.f32.partialorder %v773, %v1008
    %vm1799 = vcmp.gt.f32.partialorder %v774, %v1011
    %vm1800 = vcmp.gt.f32.partialorder %v775, %v1014
    %vm1801 = vcmp.gt.f32.partialorder %v776, %v1017
    %vm1802 = vcmp.gt.f32.partialorder %v777, %v1020
    %vm1803 = vcmp.gt.f32.partialorder %v778, %v1023
    %vm1804 = vcmp.gt.f32.partialorder %v779, %v1026
    %vm1805 = vcmp.gt.f32.partialorder %v780, %v1029
    %vm1806 = vcmp.gt.f32.partialorder %v781, %v1032
    %vm1807 = vcmp.gt.f32.partialorder %v782, %v1035
    %vm1808 = vcmp.gt.f32.partialorder %v783, %v1038
    %vm1809 = vcmp.gt.f32.partialorder %v784, %v1041
    %v1810 = vsel %vm1778, %v753, inf
    %v1811 = vsel %vm1779, %v754, inf
    %v1812 = vsel %vm1780, %v755, inf
    %v1813 = vsel %vm1781, %v756, inf
    %v1814 = vsel %vm1782, %v757, inf
    %v1815 = vsel %vm1783, %v758, inf
    %v1816 = vsel %vm1784, %v759, inf
    %v1817 = vsel %vm1785, %v760, inf
    %v1818 = vsel %vm1786, %v761, inf
    %v1819 = vsel %vm1787, %v762, inf
    %v1820 = vsel %vm1788, %v763, inf
    %v1821 = vsel %vm1789, %v764, inf
    %v1822 = vsel %vm1790, %v765, inf
    %v1823 = vsel %vm1791, %v766, inf
    %v1824 = vsel %vm1792, %v767, inf
    %v1825 = vsel %vm1793, %v768, inf
    %v1826 = vsel %vm1794, %v769, inf
    %v1827 = vsel %vm1795, %v770, inf
    %v1828 = vsel %vm1796, %v771, inf
    %v1829 = vsel %vm1797, %v772, inf
    %v1830 = vsel %vm1798, %v773, inf
    %v1831 = vsel %vm1799, %v774, inf
    %v1832 = vsel %vm1800, %v775, inf
    %v1833 = vsel %vm1801, %v776, inf
    %v1834 = vsel %vm1802, %v777, inf
    %v1835 = vsel %vm1803, %v778, inf
    %v1836 = vsel %vm1804, %v779, inf
    %v1837 = vsel %vm1805, %v780, inf
    %v1838 = vsel %vm1806, %v781, inf
    %v1839 = vsel %vm1807, %v782, inf
    %v1840 = vsel %vm1808, %v783, inf
    %v1841 = vsel %vm1809, %v784, inf
    %v1842 = vsel %vm785, %v1810, inf
    %1843 = vmin.xlane.f32.xlu0 %v1842
    %v1844 = vpop.xlane.xlu0 %1843
    %v1845 = vsel %vm785, %v1811, inf
    %1846 = vmin.xlane.f32.xlu0 %v1845
    %v1847 = vpop.xlane.xlu0 %1846
    %v1848 = vsel %vm785, %v1812, inf
    %1849 = vmin.xlane.f32.xlu0 %v1848
    %v1850 = vpop.xlane.xlu0 %1849
    %v1851 = vsel %vm785, %v1813, inf
    %1852 = vmin.xlane.f32.xlu0 %v1851
    %v1853 = vpop.xlane.xlu0 %1852
    %v1854 = vsel %vm785, %v1814, inf
    %1855 = vmin.xlane.f32.xlu0 %v1854
    %v1856 = vpop.xlane.xlu0 %1855
    %v1857 = vsel %vm785, %v1815, inf
    %1858 = vmin.xlane.f32.xlu0 %v1857
    %v1859 = vpop.xlane.xlu0 %1858
    %v1860 = vsel %vm785, %v1816, inf
    %1861 = vmin.xlane.f32.xlu0 %v1860
    %v1862 = vpop.xlane.xlu0 %1861
    %v1863 = vsel %vm785, %v1817, inf
    %1864 = vmin.xlane.f32.xlu0 %v1863
    %v1865 = vpop.xlane.xlu0 %1864
    %v1866 = vsel %vm785, %v1818, inf
    %1867 = vmin.xlane.f32.xlu0 %v1866
    %v1868 = vpop.xlane.xlu0 %1867
    %v1869 = vsel %vm785, %v1819, inf
    %1870 = vmin.xlane.f32.xlu0 %v1869
    %v1871 = vpop.xlane.xlu0 %1870
    %v1872 = vsel %vm785, %v1820, inf
    %1873 = vmin.xlane.f32.xlu0 %v1872
    %v1874 = vpop.xlane.xlu0 %1873
    %v1875 = vsel %vm785, %v1821, inf
    %1876 = vmin.xlane.f32.xlu0 %v1875
    %v1877 = vpop.xlane.xlu0 %1876
    %v1878 = vsel %vm785, %v1822, inf
    %1879 = vmin.xlane.f32.xlu0 %v1878
    %v1880 = vpop.xlane.xlu0 %1879
    %v1881 = vsel %vm785, %v1823, inf
    %1882 = vmin.xlane.f32.xlu0 %v1881
    %v1883 = vpop.xlane.xlu0 %1882
    %v1884 = vsel %vm785, %v1824, inf
    %1885 = vmin.xlane.f32.xlu0 %v1884
    %v1886 = vpop.xlane.xlu0 %1885
    %v1887 = vsel %vm785, %v1825, inf
    %1888 = vmin.xlane.f32.xlu0 %v1887
    %v1889 = vpop.xlane.xlu0 %1888
    %v1890 = vsel %vm785, %v1826, inf
    %1891 = vmin.xlane.f32.xlu0 %v1890
    %v1892 = vpop.xlane.xlu0 %1891
    %v1893 = vsel %vm785, %v1827, inf
    %1894 = vmin.xlane.f32.xlu0 %v1893
    %v1895 = vpop.xlane.xlu0 %1894
    %v1896 = vsel %vm785, %v1828, inf
    %1897 = vmin.xlane.f32.xlu0 %v1896
    %v1898 = vpop.xlane.xlu0 %1897
    %v1899 = vsel %vm785, %v1829, inf
    %1900 = vmin.xlane.f32.xlu0 %v1899
    %v1901 = vpop.xlane.xlu0 %1900
    %v1902 = vsel %vm785, %v1830, inf
    %1903 = vmin.xlane.f32.xlu0 %v1902
    %v1904 = vpop.xlane.xlu0 %1903
    %v1905 = vsel %vm785, %v1831, inf
    %1906 = vmin.xlane.f32.xlu0 %v1905
    %v1907 = vpop.xlane.xlu0 %1906
    %v1908 = vsel %vm785, %v1832, inf
    %1909 = vmin.xlane.f32.xlu0 %v1908
    %v1910 = vpop.xlane.xlu0 %1909
    %v1911 = vsel %vm785, %v1833, inf
    %1912 = vmin.xlane.f32.xlu0 %v1911
    %v1913 = vpop.xlane.xlu0 %1912
    %v1914 = vsel %vm785, %v1834, inf
    %1915 = vmin.xlane.f32.xlu0 %v1914
    %v1916 = vpop.xlane.xlu0 %1915
    %v1917 = vsel %vm785, %v1835, inf
    %1918 = vmin.xlane.f32.xlu0 %v1917
    %v1919 = vpop.xlane.xlu0 %1918
    %v1920 = vsel %vm785, %v1836, inf
    %1921 = vmin.xlane.f32.xlu0 %v1920
    %v1922 = vpop.xlane.xlu0 %1921
    %v1923 = vsel %vm785, %v1837, inf
    %1924 = vmin.xlane.f32.xlu0 %v1923
    %v1925 = vpop.xlane.xlu0 %1924
    %v1926 = vsel %vm785, %v1838, inf
    %1927 = vmin.xlane.f32.xlu0 %v1926
    %v1928 = vpop.xlane.xlu0 %1927
    %v1929 = vsel %vm785, %v1839, inf
    %1930 = vmin.xlane.f32.xlu0 %v1929
    %v1931 = vpop.xlane.xlu0 %1930
    %v1932 = vsel %vm785, %v1840, inf
    %1933 = vmin.xlane.f32.xlu0 %v1932
    %v1934 = vpop.xlane.xlu0 %1933
    %v1935 = vsel %vm785, %v1841, inf
    %1936 = vmin.xlane.f32.xlu0 %v1935
    %v1937 = vpop.xlane.xlu0 %1936
    %v1938 = vsub.f32 %v788, %v1844
    %v1939 = vsub.f32 %v791, %v1847
    %v1940 = vsub.f32 %v794, %v1850
    %v1941 = vsub.f32 %v797, %v1853
    %v1942 = vsub.f32 %v800, %v1856
    %v1943 = vsub.f32 %v803, %v1859
    %v1944 = vsub.f32 %v806, %v1862
    %v1945 = vsub.f32 %v809, %v1865
    %v1946 = vsub.f32 %v812, %v1868
    %v1947 = vsub.f32 %v815, %v1871
    %v1948 = vsub.f32 %v818, %v1874
    %v1949 = vsub.f32 %v821, %v1877
    %v1950 = vsub.f32 %v824, %v1880
    %v1951 = vsub.f32 %v827, %v1883
    %v1952 = vsub.f32 %v830, %v1886
    %v1953 = vsub.f32 %v833, %v1889
    %v1954 = vsub.f32 %v836, %v1892
    %v1955 = vsub.f32 %v839, %v1895
    %v1956 = vsub.f32 %v842, %v1898
    %v1957 = vsub.f32 %v845, %v1901
    %v1958 = vsub.f32 %v848, %v1904
    %v1959 = vsub.f32 %v851, %v1907
    %v1960 = vsub.f32 %v854, %v1910
    %v1961 = vsub.f32 %v857, %v1913
    %v1962 = vsub.f32 %v860, %v1916
    %v1963 = vsub.f32 %v863, %v1919
    %v1964 = vsub.f32 %v866, %v1922
    %v1965 = vsub.f32 %v869, %v1925
    %v1966 = vsub.f32 %v872, %v1928
    %v1967 = vsub.f32 %v875, %v1931
    %v1968 = vsub.f32 %v878, %v1934
    %v1969 = vsub.f32 %v881, %v1937
    %v1970 = vmul.f32 %v1938, 1.442695
    %v1971 = vpow.pop %v1970
    %v1972 = vmul.f32 %v1939, 1.442695
    %v1973 = vpow.pop %v1972
    %v1974 = vmul.f32 %v1940, 1.442695
    %v1975 = vpow.pop %v1974
    %v1976 = vmul.f32 %v1941, 1.442695
    %v1977 = vpow.pop %v1976
    %v1978 = vmul.f32 %v1942, 1.442695
    %v1979 = vpow.pop %v1978
    %v1980 = vmul.f32 %v1943, 1.442695
    %v1981 = vpow.pop %v1980
    %v1982 = vmul.f32 %v1944, 1.442695
    %v1983 = vpow.pop %v1982
    %v1984 = vmul.f32 %v1945, 1.442695
    %v1985 = vpow.pop %v1984
    %v1986 = vmul.f32 %v1946, 1.442695
    %v1987 = vpow.pop %v1986
    %v1988 = vmul.f32 %v1947, 1.442695
    %v1989 = vpow.pop %v1988
    %v1990 = vmul.f32 %v1948, 1.442695
    %v1991 = vpow.pop %v1990
    %v1992 = vmul.f32 %v1949, 1.442695
    %v1993 = vpow.pop %v1992
    %v1994 = vmul.f32 %v1950, 1.442695
    %v1995 = vpow.pop %v1994
    %v1996 = vmul.f32 %v1951, 1.442695
    %v1997 = vpow.pop %v1996
    %v1998 = vmul.f32 %v1952, 1.442695
    %v1999 = vpow.pop %v1998
    %v2000 = vmul.f32 %v1953, 1.442695
    %v2001 = vpow.pop %v2000
    %v2002 = vmul.f32 %v1954, 1.442695
    %v2003 = vpow.pop %v2002
    %v2004 = vmul.f32 %v1955, 1.442695
    %v2005 = vpow.pop %v2004
    %v2006 = vmul.f32 %v1956, 1.442695
    %v2007 = vpow.pop %v2006
    %v2008 = vmul.f32 %v1957, 1.442695
    %v2009 = vpow.pop %v2008
    %v2010 = vmul.f32 %v1958, 1.442695
    %v2011 = vpow.pop %v2010
    %v2012 = vmul.f32 %v1959, 1.442695
    %v2013 = vpow.pop %v2012
    %v2014 = vmul.f32 %v1960, 1.442695
    %v2015 = vpow.pop %v2014
    %v2016 = vmul.f32 %v1961, 1.442695
    %v2017 = vpow.pop %v2016
    %v2018 = vmul.f32 %v1962, 1.442695
    %v2019 = vpow.pop %v2018
    %v2020 = vmul.f32 %v1963, 1.442695
    %v2021 = vpow.pop %v2020
    %v2022 = vmul.f32 %v1964, 1.442695
    %v2023 = vpow.pop %v2022
    %v2024 = vmul.f32 %v1965, 1.442695
    %v2025 = vpow.pop %v2024
    %v2026 = vmul.f32 %v1966, 1.442695
    %v2027 = vpow.pop %v2026
    %v2028 = vmul.f32 %v1967, 1.442695
    %v2029 = vpow.pop %v2028
    %v2030 = vmul.f32 %v1968, 1.442695
    %v2031 = vpow.pop %v2030
    %v2032 = vmul.f32 %v1969, 1.442695
    %v2033 = vpow.pop %v2032
    %vm2034 = vcmp.eq.f32.partialorder %v753, %v1844
    %vm2035 = vcmp.eq.f32.partialorder %v754, %v1847
    %vm2036 = vcmp.eq.f32.partialorder %v755, %v1850
    %vm2037 = vcmp.eq.f32.partialorder %v756, %v1853
    %vm2038 = vcmp.eq.f32.partialorder %v757, %v1856
    %vm2039 = vcmp.eq.f32.partialorder %v758, %v1859
    %vm2040 = vcmp.eq.f32.partialorder %v759, %v1862
    %vm2041 = vcmp.eq.f32.partialorder %v760, %v1865
    %vm2042 = vcmp.eq.f32.partialorder %v761, %v1868
    %vm2043 = vcmp.eq.f32.partialorder %v762, %v1871
    %vm2044 = vcmp.eq.f32.partialorder %v763, %v1874
    %vm2045 = vcmp.eq.f32.partialorder %v764, %v1877
    %vm2046 = vcmp.eq.f32.partialorder %v765, %v1880
    %vm2047 = vcmp.eq.f32.partialorder %v766, %v1883
    %vm2048 = vcmp.eq.f32.partialorder %v767, %v1886
    %vm2049 = vcmp.eq.f32.partialorder %v768, %v1889
    %vm2050 = vcmp.eq.f32.partialorder %v769, %v1892
    %vm2051 = vcmp.eq.f32.partialorder %v770, %v1895
    %vm2052 = vcmp.eq.f32.partialorder %v771, %v1898
    %vm2053 = vcmp.eq.f32.partialorder %v772, %v1901
    %vm2054 = vcmp.eq.f32.partialorder %v773, %v1904
    %vm2055 = vcmp.eq.f32.partialorder %v774, %v1907
    %vm2056 = vcmp.eq.f32.partialorder %v775, %v1910
    %vm2057 = vcmp.eq.f32.partialorder %v776, %v1913
    %vm2058 = vcmp.eq.f32.partialorder %v777, %v1916
    %vm2059 = vcmp.eq.f32.partialorder %v778, %v1919
    %vm2060 = vcmp.eq.f32.partialorder %v779, %v1922
    %vm2061 = vcmp.eq.f32.partialorder %v780, %v1925
    %vm2062 = vcmp.eq.f32.partialorder %v781, %v1928
    %vm2063 = vcmp.eq.f32.partialorder %v782, %v1931
    %vm2064 = vcmp.eq.f32.partialorder %v783, %v1934
    %vm2065 = vcmp.eq.f32.partialorder %v784, %v1937
    %v2066 = vsel %vm2034, %v210, 0.0
    %v2067 = vsel %vm2035, %v210, 0.0
    %v2068 = vsel %vm2036, %v210, 0.0
    %v2069 = vsel %vm2037, %v210, 0.0
    %v2070 = vsel %vm2038, %v210, 0.0
    %v2071 = vsel %vm2039, %v210, 0.0
    %v2072 = vsel %vm2040, %v210, 0.0
    %v2073 = vsel %vm2041, %v210, 0.0
    %v2074 = vsel %vm2042, %v210, 0.0
    %v2075 = vsel %vm2043, %v210, 0.0
    %v2076 = vsel %vm2044, %v210, 0.0
    %v2077 = vsel %vm2045, %v210, 0.0
    %v2078 = vsel %vm2046, %v210, 0.0
    %v2079 = vsel %vm2047, %v210, 0.0
    %v2080 = vsel %vm2048, %v210, 0.0
    %v2081 = vsel %vm2049, %v210, 0.0
    %v2082 = vsel %vm2050, %v214, 0.0
    %v2083 = vsel %vm2051, %v214, 0.0
    %v2084 = vsel %vm2052, %v214, 0.0
    %v2085 = vsel %vm2053, %v214, 0.0
    %v2086 = vsel %vm2054, %v214, 0.0
    %v2087 = vsel %vm2055, %v214, 0.0
    %v2088 = vsel %vm2056, %v214, 0.0
    %v2089 = vsel %vm2057, %v214, 0.0
    %v2090 = vsel %vm2058, %v214, 0.0
    %v2091 = vsel %vm2059, %v214, 0.0
    %v2092 = vsel %vm2060, %v214, 0.0
    %v2093 = vsel %vm2061, %v214, 0.0
    %v2094 = vsel %vm2062, %v214, 0.0
    %v2095 = vsel %vm2063, %v214, 0.0
    %v2096 = vsel %vm2064, %v214, 0.0
    %v2097 = vsel %vm2065, %v214, 0.0
    %v2098 = vsel %vm785, %v2066, 0.0
    %2099 = vadd.xlane.f32.xlu0 %v2098
    %v2100 = vpop.xlane.xlu0 %2099
    %v2101 = vsel %vm785, %v2067, 0.0
    %2102 = vadd.xlane.f32.xlu0 %v2101
    %v2103 = vpop.xlane.xlu0 %2102
    %v2104 = vsel %vm785, %v2068, 0.0
    %2105 = vadd.xlane.f32.xlu0 %v2104
    %v2106 = vpop.xlane.xlu0 %2105
    %v2107 = vsel %vm785, %v2069, 0.0
    %2108 = vadd.xlane.f32.xlu0 %v2107
    %v2109 = vpop.xlane.xlu0 %2108
    %v2110 = vsel %vm785, %v2070, 0.0
    %2111 = vadd.xlane.f32.xlu0 %v2110
    %v2112 = vpop.xlane.xlu0 %2111
    %v2113 = vsel %vm785, %v2071, 0.0
    %2114 = vadd.xlane.f32.xlu0 %v2113
    %v2115 = vpop.xlane.xlu0 %2114
    %v2116 = vsel %vm785, %v2072, 0.0
    %2117 = vadd.xlane.f32.xlu0 %v2116
    %v2118 = vpop.xlane.xlu0 %2117
    %v2119 = vsel %vm785, %v2073, 0.0
    %2120 = vadd.xlane.f32.xlu0 %v2119
    %v2121 = vpop.xlane.xlu0 %2120
    %v2122 = vsel %vm785, %v2074, 0.0
    %2123 = vadd.xlane.f32.xlu0 %v2122
    %v2124 = vpop.xlane.xlu0 %2123
    %v2125 = vsel %vm785, %v2075, 0.0
    %2126 = vadd.xlane.f32.xlu0 %v2125
    %v2127 = vpop.xlane.xlu0 %2126
    %v2128 = vsel %vm785, %v2076, 0.0
    %2129 = vadd.xlane.f32.xlu0 %v2128
    %v2130 = vpop.xlane.xlu0 %2129
    %v2131 = vsel %vm785, %v2077, 0.0
    %2132 = vadd.xlane.f32.xlu0 %v2131
    %v2133 = vpop.xlane.xlu0 %2132
    %v2134 = vsel %vm785, %v2078, 0.0
    %2135 = vadd.xlane.f32.xlu0 %v2134
    %v2136 = vpop.xlane.xlu0 %2135
    %v2137 = vsel %vm785, %v2079, 0.0
    %2138 = vadd.xlane.f32.xlu0 %v2137
    %v2139 = vpop.xlane.xlu0 %2138
    %v2140 = vsel %vm785, %v2080, 0.0
    %2141 = vadd.xlane.f32.xlu0 %v2140
    %v2142 = vpop.xlane.xlu0 %2141
    %v2143 = vsel %vm785, %v2081, 0.0
    %2144 = vadd.xlane.f32.xlu0 %v2143
    %v2145 = vpop.xlane.xlu0 %2144
    %v2146 = vsel %vm785, %v2082, 0.0
    %2147 = vadd.xlane.f32.xlu0 %v2146
    %v2148 = vpop.xlane.xlu0 %2147
    %v2149 = vsel %vm785, %v2083, 0.0
    %2150 = vadd.xlane.f32.xlu0 %v2149
    %v2151 = vpop.xlane.xlu0 %2150
    %v2152 = vsel %vm785, %v2084, 0.0
    %2153 = vadd.xlane.f32.xlu0 %v2152
    %v2154 = vpop.xlane.xlu0 %2153
    %v2155 = vsel %vm785, %v2085, 0.0
    %2156 = vadd.xlane.f32.xlu0 %v2155
    %v2157 = vpop.xlane.xlu0 %2156
    %v2158 = vsel %vm785, %v2086, 0.0
    %2159 = vadd.xlane.f32.xlu0 %v2158
    %v2160 = vpop.xlane.xlu0 %2159
    %v2161 = vsel %vm785, %v2087, 0.0
    %2162 = vadd.xlane.f32.xlu0 %v2161
    %v2163 = vpop.xlane.xlu0 %2162
    %v2164 = vsel %vm785, %v2088, 0.0
    %2165 = vadd.xlane.f32.xlu0 %v2164
    %v2166 = vpop.xlane.xlu0 %2165
    %v2167 = vsel %vm785, %v2089, 0.0
    %2168 = vadd.xlane.f32.xlu0 %v2167
    %v2169 = vpop.xlane.xlu0 %2168
    %v2170 = vsel %vm785, %v2090, 0.0
    %2171 = vadd.xlane.f32.xlu0 %v2170
    %v2172 = vpop.xlane.xlu0 %2171
    %v2173 = vsel %vm785, %v2091, 0.0
    %2174 = vadd.xlane.f32.xlu0 %v2173
    %v2175 = vpop.xlane.xlu0 %2174
    %v2176 = vsel %vm785, %v2092, 0.0
    %2177 = vadd.xlane.f32.xlu0 %v2176
    %v2178 = vpop.xlane.xlu0 %2177
    %v2179 = vsel %vm785, %v2093, 0.0
    %2180 = vadd.xlane.f32.xlu0 %v2179
    %v2181 = vpop.xlane.xlu0 %2180
    %v2182 = vsel %vm785, %v2094, 0.0
    %2183 = vadd.xlane.f32.xlu0 %v2182
    %v2184 = vpop.xlane.xlu0 %2183
    %v2185 = vsel %vm785, %v2095, 0.0
    %2186 = vadd.xlane.f32.xlu0 %v2185
    %v2187 = vpop.xlane.xlu0 %2186
    %v2188 = vsel %vm785, %v2096, 0.0
    %2189 = vadd.xlane.f32.xlu0 %v2188
    %v2190 = vpop.xlane.xlu0 %2189
    %v2191 = vsel %vm785, %v2097, 0.0
    %2192 = vadd.xlane.f32.xlu0 %v2191
    %v2193 = vpop.xlane.xlu0 %2192
    %v2194 = vmul.f32 %v1971, %v2100
    %v2195 = vmul.f32 %v1973, %v2103
    %v2196 = vmul.f32 %v1975, %v2106
    %v2197 = vmul.f32 %v1977, %v2109
    %v2198 = vmul.f32 %v1979, %v2112
    %v2199 = vmul.f32 %v1981, %v2115
    %v2200 = vmul.f32 %v1983, %v2118
    %v2201 = vmul.f32 %v1985, %v2121
    %v2202 = vmul.f32 %v1987, %v2124
    %v2203 = vmul.f32 %v1989, %v2127
    %v2204 = vmul.f32 %v1991, %v2130
    %v2205 = vmul.f32 %v1993, %v2133
    %v2206 = vmul.f32 %v1995, %v2136
    %v2207 = vmul.f32 %v1997, %v2139
    %v2208 = vmul.f32 %v1999, %v2142
    %v2209 = vmul.f32 %v2001, %v2145
    %v2210 = vmul.f32 %v2003, %v2148
    %v2211 = vmul.f32 %v2005, %v2151
    %v2212 = vmul.f32 %v2007, %v2154
    %v2213 = vmul.f32 %v2009, %v2157
    %v2214 = vmul.f32 %v2011, %v2160
    %v2215 = vmul.f32 %v2013, %v2163
    %v2216 = vmul.f32 %v2015, %v2166
    %v2217 = vmul.f32 %v2017, %v2169
    %v2218 = vmul.f32 %v2019, %v2172
    %v2219 = vmul.f32 %v2021, %v2175
    %v2220 = vmul.f32 %v2023, %v2178
    %v2221 = vmul.f32 %v2025, %v2181
    %v2222 = vmul.f32 %v2027, %v2184
    %v2223 = vmul.f32 %v2029, %v2187
    %v2224 = vmul.f32 %v2031, %v2190
    %v2225 = vmul.f32 %v2033, %v2193
    %v2226 = vadd.f32 %v1330, %v2194
    %v2227 = vadd.f32 %v1331, %v2195
    %v2228 = vadd.f32 %v1332, %v2196
    %v2229 = vadd.f32 %v1333, %v2197
    %v2230 = vadd.f32 %v1334, %v2198
    %v2231 = vadd.f32 %v1335, %v2199
    %v2232 = vadd.f32 %v1336, %v2200
    %v2233 = vadd.f32 %v1337, %v2201
    %v2234 = vadd.f32 %v1338, %v2202
    %v2235 = vadd.f32 %v1339, %v2203
    %v2236 = vadd.f32 %v1340, %v2204
    %v2237 = vadd.f32 %v1341, %v2205
    %v2238 = vadd.f32 %v1342, %v2206
    %v2239 = vadd.f32 %v1343, %v2207
    %v2240 = vadd.f32 %v1344, %v2208
    %v2241 = vadd.f32 %v1345, %v2209
    %v2242 = vadd.f32 %v1346, %v2210
    %v2243 = vadd.f32 %v1347, %v2211
    %v2244 = vadd.f32 %v1348, %v2212
    %v2245 = vadd.f32 %v1349, %v2213
    %v2246 = vadd.f32 %v1350, %v2214
    %v2247 = vadd.f32 %v1351, %v2215
    %v2248 = vadd.f32 %v1352, %v2216
    %v2249 = vadd.f32 %v1353, %v2217
    %v2250 = vadd.f32 %v1354, %v2218
    %v2251 = vadd.f32 %v1355, %v2219
    %v2252 = vadd.f32 %v1356, %v2220
    %v2253 = vadd.f32 %v1357, %v2221
    %v2254 = vadd.f32 %v1358, %v2222
    %v2255 = vadd.f32 %v1359, %v2223
    %v2256 = vadd.f32 %v1360, %v2224
    %v2257 = vadd.f32 %v1361, %v2225
    %v2258 = vsel %vm2034, %v409, 0.0
    %v2259 = vsel %vm2035, %v409, 0.0
    %v2260 = vsel %vm2036, %v409, 0.0
    %v2261 = vsel %vm2037, %v409, 0.0
    %v2262 = vsel %vm2038, %v409, 0.0
    %v2263 = vsel %vm2039, %v409, 0.0
    %v2264 = vsel %vm2040, %v409, 0.0
    %v2265 = vsel %vm2041, %v409, 0.0
    %v2266 = vsel %vm2042, %v409, 0.0
    %v2267 = vsel %vm2043, %v409, 0.0
    %v2268 = vsel %vm2044, %v409, 0.0
    %v2269 = vsel %vm2045, %v409, 0.0
    %v2270 = vsel %vm2046, %v409, 0.0
    %v2271 = vsel %vm2047, %v409, 0.0
    %v2272 = vsel %vm2048, %v409, 0.0
    %v2273 = vsel %vm2049, %v409, 0.0
    %v2274 = vsel %vm2050, %v413, 0.0
    %v2275 = vsel %vm2051, %v413, 0.0
    %v2276 = vsel %vm2052, %v413, 0.0
    %v2277 = vsel %vm2053, %v413, 0.0
    %v2278 = vsel %vm2054, %v413, 0.0
    %v2279 = vsel %vm2055, %v413, 0.0
    %v2280 = vsel %vm2056, %v413, 0.0
    %v2281 = vsel %vm2057, %v413, 0.0
    %v2282 = vsel %vm2058, %v413, 0.0
    %v2283 = vsel %vm2059, %v413, 0.0
    %v2284 = vsel %vm2060, %v413, 0.0
    %v2285 = vsel %vm2061, %v413, 0.0
    %v2286 = vsel %vm2062, %v413, 0.0
    %v2287 = vsel %vm2063, %v413, 0.0
    %v2288 = vsel %vm2064, %v413, 0.0
    %v2289 = vsel %vm2065, %v413, 0.0
    %v2290 = vsel %vm785, %v2258, 0.0
    %2291 = vadd.xlane.f32.xlu0 %v2290
    %v2292 = vpop.xlane.xlu0 %2291
    %v2293 = vsel %vm785, %v2259, 0.0
    %2294 = vadd.xlane.f32.xlu0 %v2293
    %v2295 = vpop.xlane.xlu0 %2294
    %v2296 = vsel %vm785, %v2260, 0.0
    %2297 = vadd.xlane.f32.xlu0 %v2296
    %v2298 = vpop.xlane.xlu0 %2297
    %v2299 = vsel %vm785, %v2261, 0.0
    %2300 = vadd.xlane.f32.xlu0 %v2299
    %v2301 = vpop.xlane.xlu0 %2300
    %v2302 = vsel %vm785, %v2262, 0.0
    %2303 = vadd.xlane.f32.xlu0 %v2302
    %v2304 = vpop.xlane.xlu0 %2303
    %v2305 = vsel %vm785, %v2263, 0.0
    %2306 = vadd.xlane.f32.xlu0 %v2305
    %v2307 = vpop.xlane.xlu0 %2306
    %v2308 = vsel %vm785, %v2264, 0.0
    %2309 = vadd.xlane.f32.xlu0 %v2308
    %v2310 = vpop.xlane.xlu0 %2309
    %v2311 = vsel %vm785, %v2265, 0.0
    %2312 = vadd.xlane.f32.xlu0 %v2311
    %v2313 = vpop.xlane.xlu0 %2312
    %v2314 = vsel %vm785, %v2266, 0.0
    %2315 = vadd.xlane.f32.xlu0 %v2314
    %v2316 = vpop.xlane.xlu0 %2315
    %v2317 = vsel %vm785, %v2267, 0.0
    %2318 = vadd.xlane.f32.xlu0 %v2317
    %v2319 = vpop.xlane.xlu0 %2318
    %v2320 = vsel %vm785, %v2268, 0.0
    %2321 = vadd.xlane.f32.xlu0 %v2320
    %v2322 = vpop.xlane.xlu0 %2321
    %v2323 = vsel %vm785, %v2269, 0.0
    %2324 = vadd.xlane.f32.xlu0 %v2323
    %v2325 = vpop.xlane.xlu0 %2324
    %v2326 = vsel %vm785, %v2270, 0.0
    %2327 = vadd.xlane.f32.xlu0 %v2326
    %v2328 = vpop.xlane.xlu0 %2327
    %v2329 = vsel %vm785, %v2271, 0.0
    %2330 = vadd.xlane.f32.xlu0 %v2329
    %v2331 = vpop.xlane.xlu0 %2330
    %v2332 = vsel %vm785, %v2272, 0.0
    %2333 = vadd.xlane.f32.xlu0 %v2332
    %v2334 = vpop.xlane.xlu0 %2333
    %v2335 = vsel %vm785, %v2273, 0.0
    %2336 = vadd.xlane.f32.xlu0 %v2335
    %v2337 = vpop.xlane.xlu0 %2336
    %v2338 = vsel %vm785, %v2274, 0.0
    %2339 = vadd.xlane.f32.xlu0 %v2338
    %v2340 = vpop.xlane.xlu0 %2339
    %v2341 = vsel %vm785, %v2275, 0.0
    %2342 = vadd.xlane.f32.xlu0 %v2341
    %v2343 = vpop.xlane.xlu0 %2342
    %v2344 = vsel %vm785, %v2276, 0.0
    %2345 = vadd.xlane.f32.xlu0 %v2344
    %v2346 = vpop.xlane.xlu0 %2345
    %v2347 = vsel %vm785, %v2277, 0.0
    %2348 = vadd.xlane.f32.xlu0 %v2347
    %v2349 = vpop.xlane.xlu0 %2348
    %v2350 = vsel %vm785, %v2278, 0.0
    %2351 = vadd.xlane.f32.xlu0 %v2350
    %v2352 = vpop.xlane.xlu0 %2351
    %v2353 = vsel %vm785, %v2279, 0.0
    %2354 = vadd.xlane.f32.xlu0 %v2353
    %v2355 = vpop.xlane.xlu0 %2354
    %v2356 = vsel %vm785, %v2280, 0.0
    %2357 = vadd.xlane.f32.xlu0 %v2356
    %v2358 = vpop.xlane.xlu0 %2357
    %v2359 = vsel %vm785, %v2281, 0.0
    %2360 = vadd.xlane.f32.xlu0 %v2359
    %v2361 = vpop.xlane.xlu0 %2360
    %v2362 = vsel %vm785, %v2282, 0.0
    %2363 = vadd.xlane.f32.xlu0 %v2362
    %v2364 = vpop.xlane.xlu0 %2363
    %v2365 = vsel %vm785, %v2283, 0.0
    %2366 = vadd.xlane.f32.xlu0 %v2365
    %v2367 = vpop.xlane.xlu0 %2366
    %v2368 = vsel %vm785, %v2284, 0.0
    %2369 = vadd.xlane.f32.xlu0 %v2368
    %v2370 = vpop.xlane.xlu0 %2369
    %v2371 = vsel %vm785, %v2285, 0.0
    %2372 = vadd.xlane.f32.xlu0 %v2371
    %v2373 = vpop.xlane.xlu0 %2372
    %v2374 = vsel %vm785, %v2286, 0.0
    %2375 = vadd.xlane.f32.xlu0 %v2374
    %v2376 = vpop.xlane.xlu0 %2375
    %v2377 = vsel %vm785, %v2287, 0.0
    %2378 = vadd.xlane.f32.xlu0 %v2377
    %v2379 = vpop.xlane.xlu0 %2378
    %v2380 = vsel %vm785, %v2288, 0.0
    %2381 = vadd.xlane.f32.xlu0 %v2380
    %v2382 = vpop.xlane.xlu0 %2381
    %v2383 = vsel %vm785, %v2289, 0.0
    %2384 = vadd.xlane.f32.xlu0 %v2383
    %v2385 = vpop.xlane.xlu0 %2384
    %v2386 = vmul.f32 %v1971, %v2292
    %v2387 = vmul.f32 %v1973, %v2295
    %v2388 = vmul.f32 %v1975, %v2298
    %v2389 = vmul.f32 %v1977, %v2301
    %v2390 = vmul.f32 %v1979, %v2304
    %v2391 = vmul.f32 %v1981, %v2307
    %v2392 = vmul.f32 %v1983, %v2310
    %v2393 = vmul.f32 %v1985, %v2313
    %v2394 = vmul.f32 %v1987, %v2316
    %v2395 = vmul.f32 %v1989, %v2319
    %v2396 = vmul.f32 %v1991, %v2322
    %v2397 = vmul.f32 %v1993, %v2325
    %v2398 = vmul.f32 %v1995, %v2328
    %v2399 = vmul.f32 %v1997, %v2331
    %v2400 = vmul.f32 %v1999, %v2334
    %v2401 = vmul.f32 %v2001, %v2337
    %v2402 = vmul.f32 %v2003, %v2340
    %v2403 = vmul.f32 %v2005, %v2343
    %v2404 = vmul.f32 %v2007, %v2346
    %v2405 = vmul.f32 %v2009, %v2349
    %v2406 = vmul.f32 %v2011, %v2352
    %v2407 = vmul.f32 %v2013, %v2355
    %v2408 = vmul.f32 %v2015, %v2358
    %v2409 = vmul.f32 %v2017, %v2361
    %v2410 = vmul.f32 %v2019, %v2364
    %v2411 = vmul.f32 %v2021, %v2367
    %v2412 = vmul.f32 %v2023, %v2370
    %v2413 = vmul.f32 %v2025, %v2373
    %v2414 = vmul.f32 %v2027, %v2376
    %v2415 = vmul.f32 %v2029, %v2379
    %v2416 = vmul.f32 %v2031, %v2382
    %v2417 = vmul.f32 %v2033, %v2385
    %v2418 = vadd.f32 %v1522, %v2386
    %v2419 = vadd.f32 %v1523, %v2387
    %v2420 = vadd.f32 %v1524, %v2388
    %v2421 = vadd.f32 %v1525, %v2389
    %v2422 = vadd.f32 %v1526, %v2390
    %v2423 = vadd.f32 %v1527, %v2391
    %v2424 = vadd.f32 %v1528, %v2392
    %v2425 = vadd.f32 %v1529, %v2393
    %v2426 = vadd.f32 %v1530, %v2394
    %v2427 = vadd.f32 %v1531, %v2395
    %v2428 = vadd.f32 %v1532, %v2396
    %v2429 = vadd.f32 %v1533, %v2397
    %v2430 = vadd.f32 %v1534, %v2398
    %v2431 = vadd.f32 %v1535, %v2399
    %v2432 = vadd.f32 %v1536, %v2400
    %v2433 = vadd.f32 %v1537, %v2401
    %v2434 = vadd.f32 %v1538, %v2402
    %v2435 = vadd.f32 %v1539, %v2403
    %v2436 = vadd.f32 %v1540, %v2404
    %v2437 = vadd.f32 %v1541, %v2405
    %v2438 = vadd.f32 %v1542, %v2406
    %v2439 = vadd.f32 %v1543, %v2407
    %v2440 = vadd.f32 %v1544, %v2408
    %v2441 = vadd.f32 %v1545, %v2409
    %v2442 = vadd.f32 %v1546, %v2410
    %v2443 = vadd.f32 %v1547, %v2411
    %v2444 = vadd.f32 %v1548, %v2412
    %v2445 = vadd.f32 %v1549, %v2413
    %v2446 = vadd.f32 %v1550, %v2414
    %v2447 = vadd.f32 %v1551, %v2415
    %v2448 = vadd.f32 %v1552, %v2416
    %v2449 = vadd.f32 %v1553, %v2417
    %v2450 = vsel %vm2034, %v640, 0.0
    %v2451 = vsel %vm2035, %v640, 0.0
    %v2452 = vsel %vm2036, %v640, 0.0
    %v2453 = vsel %vm2037, %v640, 0.0
    %v2454 = vsel %vm2038, %v640, 0.0
    %v2455 = vsel %vm2039, %v640, 0.0
    %v2456 = vsel %vm2040, %v640, 0.0
    %v2457 = vsel %vm2041, %v640, 0.0
    %v2458 = vsel %vm2042, %v640, 0.0
    %v2459 = vsel %vm2043, %v640, 0.0
    %v2460 = vsel %vm2044, %v640, 0.0
    %v2461 = vsel %vm2045, %v640, 0.0
    %v2462 = vsel %vm2046, %v640, 0.0
    %v2463 = vsel %vm2047, %v640, 0.0
    %v2464 = vsel %vm2048, %v640, 0.0
    %v2465 = vsel %vm2049, %v640, 0.0
    %v2466 = vsel %vm2050, %v644, 0.0
    %v2467 = vsel %vm2051, %v644, 0.0
    %v2468 = vsel %vm2052, %v644, 0.0
    %v2469 = vsel %vm2053, %v644, 0.0
    %v2470 = vsel %vm2054, %v644, 0.0
    %v2471 = vsel %vm2055, %v644, 0.0
    %v2472 = vsel %vm2056, %v644, 0.0
    %v2473 = vsel %vm2057, %v644, 0.0
    %v2474 = vsel %vm2058, %v644, 0.0
    %v2475 = vsel %vm2059, %v644, 0.0
    %v2476 = vsel %vm2060, %v644, 0.0
    %v2477 = vsel %vm2061, %v644, 0.0
    %v2478 = vsel %vm2062, %v644, 0.0
    %v2479 = vsel %vm2063, %v644, 0.0
    %v2480 = vsel %vm2064, %v644, 0.0
    %v2481 = vsel %vm2065, %v644, 0.0
    %v2482 = vsel %vm785, %v2450, 0.0
    %2483 = vadd.xlane.f32.xlu0 %v2482
    %v2484 = vpop.xlane.xlu0 %2483
    %v2485 = vsel %vm785, %v2451, 0.0
    %2486 = vadd.xlane.f32.xlu0 %v2485
    %v2487 = vpop.xlane.xlu0 %2486
    %v2488 = vsel %vm785, %v2452, 0.0
    %2489 = vadd.xlane.f32.xlu0 %v2488
    %v2490 = vpop.xlane.xlu0 %2489
    %v2491 = vsel %vm785, %v2453, 0.0
    %2492 = vadd.xlane.f32.xlu0 %v2491
    %v2493 = vpop.xlane.xlu0 %2492
    %v2494 = vsel %vm785, %v2454, 0.0
    %2495 = vadd.xlane.f32.xlu0 %v2494
    %v2496 = vpop.xlane.xlu0 %2495
    %v2497 = vsel %vm785, %v2455, 0.0
    %2498 = vadd.xlane.f32.xlu0 %v2497
    %v2499 = vpop.xlane.xlu0 %2498
    %v2500 = vsel %vm785, %v2456, 0.0
    %2501 = vadd.xlane.f32.xlu0 %v2500
    %v2502 = vpop.xlane.xlu0 %2501
    %v2503 = vsel %vm785, %v2457, 0.0
    %2504 = vadd.xlane.f32.xlu0 %v2503
    %v2505 = vpop.xlane.xlu0 %2504
    %v2506 = vsel %vm785, %v2458, 0.0
    %2507 = vadd.xlane.f32.xlu0 %v2506
    %v2508 = vpop.xlane.xlu0 %2507
    %v2509 = vsel %vm785, %v2459, 0.0
    %2510 = vadd.xlane.f32.xlu0 %v2509
    %v2511 = vpop.xlane.xlu0 %2510
    %v2512 = vsel %vm785, %v2460, 0.0
    %2513 = vadd.xlane.f32.xlu0 %v2512
    %v2514 = vpop.xlane.xlu0 %2513
    %v2515 = vsel %vm785, %v2461, 0.0
    %2516 = vadd.xlane.f32.xlu0 %v2515
    %v2517 = vpop.xlane.xlu0 %2516
    %v2518 = vsel %vm785, %v2462, 0.0
    %2519 = vadd.xlane.f32.xlu0 %v2518
    %v2520 = vpop.xlane.xlu0 %2519
    %v2521 = vsel %vm785, %v2463, 0.0
    %2522 = vadd.xlane.f32.xlu0 %v2521
    %v2523 = vpop.xlane.xlu0 %2522
    %v2524 = vsel %vm785, %v2464, 0.0
    %2525 = vadd.xlane.f32.xlu0 %v2524
    %v2526 = vpop.xlane.xlu0 %2525
    %v2527 = vsel %vm785, %v2465, 0.0
    %2528 = vadd.xlane.f32.xlu0 %v2527
    %v2529 = vpop.xlane.xlu0 %2528
    %v2530 = vsel %vm785, %v2466, 0.0
    %2531 = vadd.xlane.f32.xlu0 %v2530
    %v2532 = vpop.xlane.xlu0 %2531
    %v2533 = vsel %vm785, %v2467, 0.0
    %2534 = vadd.xlane.f32.xlu0 %v2533
    %v2535 = vpop.xlane.xlu0 %2534
    %v2536 = vsel %vm785, %v2468, 0.0
    %2537 = vadd.xlane.f32.xlu0 %v2536
    %v2538 = vpop.xlane.xlu0 %2537
    %v2539 = vsel %vm785, %v2469, 0.0
    %2540 = vadd.xlane.f32.xlu0 %v2539
    %v2541 = vpop.xlane.xlu0 %2540
    %v2542 = vsel %vm785, %v2470, 0.0
    %2543 = vadd.xlane.f32.xlu0 %v2542
    %v2544 = vpop.xlane.xlu0 %2543
    %v2545 = vsel %vm785, %v2471, 0.0
    %2546 = vadd.xlane.f32.xlu0 %v2545
    %v2547 = vpop.xlane.xlu0 %2546
    %v2548 = vsel %vm785, %v2472, 0.0
    %2549 = vadd.xlane.f32.xlu0 %v2548
    %v2550 = vpop.xlane.xlu0 %2549
    %v2551 = vsel %vm785, %v2473, 0.0
    %2552 = vadd.xlane.f32.xlu0 %v2551
    %v2553 = vpop.xlane.xlu0 %2552
    %v2554 = vsel %vm785, %v2474, 0.0
    %2555 = vadd.xlane.f32.xlu0 %v2554
    %v2556 = vpop.xlane.xlu0 %2555
    %v2557 = vsel %vm785, %v2475, 0.0
    %2558 = vadd.xlane.f32.xlu0 %v2557
    %v2559 = vpop.xlane.xlu0 %2558
    %v2560 = vsel %vm785, %v2476, 0.0
    %2561 = vadd.xlane.f32.xlu0 %v2560
    %v2562 = vpop.xlane.xlu0 %2561
    %v2563 = vsel %vm785, %v2477, 0.0
    %2564 = vadd.xlane.f32.xlu0 %v2563
    %v2565 = vpop.xlane.xlu0 %2564
    %v2566 = vsel %vm785, %v2478, 0.0
    %2567 = vadd.xlane.f32.xlu0 %v2566
    %v2568 = vpop.xlane.xlu0 %2567
    %v2569 = vsel %vm785, %v2479, 0.0
    %2570 = vadd.xlane.f32.xlu0 %v2569
    %v2571 = vpop.xlane.xlu0 %2570
    %v2572 = vsel %vm785, %v2480, 0.0
    %2573 = vadd.xlane.f32.xlu0 %v2572
    %v2574 = vpop.xlane.xlu0 %2573
    %v2575 = vsel %vm785, %v2481, 0.0
    %2576 = vadd.xlane.f32.xlu0 %v2575
    %v2577 = vpop.xlane.xlu0 %2576
    %v2578 = vmul.f32 %v1971, %v2484
    %v2579 = vmul.f32 %v1973, %v2487
    %v2580 = vmul.f32 %v1975, %v2490
    %v2581 = vmul.f32 %v1977, %v2493
    %v2582 = vmul.f32 %v1979, %v2496
    %v2583 = vmul.f32 %v1981, %v2499
    %v2584 = vmul.f32 %v1983, %v2502
    %v2585 = vmul.f32 %v1985, %v2505
    %v2586 = vmul.f32 %v1987, %v2508
    %v2587 = vmul.f32 %v1989, %v2511
    %v2588 = vmul.f32 %v1991, %v2514
    %v2589 = vmul.f32 %v1993, %v2517
    %v2590 = vmul.f32 %v1995, %v2520
    %v2591 = vmul.f32 %v1997, %v2523
    %v2592 = vmul.f32 %v1999, %v2526
    %v2593 = vmul.f32 %v2001, %v2529
    %v2594 = vmul.f32 %v2003, %v2532
    %v2595 = vmul.f32 %v2005, %v2535
    %v2596 = vmul.f32 %v2007, %v2538
    %v2597 = vmul.f32 %v2009, %v2541
    %v2598 = vmul.f32 %v2011, %v2544
    %v2599 = vmul.f32 %v2013, %v2547
    %v2600 = vmul.f32 %v2015, %v2550
    %v2601 = vmul.f32 %v2017, %v2553
    %v2602 = vmul.f32 %v2019, %v2556
    %v2603 = vmul.f32 %v2021, %v2559
    %v2604 = vmul.f32 %v2023, %v2562
    %v2605 = vmul.f32 %v2025, %v2565
    %v2606 = vmul.f32 %v2027, %v2568
    %v2607 = vmul.f32 %v2029, %v2571
    %v2608 = vmul.f32 %v2031, %v2574
    %v2609 = vmul.f32 %v2033, %v2577
    %v2610 = vadd.f32 %v1714, %v2578
    %v2611 = vadd.f32 %v1715, %v2579
    %v2612 = vadd.f32 %v1716, %v2580
    %v2613 = vadd.f32 %v1717, %v2581
    %v2614 = vadd.f32 %v1718, %v2582
    %v2615 = vadd.f32 %v1719, %v2583
    %v2616 = vadd.f32 %v1720, %v2584
    %v2617 = vadd.f32 %v1721, %v2585
    %v2618 = vadd.f32 %v1722, %v2586
    %v2619 = vadd.f32 %v1723, %v2587
    %v2620 = vadd.f32 %v1724, %v2588
    %v2621 = vadd.f32 %v1725, %v2589
    %v2622 = vadd.f32 %v1726, %v2590
    %v2623 = vadd.f32 %v1727, %v2591
    %v2624 = vadd.f32 %v1728, %v2592
    %v2625 = vadd.f32 %v1729, %v2593
    %v2626 = vadd.f32 %v1730, %v2594
    %v2627 = vadd.f32 %v1731, %v2595
    %v2628 = vadd.f32 %v1732, %v2596
    %v2629 = vadd.f32 %v1733, %v2597
    %v2630 = vadd.f32 %v1734, %v2598
    %v2631 = vadd.f32 %v1735, %v2599
    %v2632 = vadd.f32 %v1736, %v2600
    %v2633 = vadd.f32 %v1737, %v2601
    %v2634 = vadd.f32 %v1738, %v2602
    %v2635 = vadd.f32 %v1739, %v2603
    %v2636 = vadd.f32 %v1740, %v2604
    %v2637 = vadd.f32 %v1741, %v2605
    %v2638 = vadd.f32 %v1742, %v2606
    %v2639 = vadd.f32 %v1743, %v2607
    %v2640 = vadd.f32 %v1744, %v2608
    %v2641 = vadd.f32 %v1745, %v2609
    %v2642 = vadd.f32 %v1746, %v1971
    %v2643 = vadd.f32 %v1747, %v1973
    %v2644 = vadd.f32 %v1748, %v1975
    %v2645 = vadd.f32 %v1749, %v1977
    %v2646 = vadd.f32 %v1750, %v1979
    %v2647 = vadd.f32 %v1751, %v1981
    %v2648 = vadd.f32 %v1752, %v1983
    %v2649 = vadd.f32 %v1753, %v1985
    %v2650 = vadd.f32 %v1754, %v1987
    %v2651 = vadd.f32 %v1755, %v1989
    %v2652 = vadd.f32 %v1756, %v1991
    %v2653 = vadd.f32 %v1757, %v1993
    %v2654 = vadd.f32 %v1758, %v1995
    %v2655 = vadd.f32 %v1759, %v1997
    %v2656 = vadd.f32 %v1760, %v1999
    %v2657 = vadd.f32 %v1761, %v2001
    %v2658 = vadd.f32 %v1762, %v2003
    %v2659 = vadd.f32 %v1763, %v2005
    %v2660 = vadd.f32 %v1764, %v2007
    %v2661 = vadd.f32 %v1765, %v2009
    %v2662 = vadd.f32 %v1766, %v2011
    %v2663 = vadd.f32 %v1767, %v2013
    %v2664 = vadd.f32 %v1768, %v2015
    %v2665 = vadd.f32 %v1769, %v2017
    %v2666 = vadd.f32 %v1770, %v2019
    %v2667 = vadd.f32 %v1771, %v2021
    %v2668 = vadd.f32 %v1772, %v2023
    %v2669 = vadd.f32 %v1773, %v2025
    %v2670 = vadd.f32 %v1774, %v2027
    %v2671 = vadd.f32 %v1775, %v2029
    %v2672 = vadd.f32 %v1776, %v2031
    %v2673 = vadd.f32 %v1777, %v2033
    %vm2674 = vcmp.gt.f32.partialorder %v753, %v1844
    %vm2675 = vcmp.gt.f32.partialorder %v754, %v1847
    %vm2676 = vcmp.gt.f32.partialorder %v755, %v1850
    %vm2677 = vcmp.gt.f32.partialorder %v756, %v1853
    %vm2678 = vcmp.gt.f32.partialorder %v757, %v1856
    %vm2679 = vcmp.gt.f32.partialorder %v758, %v1859
    %vm2680 = vcmp.gt.f32.partialorder %v759, %v1862
    %vm2681 = vcmp.gt.f32.partialorder %v760, %v1865
    %vm2682 = vcmp.gt.f32.partialorder %v761, %v1868
    %vm2683 = vcmp.gt.f32.partialorder %v762, %v1871
    %vm2684 = vcmp.gt.f32.partialorder %v763, %v1874
    %vm2685 = vcmp.gt.f32.partialorder %v764, %v1877
    %vm2686 = vcmp.gt.f32.partialorder %v765, %v1880
    %vm2687 = vcmp.gt.f32.partialorder %v766, %v1883
    %vm2688 = vcmp.gt.f32.partialorder %v767, %v1886
    %vm2689 = vcmp.gt.f32.partialorder %v768, %v1889
    %vm2690 = vcmp.gt.f32.partialorder %v769, %v1892
    %vm2691 = vcmp.gt.f32.partialorder %v770, %v1895
    %vm2692 = vcmp.gt.f32.partialorder %v771, %v1898
    %vm2693 = vcmp.gt.f32.partialorder %v772, %v1901
    %vm2694 = vcmp.gt.f32.partialorder %v773, %v1904
    %vm2695 = vcmp.gt.f32.partialorder %v774, %v1907
    %vm2696 = vcmp.gt.f32.partialorder %v775, %v1910
    %vm2697 = vcmp.gt.f32.partialorder %v776, %v1913
    %vm2698 = vcmp.gt.f32.partialorder %v777, %v1916
    %vm2699 = vcmp.gt.f32.partialorder %v778, %v1919
    %vm2700 = vcmp.gt.f32.partialorder %v779, %v1922
    %vm2701 = vcmp.gt.f32.partialorder %v780, %v1925
    %vm2702 = vcmp.gt.f32.partialorder %v781, %v1928
    %vm2703 = vcmp.gt.f32.partialorder %v782, %v1931
    %vm2704 = vcmp.gt.f32.partialorder %v783, %v1934
    %vm2705 = vcmp.gt.f32.partialorder %v784, %v1937
    %v2706 = vsel %vm2674, %v753, inf
    %v2707 = vsel %vm2675, %v754, inf
    %v2708 = vsel %vm2676, %v755, inf
    %v2709 = vsel %vm2677, %v756, inf
    %v2710 = vsel %vm2678, %v757, inf
    %v2711 = vsel %vm2679, %v758, inf
    %v2712 = vsel %vm2680, %v759, inf
    %v2713 = vsel %vm2681, %v760, inf
    %v2714 = vsel %vm2682, %v761, inf
    %v2715 = vsel %vm2683, %v762, inf
    %v2716 = vsel %vm2684, %v763, inf
    %v2717 = vsel %vm2685, %v764, inf
    %v2718 = vsel %vm2686, %v765, inf
    %v2719 = vsel %vm2687, %v766, inf
    %v2720 = vsel %vm2688, %v767, inf
    %v2721 = vsel %vm2689, %v768, inf
    %v2722 = vsel %vm2690, %v769, inf
    %v2723 = vsel %vm2691, %v770, inf
    %v2724 = vsel %vm2692, %v771, inf
    %v2725 = vsel %vm2693, %v772, inf
    %v2726 = vsel %vm2694, %v773, inf
    %v2727 = vsel %vm2695, %v774, inf
    %v2728 = vsel %vm2696, %v775, inf
    %v2729 = vsel %vm2697, %v776, inf
    %v2730 = vsel %vm2698, %v777, inf
    %v2731 = vsel %vm2699, %v778, inf
    %v2732 = vsel %vm2700, %v779, inf
    %v2733 = vsel %vm2701, %v780, inf
    %v2734 = vsel %vm2702, %v781, inf
    %v2735 = vsel %vm2703, %v782, inf
    %v2736 = vsel %vm2704, %v783, inf
    %v2737 = vsel %vm2705, %v784, inf
    %v2738 = vsel %vm785, %v2706, inf
    %2739 = vmin.xlane.f32.xlu0 %v2738
    %v2740 = vpop.xlane.xlu0 %2739
    %v2741 = vsel %vm785, %v2707, inf
    %2742 = vmin.xlane.f32.xlu0 %v2741
    %v2743 = vpop.xlane.xlu0 %2742
    %v2744 = vsel %vm785, %v2708, inf
    %2745 = vmin.xlane.f32.xlu0 %v2744
    %v2746 = vpop.xlane.xlu0 %2745
    %v2747 = vsel %vm785, %v2709, inf
    %2748 = vmin.xlane.f32.xlu0 %v2747
    %v2749 = vpop.xlane.xlu0 %2748
    %v2750 = vsel %vm785, %v2710, inf
    %2751 = vmin.xlane.f32.xlu0 %v2750
    %v2752 = vpop.xlane.xlu0 %2751
    %v2753 = vsel %vm785, %v2711, inf
    %2754 = vmin.xlane.f32.xlu0 %v2753
    %v2755 = vpop.xlane.xlu0 %2754
    %v2756 = vsel %vm785, %v2712, inf
    %2757 = vmin.xlane.f32.xlu0 %v2756
    %v2758 = vpop.xlane.xlu0 %2757
    %v2759 = vsel %vm785, %v2713, inf
    %2760 = vmin.xlane.f32.xlu0 %v2759
    %v2761 = vpop.xlane.xlu0 %2760
    %v2762 = vsel %vm785, %v2714, inf
    %2763 = vmin.xlane.f32.xlu0 %v2762
    %v2764 = vpop.xlane.xlu0 %2763
    %v2765 = vsel %vm785, %v2715, inf
    %2766 = vmin.xlane.f32.xlu0 %v2765
    %v2767 = vpop.xlane.xlu0 %2766
    %v2768 = vsel %vm785, %v2716, inf
    %2769 = vmin.xlane.f32.xlu0 %v2768
    %v2770 = vpop.xlane.xlu0 %2769
    %v2771 = vsel %vm785, %v2717, inf
    %2772 = vmin.xlane.f32.xlu0 %v2771
    %v2773 = vpop.xlane.xlu0 %2772
    %v2774 = vsel %vm785, %v2718, inf
    %2775 = vmin.xlane.f32.xlu0 %v2774
    %v2776 = vpop.xlane.xlu0 %2775
    %v2777 = vsel %vm785, %v2719, inf
    %2778 = vmin.xlane.f32.xlu0 %v2777
    %v2779 = vpop.xlane.xlu0 %2778
    %v2780 = vsel %vm785, %v2720, inf
    %2781 = vmin.xlane.f32.xlu0 %v2780
    %v2782 = vpop.xlane.xlu0 %2781
    %v2783 = vsel %vm785, %v2721, inf
    %2784 = vmin.xlane.f32.xlu0 %v2783
    %v2785 = vpop.xlane.xlu0 %2784
    %v2786 = vsel %vm785, %v2722, inf
    %2787 = vmin.xlane.f32.xlu0 %v2786
    %v2788 = vpop.xlane.xlu0 %2787
    %v2789 = vsel %vm785, %v2723, inf
    %2790 = vmin.xlane.f32.xlu0 %v2789
    %v2791 = vpop.xlane.xlu0 %2790
    %v2792 = vsel %vm785, %v2724, inf
    %2793 = vmin.xlane.f32.xlu0 %v2792
    %v2794 = vpop.xlane.xlu0 %2793
    %v2795 = vsel %vm785, %v2725, inf
    %2796 = vmin.xlane.f32.xlu0 %v2795
    %v2797 = vpop.xlane.xlu0 %2796
    %v2798 = vsel %vm785, %v2726, inf
    %2799 = vmin.xlane.f32.xlu0 %v2798
    %v2800 = vpop.xlane.xlu0 %2799
    %v2801 = vsel %vm785, %v2727, inf
    %2802 = vmin.xlane.f32.xlu0 %v2801
    %v2803 = vpop.xlane.xlu0 %2802
    %v2804 = vsel %vm785, %v2728, inf
    %2805 = vmin.xlane.f32.xlu0 %v2804
    %v2806 = vpop.xlane.xlu0 %2805
    %v2807 = vsel %vm785, %v2729, inf
    %2808 = vmin.xlane.f32.xlu0 %v2807
    %v2809 = vpop.xlane.xlu0 %2808
    %v2810 = vsel %vm785, %v2730, inf
    %2811 = vmin.xlane.f32.xlu0 %v2810
    %v2812 = vpop.xlane.xlu0 %2811
    %v2813 = vsel %vm785, %v2731, inf
    %2814 = vmin.xlane.f32.xlu0 %v2813
    %v2815 = vpop.xlane.xlu0 %2814
    %v2816 = vsel %vm785, %v2732, inf
    %2817 = vmin.xlane.f32.xlu0 %v2816
    %v2818 = vpop.xlane.xlu0 %2817
    %v2819 = vsel %vm785, %v2733, inf
    %2820 = vmin.xlane.f32.xlu0 %v2819
    %v2821 = vpop.xlane.xlu0 %2820
    %v2822 = vsel %vm785, %v2734, inf
    %2823 = vmin.xlane.f32.xlu0 %v2822
    %v2824 = vpop.xlane.xlu0 %2823
    %v2825 = vsel %vm785, %v2735, inf
    %2826 = vmin.xlane.f32.xlu0 %v2825
    %v2827 = vpop.xlane.xlu0 %2826
    %v2828 = vsel %vm785, %v2736, inf
    %2829 = vmin.xlane.f32.xlu0 %v2828
    %v2830 = vpop.xlane.xlu0 %2829
    %v2831 = vsel %vm785, %v2737, inf
    %2832 = vmin.xlane.f32.xlu0 %v2831
    %v2833 = vpop.xlane.xlu0 %2832
    %v2834 = vsub.f32 %v788, %v2740
    %v2835 = vsub.f32 %v791, %v2743
    %v2836 = vsub.f32 %v794, %v2746
    %v2837 = vsub.f32 %v797, %v2749
    %v2838 = vsub.f32 %v800, %v2752
    %v2839 = vsub.f32 %v803, %v2755
    %v2840 = vsub.f32 %v806, %v2758
    %v2841 = vsub.f32 %v809, %v2761
    %v2842 = vsub.f32 %v812, %v2764
    %v2843 = vsub.f32 %v815, %v2767
    %v2844 = vsub.f32 %v818, %v2770
    %v2845 = vsub.f32 %v821, %v2773
    %v2846 = vsub.f32 %v824, %v2776
    %v2847 = vsub.f32 %v827, %v2779
    %v2848 = vsub.f32 %v830, %v2782
    %v2849 = vsub.f32 %v833, %v2785
    %v2850 = vsub.f32 %v836, %v2788
    %v2851 = vsub.f32 %v839, %v2791
    %v2852 = vsub.f32 %v842, %v2794
    %v2853 = vsub.f32 %v845, %v2797
    %v2854 = vsub.f32 %v848, %v2800
    %v2855 = vsub.f32 %v851, %v2803
    %v2856 = vsub.f32 %v854, %v2806
    %v2857 = vsub.f32 %v857, %v2809
    %v2858 = vsub.f32 %v860, %v2812
    %v2859 = vsub.f32 %v863, %v2815
    %v2860 = vsub.f32 %v866, %v2818
    %v2861 = vsub.f32 %v869, %v2821
    %v2862 = vsub.f32 %v872, %v2824
    %v2863 = vsub.f32 %v875, %v2827
    %v2864 = vsub.f32 %v878, %v2830
    %v2865 = vsub.f32 %v881, %v2833
    %v2866 = vmul.f32 %v2834, 1.442695
    %v2867 = vpow.pop %v2866
    %v2868 = vmul.f32 %v2835, 1.442695
    %v2869 = vpow.pop %v2868
    %v2870 = vmul.f32 %v2836, 1.442695
    %v2871 = vpow.pop %v2870
    %v2872 = vmul.f32 %v2837, 1.442695
    %v2873 = vpow.pop %v2872
    %v2874 = vmul.f32 %v2838, 1.442695
    %v2875 = vpow.pop %v2874
    %v2876 = vmul.f32 %v2839, 1.442695
    %v2877 = vpow.pop %v2876
    %v2878 = vmul.f32 %v2840, 1.442695
    %v2879 = vpow.pop %v2878
    %v2880 = vmul.f32 %v2841, 1.442695
    %v2881 = vpow.pop %v2880
    %v2882 = vmul.f32 %v2842, 1.442695
    %v2883 = vpow.pop %v2882
    %v2884 = vmul.f32 %v2843, 1.442695
    %v2885 = vpow.pop %v2884
    %v2886 = vmul.f32 %v2844, 1.442695
    %v2887 = vpow.pop %v2886
    %v2888 = vmul.f32 %v2845, 1.442695
    %v2889 = vpow.pop %v2888
    %v2890 = vmul.f32 %v2846, 1.442695
    %v2891 = vpow.pop %v2890
    %v2892 = vmul.f32 %v2847, 1.442695
    %v2893 = vpow.pop %v2892
    %v2894 = vmul.f32 %v2848, 1.442695
    %v2895 = vpow.pop %v2894
    %v2896 = vmul.f32 %v2849, 1.442695
    %v2897 = vpow.pop %v2896
    %v2898 = vmul.f32 %v2850, 1.442695
    %v2899 = vpow.pop %v2898
    %v2900 = vmul.f32 %v2851, 1.442695
    %v2901 = vpow.pop %v2900
    %v2902 = vmul.f32 %v2852, 1.442695
    %v2903 = vpow.pop %v2902
    %v2904 = vmul.f32 %v2853, 1.442695
    %v2905 = vpow.pop %v2904
    %v2906 = vmul.f32 %v2854, 1.442695
    %v2907 = vpow.pop %v2906
    %v2908 = vmul.f32 %v2855, 1.442695
    %v2909 = vpow.pop %v2908
    %v2910 = vmul.f32 %v2856, 1.442695
    %v2911 = vpow.pop %v2910
    %v2912 = vmul.f32 %v2857, 1.442695
    %v2913 = vpow.pop %v2912
    %v2914 = vmul.f32 %v2858, 1.442695
    %v2915 = vpow.pop %v2914
    %v2916 = vmul.f32 %v2859, 1.442695
    %v2917 = vpow.pop %v2916
    %v2918 = vmul.f32 %v2860, 1.442695
    %v2919 = vpow.pop %v2918
    %v2920 = vmul.f32 %v2861, 1.442695
    %v2921 = vpow.pop %v2920
    %v2922 = vmul.f32 %v2862, 1.442695
    %v2923 = vpow.pop %v2922
    %v2924 = vmul.f32 %v2863, 1.442695
    %v2925 = vpow.pop %v2924
    %v2926 = vmul.f32 %v2864, 1.442695
    %v2927 = vpow.pop %v2926
    %v2928 = vmul.f32 %v2865, 1.442695
    %v2929 = vpow.pop %v2928
    %vm2930 = vcmp.eq.f32.partialorder %v753, %v2740
    %vm2931 = vcmp.eq.f32.partialorder %v754, %v2743
    %vm2932 = vcmp.eq.f32.partialorder %v755, %v2746
    %vm2933 = vcmp.eq.f32.partialorder %v756, %v2749
    %vm2934 = vcmp.eq.f32.partialorder %v757, %v2752
    %vm2935 = vcmp.eq.f32.partialorder %v758, %v2755
    %vm2936 = vcmp.eq.f32.partialorder %v759, %v2758
    %vm2937 = vcmp.eq.f32.partialorder %v760, %v2761
    %vm2938 = vcmp.eq.f32.partialorder %v761, %v2764
    %vm2939 = vcmp.eq.f32.partialorder %v762, %v2767
    %vm2940 = vcmp.eq.f32.partialorder %v763, %v2770
    %vm2941 = vcmp.eq.f32.partialorder %v764, %v2773
    %vm2942 = vcmp.eq.f32.partialorder %v765, %v2776
    %vm2943 = vcmp.eq.f32.partialorder %v766, %v2779
    %vm2944 = vcmp.eq.f32.partialorder %v767, %v2782
    %vm2945 = vcmp.eq.f32.partialorder %v768, %v2785
    %vm2946 = vcmp.eq.f32.partialorder %v769, %v2788
    %vm2947 = vcmp.eq.f32.partialorder %v770, %v2791
    %vm2948 = vcmp.eq.f32.partialorder %v771, %v2794
    %vm2949 = vcmp.eq.f32.partialorder %v772, %v2797
    %vm2950 = vcmp.eq.f32.partialorder %v773, %v2800
    %vm2951 = vcmp.eq.f32.partialorder %v774, %v2803
    %vm2952 = vcmp.eq.f32.partialorder %v775, %v2806
    %vm2953 = vcmp.eq.f32.partialorder %v776, %v2809
    %vm2954 = vcmp.eq.f32.partialorder %v777, %v2812
    %vm2955 = vcmp.eq.f32.partialorder %v778, %v2815
    %vm2956 = vcmp.eq.f32.partialorder %v779, %v2818
    %vm2957 = vcmp.eq.f32.partialorder %v780, %v2821
    %vm2958 = vcmp.eq.f32.partialorder %v781, %v2824
    %vm2959 = vcmp.eq.f32.partialorder %v782, %v2827
    %vm2960 = vcmp.eq.f32.partialorder %v783, %v2830
    %vm2961 = vcmp.eq.f32.partialorder %v784, %v2833
    %v2962 = vsel %vm2930, %v210, 0.0
    %v2963 = vsel %vm2931, %v210, 0.0
    %v2964 = vsel %vm2932, %v210, 0.0
    %v2965 = vsel %vm2933, %v210, 0.0
    %v2966 = vsel %vm2934, %v210, 0.0
    %v2967 = vsel %vm2935, %v210, 0.0
    %v2968 = vsel %vm2936, %v210, 0.0
    %v2969 = vsel %vm2937, %v210, 0.0
    %v2970 = vsel %vm2938, %v210, 0.0
    %v2971 = vsel %vm2939, %v210, 0.0
    %v2972 = vsel %vm2940, %v210, 0.0
    %v2973 = vsel %vm2941, %v210, 0.0
    %v2974 = vsel %vm2942, %v210, 0.0
    %v2975 = vsel %vm2943, %v210, 0.0
    %v2976 = vsel %vm2944, %v210, 0.0
    %v2977 = vsel %vm2945, %v210, 0.0
    %v2978 = vsel %vm2946, %v214, 0.0
    %v2979 = vsel %vm2947, %v214, 0.0
    %v2980 = vsel %vm2948, %v214, 0.0
    %v2981 = vsel %vm2949, %v214, 0.0
    %v2982 = vsel %vm2950, %v214, 0.0
    %v2983 = vsel %vm2951, %v214, 0.0
    %v2984 = vsel %vm2952, %v214, 0.0
    %v2985 = vsel %vm2953, %v214, 0.0
    %v2986 = vsel %vm2954, %v214, 0.0
    %v2987 = vsel %vm2955, %v214, 0.0
    %v2988 = vsel %vm2956, %v214, 0.0
    %v2989 = vsel %vm2957, %v214, 0.0
    %v2990 = vsel %vm2958, %v214, 0.0
    %v2991 = vsel %vm2959, %v214, 0.0
    %v2992 = vsel %vm2960, %v214, 0.0
    %v2993 = vsel %vm2961, %v214, 0.0
    %v2994 = vsel %vm785, %v2962, 0.0
    %2995 = vadd.xlane.f32.xlu0 %v2994
    %v2996 = vpop.xlane.xlu0 %2995
    %v2997 = vsel %vm785, %v2963, 0.0
    %2998 = vadd.xlane.f32.xlu0 %v2997
    %v2999 = vpop.xlane.xlu0 %2998
    %v3000 = vsel %vm785, %v2964, 0.0
    %3001 = vadd.xlane.f32.xlu0 %v3000
    %v3002 = vpop.xlane.xlu0 %3001
    %v3003 = vsel %vm785, %v2965, 0.0
    %3004 = vadd.xlane.f32.xlu0 %v3003
    %v3005 = vpop.xlane.xlu0 %3004
    %v3006 = vsel %vm785, %v2966, 0.0
    %3007 = vadd.xlane.f32.xlu0 %v3006
    %v3008 = vpop.xlane.xlu0 %3007
    %v3009 = vsel %vm785, %v2967, 0.0
    %3010 = vadd.xlane.f32.xlu0 %v3009
    %v3011 = vpop.xlane.xlu0 %3010
    %v3012 = vsel %vm785, %v2968, 0.0
    %3013 = vadd.xlane.f32.xlu0 %v3012
    %v3014 = vpop.xlane.xlu0 %3013
    %v3015 = vsel %vm785, %v2969, 0.0
    %3016 = vadd.xlane.f32.xlu0 %v3015
    %v3017 = vpop.xlane.xlu0 %3016
    %v3018 = vsel %vm785, %v2970, 0.0
    %3019 = vadd.xlane.f32.xlu0 %v3018
    %v3020 = vpop.xlane.xlu0 %3019
    %v3021 = vsel %vm785, %v2971, 0.0
    %3022 = vadd.xlane.f32.xlu0 %v3021
    %v3023 = vpop.xlane.xlu0 %3022
    %v3024 = vsel %vm785, %v2972, 0.0
    %3025 = vadd.xlane.f32.xlu0 %v3024
    %v3026 = vpop.xlane.xlu0 %3025
    %v3027 = vsel %vm785, %v2973, 0.0
    %3028 = vadd.xlane.f32.xlu0 %v3027
    %v3029 = vpop.xlane.xlu0 %3028
    %v3030 = vsel %vm785, %v2974, 0.0
    %3031 = vadd.xlane.f32.xlu0 %v3030
    %v3032 = vpop.xlane.xlu0 %3031
    %v3033 = vsel %vm785, %v2975, 0.0
    %3034 = vadd.xlane.f32.xlu0 %v3033
    %v3035 = vpop.xlane.xlu0 %3034
    %v3036 = vsel %vm785, %v2976, 0.0
    %3037 = vadd.xlane.f32.xlu0 %v3036
    %v3038 = vpop.xlane.xlu0 %3037
    %v3039 = vsel %vm785, %v2977, 0.0
    %3040 = vadd.xlane.f32.xlu0 %v3039
    %v3041 = vpop.xlane.xlu0 %3040
    %v3042 = vsel %vm785, %v2978, 0.0
    %3043 = vadd.xlane.f32.xlu0 %v3042
    %v3044 = vpop.xlane.xlu0 %3043
    %v3045 = vsel %vm785, %v2979, 0.0
    %3046 = vadd.xlane.f32.xlu0 %v3045
    %v3047 = vpop.xlane.xlu0 %3046
    %v3048 = vsel %vm785, %v2980, 0.0
    %3049 = vadd.xlane.f32.xlu0 %v3048
    %v3050 = vpop.xlane.xlu0 %3049
    %v3051 = vsel %vm785, %v2981, 0.0
    %3052 = vadd.xlane.f32.xlu0 %v3051
    %v3053 = vpop.xlane.xlu0 %3052
    %v3054 = vsel %vm785, %v2982, 0.0
    %3055 = vadd.xlane.f32.xlu0 %v3054
    %v3056 = vpop.xlane.xlu0 %3055
    %v3057 = vsel %vm785, %v2983, 0.0
    %3058 = vadd.xlane.f32.xlu0 %v3057
    %v3059 = vpop.xlane.xlu0 %3058
    %v3060 = vsel %vm785, %v2984, 0.0
    %3061 = vadd.xlane.f32.xlu0 %v3060
    %v3062 = vpop.xlane.xlu0 %3061
    %v3063 = vsel %vm785, %v2985, 0.0
    %3064 = vadd.xlane.f32.xlu0 %v3063
    %v3065 = vpop.xlane.xlu0 %3064
    %v3066 = vsel %vm785, %v2986, 0.0
    %3067 = vadd.xlane.f32.xlu0 %v3066
    %v3068 = vpop.xlane.xlu0 %3067
    %v3069 = vsel %vm785, %v2987, 0.0
    %3070 = vadd.xlane.f32.xlu0 %v3069
    %v3071 = vpop.xlane.xlu0 %3070
    %v3072 = vsel %vm785, %v2988, 0.0
    %3073 = vadd.xlane.f32.xlu0 %v3072
    %v3074 = vpop.xlane.xlu0 %3073
    %v3075 = vsel %vm785, %v2989, 0.0
    %3076 = vadd.xlane.f32.xlu0 %v3075
    %v3077 = vpop.xlane.xlu0 %3076
    %v3078 = vsel %vm785, %v2990, 0.0
    %3079 = vadd.xlane.f32.xlu0 %v3078
    %v3080 = vpop.xlane.xlu0 %3079
    %v3081 = vsel %vm785, %v2991, 0.0
    %3082 = vadd.xlane.f32.xlu0 %v3081
    %v3083 = vpop.xlane.xlu0 %3082
    %v3084 = vsel %vm785, %v2992, 0.0
    %3085 = vadd.xlane.f32.xlu0 %v3084
    %v3086 = vpop.xlane.xlu0 %3085
    %v3087 = vsel %vm785, %v2993, 0.0
    %3088 = vadd.xlane.f32.xlu0 %v3087
    %v3089 = vpop.xlane.xlu0 %3088
    %v3090 = vmul.f32 %v2867, %v2996
    %v3091 = vmul.f32 %v2869, %v2999
    %v3092 = vmul.f32 %v2871, %v3002
    %v3093 = vmul.f32 %v2873, %v3005
    %v3094 = vmul.f32 %v2875, %v3008
    %v3095 = vmul.f32 %v2877, %v3011
    %v3096 = vmul.f32 %v2879, %v3014
    %v3097 = vmul.f32 %v2881, %v3017
    %v3098 = vmul.f32 %v2883, %v3020
    %v3099 = vmul.f32 %v2885, %v3023
    %v3100 = vmul.f32 %v2887, %v3026
    %v3101 = vmul.f32 %v2889, %v3029
    %v3102 = vmul.f32 %v2891, %v3032
    %v3103 = vmul.f32 %v2893, %v3035
    %v3104 = vmul.f32 %v2895, %v3038
    %v3105 = vmul.f32 %v2897, %v3041
    %v3106 = vmul.f32 %v2899, %v3044
    %v3107 = vmul.f32 %v2901, %v3047
    %v3108 = vmul.f32 %v2903, %v3050
    %v3109 = vmul.f32 %v2905, %v3053
    %v3110 = vmul.f32 %v2907, %v3056
    %v3111 = vmul.f32 %v2909, %v3059
    %v3112 = vmul.f32 %v2911, %v3062
    %v3113 = vmul.f32 %v2913, %v3065
    %v3114 = vmul.f32 %v2915, %v3068
    %v3115 = vmul.f32 %v2917, %v3071
    %v3116 = vmul.f32 %v2919, %v3074
    %v3117 = vmul.f32 %v2921, %v3077
    %v3118 = vmul.f32 %v2923, %v3080
    %v3119 = vmul.f32 %v2925, %v3083
    %v3120 = vmul.f32 %v2927, %v3086
    %v3121 = vmul.f32 %v2929, %v3089
    %v3122 = vadd.f32 %v2226, %v3090
    %v3123 = vadd.f32 %v2227, %v3091
    %v3124 = vadd.f32 %v2228, %v3092
    %v3125 = vadd.f32 %v2229, %v3093
    %v3126 = vadd.f32 %v2230, %v3094
    %v3127 = vadd.f32 %v2231, %v3095
    %v3128 = vadd.f32 %v2232, %v3096
    %v3129 = vadd.f32 %v2233, %v3097
    %v3130 = vadd.f32 %v2234, %v3098
    %v3131 = vadd.f32 %v2235, %v3099
    %v3132 = vadd.f32 %v2236, %v3100
    %v3133 = vadd.f32 %v2237, %v3101
    %v3134 = vadd.f32 %v2238, %v3102
    %v3135 = vadd.f32 %v2239, %v3103
    %v3136 = vadd.f32 %v2240, %v3104
    %v3137 = vadd.f32 %v2241, %v3105
    %v3138 = vadd.f32 %v2242, %v3106
    %v3139 = vadd.f32 %v2243, %v3107
    %v3140 = vadd.f32 %v2244, %v3108
    %v3141 = vadd.f32 %v2245, %v3109
    %v3142 = vadd.f32 %v2246, %v3110
    %v3143 = vadd.f32 %v2247, %v3111
    %v3144 = vadd.f32 %v2248, %v3112
    %v3145 = vadd.f32 %v2249, %v3113
    %v3146 = vadd.f32 %v2250, %v3114
    %v3147 = vadd.f32 %v2251, %v3115
    %v3148 = vadd.f32 %v2252, %v3116
    %v3149 = vadd.f32 %v2253, %v3117
    %v3150 = vadd.f32 %v2254, %v3118
    %v3151 = vadd.f32 %v2255, %v3119
    %v3152 = vadd.f32 %v2256, %v3120
    %v3153 = vadd.f32 %v2257, %v3121
    %v3154 = vsel %vm2930, %v409, 0.0
    %v3155 = vsel %vm2931, %v409, 0.0
    %v3156 = vsel %vm2932, %v409, 0.0
    %v3157 = vsel %vm2933, %v409, 0.0
    %v3158 = vsel %vm2934, %v409, 0.0
    %v3159 = vsel %vm2935, %v409, 0.0
    %v3160 = vsel %vm2936, %v409, 0.0
    %v3161 = vsel %vm2937, %v409, 0.0
    %v3162 = vsel %vm2938, %v409, 0.0
    %v3163 = vsel %vm2939, %v409, 0.0
    %v3164 = vsel %vm2940, %v409, 0.0
    %v3165 = vsel %vm2941, %v409, 0.0
    %v3166 = vsel %vm2942, %v409, 0.0
    %v3167 = vsel %vm2943, %v409, 0.0
    %v3168 = vsel %vm2944, %v409, 0.0
    %v3169 = vsel %vm2945, %v409, 0.0
    %v3170 = vsel %vm2946, %v413, 0.0
    %v3171 = vsel %vm2947, %v413, 0.0
    %v3172 = vsel %vm2948, %v413, 0.0
    %v3173 = vsel %vm2949, %v413, 0.0
    %v3174 = vsel %vm2950, %v413, 0.0
    %v3175 = vsel %vm2951, %v413, 0.0
    %v3176 = vsel %vm2952, %v413, 0.0
    %v3177 = vsel %vm2953, %v413, 0.0
    %v3178 = vsel %vm2954, %v413, 0.0
    %v3179 = vsel %vm2955, %v413, 0.0
    %v3180 = vsel %vm2956, %v413, 0.0
    %v3181 = vsel %vm2957, %v413, 0.0
    %v3182 = vsel %vm2958, %v413, 0.0
    %v3183 = vsel %vm2959, %v413, 0.0
    %v3184 = vsel %vm2960, %v413, 0.0
    %v3185 = vsel %vm2961, %v413, 0.0
    %v3186 = vsel %vm785, %v3154, 0.0
    %3187 = vadd.xlane.f32.xlu0 %v3186
    %v3188 = vpop.xlane.xlu0 %3187
    %v3189 = vsel %vm785, %v3155, 0.0
    %3190 = vadd.xlane.f32.xlu0 %v3189
    %v3191 = vpop.xlane.xlu0 %3190
    %v3192 = vsel %vm785, %v3156, 0.0
    %3193 = vadd.xlane.f32.xlu0 %v3192
    %v3194 = vpop.xlane.xlu0 %3193
    %v3195 = vsel %vm785, %v3157, 0.0
    %3196 = vadd.xlane.f32.xlu0 %v3195
    %v3197 = vpop.xlane.xlu0 %3196
    %v3198 = vsel %vm785, %v3158, 0.0
    %3199 = vadd.xlane.f32.xlu0 %v3198
    %v3200 = vpop.xlane.xlu0 %3199
    %v3201 = vsel %vm785, %v3159, 0.0
    %3202 = vadd.xlane.f32.xlu0 %v3201
    %v3203 = vpop.xlane.xlu0 %3202
    %v3204 = vsel %vm785, %v3160, 0.0
    %3205 = vadd.xlane.f32.xlu0 %v3204
    %v3206 = vpop.xlane.xlu0 %3205
    %v3207 = vsel %vm785, %v3161, 0.0
    %3208 = vadd.xlane.f32.xlu0 %v3207
    %v3209 = vpop.xlane.xlu0 %3208
    %v3210 = vsel %vm785, %v3162, 0.0
    %3211 = vadd.xlane.f32.xlu0 %v3210
    %v3212 = vpop.xlane.xlu0 %3211
    %v3213 = vsel %vm785, %v3163, 0.0
    %3214 = vadd.xlane.f32.xlu0 %v3213
    %v3215 = vpop.xlane.xlu0 %3214
    %v3216 = vsel %vm785, %v3164, 0.0
    %3217 = vadd.xlane.f32.xlu0 %v3216
    %v3218 = vpop.xlane.xlu0 %3217
    %v3219 = vsel %vm785, %v3165, 0.0
    %3220 = vadd.xlane.f32.xlu0 %v3219
    %v3221 = vpop.xlane.xlu0 %3220
    %v3222 = vsel %vm785, %v3166, 0.0
    %3223 = vadd.xlane.f32.xlu0 %v3222
    %v3224 = vpop.xlane.xlu0 %3223
    %v3225 = vsel %vm785, %v3167, 0.0
    %3226 = vadd.xlane.f32.xlu0 %v3225
    %v3227 = vpop.xlane.xlu0 %3226
    %v3228 = vsel %vm785, %v3168, 0.0
    %3229 = vadd.xlane.f32.xlu0 %v3228
    %v3230 = vpop.xlane.xlu0 %3229
    %v3231 = vsel %vm785, %v3169, 0.0
    %3232 = vadd.xlane.f32.xlu0 %v3231
    %v3233 = vpop.xlane.xlu0 %3232
    %v3234 = vsel %vm785, %v3170, 0.0
    %3235 = vadd.xlane.f32.xlu0 %v3234
    %v3236 = vpop.xlane.xlu0 %3235
    %v3237 = vsel %vm785, %v3171, 0.0
    %3238 = vadd.xlane.f32.xlu0 %v3237
    %v3239 = vpop.xlane.xlu0 %3238
    %v3240 = vsel %vm785, %v3172, 0.0
    %3241 = vadd.xlane.f32.xlu0 %v3240
    %v3242 = vpop.xlane.xlu0 %3241
    %v3243 = vsel %vm785, %v3173, 0.0
    %3244 = vadd.xlane.f32.xlu0 %v3243
    %v3245 = vpop.xlane.xlu0 %3244
    %v3246 = vsel %vm785, %v3174, 0.0
    %3247 = vadd.xlane.f32.xlu0 %v3246
    %v3248 = vpop.xlane.xlu0 %3247
    %v3249 = vsel %vm785, %v3175, 0.0
    %3250 = vadd.xlane.f32.xlu0 %v3249
    %v3251 = vpop.xlane.xlu0 %3250
    %v3252 = vsel %vm785, %v3176, 0.0
    %3253 = vadd.xlane.f32.xlu0 %v3252
    %v3254 = vpop.xlane.xlu0 %3253
    %v3255 = vsel %vm785, %v3177, 0.0
    %3256 = vadd.xlane.f32.xlu0 %v3255
    %v3257 = vpop.xlane.xlu0 %3256
    %v3258 = vsel %vm785, %v3178, 0.0
    %3259 = vadd.xlane.f32.xlu0 %v3258
    %v3260 = vpop.xlane.xlu0 %3259
    %v3261 = vsel %vm785, %v3179, 0.0
    %3262 = vadd.xlane.f32.xlu0 %v3261
    %v3263 = vpop.xlane.xlu0 %3262
    %v3264 = vsel %vm785, %v3180, 0.0
    %3265 = vadd.xlane.f32.xlu0 %v3264
    %v3266 = vpop.xlane.xlu0 %3265
    %v3267 = vsel %vm785, %v3181, 0.0
    %3268 = vadd.xlane.f32.xlu0 %v3267
    %v3269 = vpop.xlane.xlu0 %3268
    %v3270 = vsel %vm785, %v3182, 0.0
    %3271 = vadd.xlane.f32.xlu0 %v3270
    %v3272 = vpop.xlane.xlu0 %3271
    %v3273 = vsel %vm785, %v3183, 0.0
    %3274 = vadd.xlane.f32.xlu0 %v3273
    %v3275 = vpop.xlane.xlu0 %3274
    %v3276 = vsel %vm785, %v3184, 0.0
    %3277 = vadd.xlane.f32.xlu0 %v3276
    %v3278 = vpop.xlane.xlu0 %3277
    %v3279 = vsel %vm785, %v3185, 0.0
    %3280 = vadd.xlane.f32.xlu0 %v3279
    %v3281 = vpop.xlane.xlu0 %3280
    %v3282 = vmul.f32 %v2867, %v3188
    %v3283 = vmul.f32 %v2869, %v3191
    %v3284 = vmul.f32 %v2871, %v3194
    %v3285 = vmul.f32 %v2873, %v3197
    %v3286 = vmul.f32 %v2875, %v3200
    %v3287 = vmul.f32 %v2877, %v3203
    %v3288 = vmul.f32 %v2879, %v3206
    %v3289 = vmul.f32 %v2881, %v3209
    %v3290 = vmul.f32 %v2883, %v3212
    %v3291 = vmul.f32 %v2885, %v3215
    %v3292 = vmul.f32 %v2887, %v3218
    %v3293 = vmul.f32 %v2889, %v3221
    %v3294 = vmul.f32 %v2891, %v3224
    %v3295 = vmul.f32 %v2893, %v3227
    %v3296 = vmul.f32 %v2895, %v3230
    %v3297 = vmul.f32 %v2897, %v3233
    %v3298 = vmul.f32 %v2899, %v3236
    %v3299 = vmul.f32 %v2901, %v3239
    %v3300 = vmul.f32 %v2903, %v3242
    %v3301 = vmul.f32 %v2905, %v3245
    %v3302 = vmul.f32 %v2907, %v3248
    %v3303 = vmul.f32 %v2909, %v3251
    %v3304 = vmul.f32 %v2911, %v3254
    %v3305 = vmul.f32 %v2913, %v3257
    %v3306 = vmul.f32 %v2915, %v3260
    %v3307 = vmul.f32 %v2917, %v3263
    %v3308 = vmul.f32 %v2919, %v3266
    %v3309 = vmul.f32 %v2921, %v3269
    %v3310 = vmul.f32 %v2923, %v3272
    %v3311 = vmul.f32 %v2925, %v3275
    %v3312 = vmul.f32 %v2927, %v3278
    %v3313 = vmul.f32 %v2929, %v3281
    %v3314 = vadd.f32 %v2418, %v3282
    %v3315 = vadd.f32 %v2419, %v3283
    %v3316 = vadd.f32 %v2420, %v3284
    %v3317 = vadd.f32 %v2421, %v3285
    %v3318 = vadd.f32 %v2422, %v3286
    %v3319 = vadd.f32 %v2423, %v3287
    %v3320 = vadd.f32 %v2424, %v3288
    %v3321 = vadd.f32 %v2425, %v3289
    %v3322 = vadd.f32 %v2426, %v3290
    %v3323 = vadd.f32 %v2427, %v3291
    %v3324 = vadd.f32 %v2428, %v3292
    %v3325 = vadd.f32 %v2429, %v3293
    %v3326 = vadd.f32 %v2430, %v3294
    %v3327 = vadd.f32 %v2431, %v3295
    %v3328 = vadd.f32 %v2432, %v3296
    %v3329 = vadd.f32 %v2433, %v3297
    %v3330 = vadd.f32 %v2434, %v3298
    %v3331 = vadd.f32 %v2435, %v3299
    %v3332 = vadd.f32 %v2436, %v3300
    %v3333 = vadd.f32 %v2437, %v3301
    %v3334 = vadd.f32 %v2438, %v3302
    %v3335 = vadd.f32 %v2439, %v3303
    %v3336 = vadd.f32 %v2440, %v3304
    %v3337 = vadd.f32 %v2441, %v3305
    %v3338 = vadd.f32 %v2442, %v3306
    %v3339 = vadd.f32 %v2443, %v3307
    %v3340 = vadd.f32 %v2444, %v3308
    %v3341 = vadd.f32 %v2445, %v3309
    %v3342 = vadd.f32 %v2446, %v3310
    %v3343 = vadd.f32 %v2447, %v3311
    %v3344 = vadd.f32 %v2448, %v3312
    %v3345 = vadd.f32 %v2449, %v3313
    %v3346 = vsel %vm2930, %v640, 0.0
    %v3347 = vsel %vm2931, %v640, 0.0
    %v3348 = vsel %vm2932, %v640, 0.0
    %v3349 = vsel %vm2933, %v640, 0.0
    %v3350 = vsel %vm2934, %v640, 0.0
    %v3351 = vsel %vm2935, %v640, 0.0
    %v3352 = vsel %vm2936, %v640, 0.0
    %v3353 = vsel %vm2937, %v640, 0.0
    %v3354 = vsel %vm2938, %v640, 0.0
    %v3355 = vsel %vm2939, %v640, 0.0
    %v3356 = vsel %vm2940, %v640, 0.0
    %v3357 = vsel %vm2941, %v640, 0.0
    %v3358 = vsel %vm2942, %v640, 0.0
    %v3359 = vsel %vm2943, %v640, 0.0
    %v3360 = vsel %vm2944, %v640, 0.0
    %v3361 = vsel %vm2945, %v640, 0.0
    %v3362 = vsel %vm2946, %v644, 0.0
    %v3363 = vsel %vm2947, %v644, 0.0
    %v3364 = vsel %vm2948, %v644, 0.0
    %v3365 = vsel %vm2949, %v644, 0.0
    %v3366 = vsel %vm2950, %v644, 0.0
    %v3367 = vsel %vm2951, %v644, 0.0
    %v3368 = vsel %vm2952, %v644, 0.0
    %v3369 = vsel %vm2953, %v644, 0.0
    %v3370 = vsel %vm2954, %v644, 0.0
    %v3371 = vsel %vm2955, %v644, 0.0
    %v3372 = vsel %vm2956, %v644, 0.0
    %v3373 = vsel %vm2957, %v644, 0.0
    %v3374 = vsel %vm2958, %v644, 0.0
    %v3375 = vsel %vm2959, %v644, 0.0
    %v3376 = vsel %vm2960, %v644, 0.0
    %v3377 = vsel %vm2961, %v644, 0.0
    %v3378 = vsel %vm785, %v3346, 0.0
    %3379 = vadd.xlane.f32.xlu0 %v3378
    %v3380 = vpop.xlane.xlu0 %3379
    %v3381 = vsel %vm785, %v3347, 0.0
    %3382 = vadd.xlane.f32.xlu0 %v3381
    %v3383 = vpop.xlane.xlu0 %3382
    %v3384 = vsel %vm785, %v3348, 0.0
    %3385 = vadd.xlane.f32.xlu0 %v3384
    %v3386 = vpop.xlane.xlu0 %3385
    %v3387 = vsel %vm785, %v3349, 0.0
    %3388 = vadd.xlane.f32.xlu0 %v3387
    %v3389 = vpop.xlane.xlu0 %3388
    %v3390 = vsel %vm785, %v3350, 0.0
    %3391 = vadd.xlane.f32.xlu0 %v3390
    %v3392 = vpop.xlane.xlu0 %3391
    %v3393 = vsel %vm785, %v3351, 0.0
    %3394 = vadd.xlane.f32.xlu0 %v3393
    %v3395 = vpop.xlane.xlu0 %3394
    %v3396 = vsel %vm785, %v3352, 0.0
    %3397 = vadd.xlane.f32.xlu0 %v3396
    %v3398 = vpop.xlane.xlu0 %3397
    %v3399 = vsel %vm785, %v3353, 0.0
    %3400 = vadd.xlane.f32.xlu0 %v3399
    %v3401 = vpop.xlane.xlu0 %3400
    %v3402 = vsel %vm785, %v3354, 0.0
    %3403 = vadd.xlane.f32.xlu0 %v3402
    %v3404 = vpop.xlane.xlu0 %3403
    %v3405 = vsel %vm785, %v3355, 0.0
    %3406 = vadd.xlane.f32.xlu0 %v3405
    %v3407 = vpop.xlane.xlu0 %3406
    %v3408 = vsel %vm785, %v3356, 0.0
    %3409 = vadd.xlane.f32.xlu0 %v3408
    %v3410 = vpop.xlane.xlu0 %3409
    %v3411 = vsel %vm785, %v3357, 0.0
    %3412 = vadd.xlane.f32.xlu0 %v3411
    %v3413 = vpop.xlane.xlu0 %3412
    %v3414 = vsel %vm785, %v3358, 0.0
    %3415 = vadd.xlane.f32.xlu0 %v3414
    %v3416 = vpop.xlane.xlu0 %3415
    %v3417 = vsel %vm785, %v3359, 0.0
    %3418 = vadd.xlane.f32.xlu0 %v3417
    %v3419 = vpop.xlane.xlu0 %3418
    %v3420 = vsel %vm785, %v3360, 0.0
    %3421 = vadd.xlane.f32.xlu0 %v3420
    %v3422 = vpop.xlane.xlu0 %3421
    %v3423 = vsel %vm785, %v3361, 0.0
    %3424 = vadd.xlane.f32.xlu0 %v3423
    %v3425 = vpop.xlane.xlu0 %3424
    %v3426 = vsel %vm785, %v3362, 0.0
    %3427 = vadd.xlane.f32.xlu0 %v3426
    %v3428 = vpop.xlane.xlu0 %3427
    %v3429 = vsel %vm785, %v3363, 0.0
    %3430 = vadd.xlane.f32.xlu0 %v3429
    %v3431 = vpop.xlane.xlu0 %3430
    %v3432 = vsel %vm785, %v3364, 0.0
    %3433 = vadd.xlane.f32.xlu0 %v3432
    %v3434 = vpop.xlane.xlu0 %3433
    %v3435 = vsel %vm785, %v3365, 0.0
    %3436 = vadd.xlane.f32.xlu0 %v3435
    %v3437 = vpop.xlane.xlu0 %3436
    %v3438 = vsel %vm785, %v3366, 0.0
    %3439 = vadd.xlane.f32.xlu0 %v3438
    %v3440 = vpop.xlane.xlu0 %3439
    %v3441 = vsel %vm785, %v3367, 0.0
    %3442 = vadd.xlane.f32.xlu0 %v3441
    %v3443 = vpop.xlane.xlu0 %3442
    %v3444 = vsel %vm785, %v3368, 0.0
    %3445 = vadd.xlane.f32.xlu0 %v3444
    %v3446 = vpop.xlane.xlu0 %3445
    %v3447 = vsel %vm785, %v3369, 0.0
    %3448 = vadd.xlane.f32.xlu0 %v3447
    %v3449 = vpop.xlane.xlu0 %3448
    %v3450 = vsel %vm785, %v3370, 0.0
    %3451 = vadd.xlane.f32.xlu0 %v3450
    %v3452 = vpop.xlane.xlu0 %3451
    %v3453 = vsel %vm785, %v3371, 0.0
    %3454 = vadd.xlane.f32.xlu0 %v3453
    %v3455 = vpop.xlane.xlu0 %3454
    %v3456 = vsel %vm785, %v3372, 0.0
    %3457 = vadd.xlane.f32.xlu0 %v3456
    %v3458 = vpop.xlane.xlu0 %3457
    %v3459 = vsel %vm785, %v3373, 0.0
    %3460 = vadd.xlane.f32.xlu0 %v3459
    %v3461 = vpop.xlane.xlu0 %3460
    %v3462 = vsel %vm785, %v3374, 0.0
    %3463 = vadd.xlane.f32.xlu0 %v3462
    %v3464 = vpop.xlane.xlu0 %3463
    %v3465 = vsel %vm785, %v3375, 0.0
    %3466 = vadd.xlane.f32.xlu0 %v3465
    %v3467 = vpop.xlane.xlu0 %3466
    %v3468 = vsel %vm785, %v3376, 0.0
    %3469 = vadd.xlane.f32.xlu0 %v3468
    %v3470 = vpop.xlane.xlu0 %3469
    %v3471 = vsel %vm785, %v3377, 0.0
    %3472 = vadd.xlane.f32.xlu0 %v3471
    %v3473 = vpop.xlane.xlu0 %3472
    %v3474 = vmul.f32 %v2867, %v3380
    %v3475 = vmul.f32 %v2869, %v3383
    %v3476 = vmul.f32 %v2871, %v3386
    %v3477 = vmul.f32 %v2873, %v3389
    %v3478 = vmul.f32 %v2875, %v3392
    %v3479 = vmul.f32 %v2877, %v3395
    %v3480 = vmul.f32 %v2879, %v3398
    %v3481 = vmul.f32 %v2881, %v3401
    %v3482 = vmul.f32 %v2883, %v3404
    %v3483 = vmul.f32 %v2885, %v3407
    %v3484 = vmul.f32 %v2887, %v3410
    %v3485 = vmul.f32 %v2889, %v3413
    %v3486 = vmul.f32 %v2891, %v3416
    %v3487 = vmul.f32 %v2893, %v3419
    %v3488 = vmul.f32 %v2895, %v3422
    %v3489 = vmul.f32 %v2897, %v3425
    %v3490 = vmul.f32 %v2899, %v3428
    %v3491 = vmul.f32 %v2901, %v3431
    %v3492 = vmul.f32 %v2903, %v3434
    %v3493 = vmul.f32 %v2905, %v3437
    %v3494 = vmul.f32 %v2907, %v3440
    %v3495 = vmul.f32 %v2909, %v3443
    %v3496 = vmul.f32 %v2911, %v3446
    %v3497 = vmul.f32 %v2913, %v3449
    %v3498 = vmul.f32 %v2915, %v3452
    %v3499 = vmul.f32 %v2917, %v3455
    %v3500 = vmul.f32 %v2919, %v3458
    %v3501 = vmul.f32 %v2921, %v3461
    %v3502 = vmul.f32 %v2923, %v3464
    %v3503 = vmul.f32 %v2925, %v3467
    %v3504 = vmul.f32 %v2927, %v3470
    %v3505 = vmul.f32 %v2929, %v3473
    %v3506 = vadd.f32 %v2610, %v3474
    %v3507 = vadd.f32 %v2611, %v3475
    %v3508 = vadd.f32 %v2612, %v3476
    %v3509 = vadd.f32 %v2613, %v3477
    %v3510 = vadd.f32 %v2614, %v3478
    %v3511 = vadd.f32 %v2615, %v3479
    %v3512 = vadd.f32 %v2616, %v3480
    %v3513 = vadd.f32 %v2617, %v3481
    %v3514 = vadd.f32 %v2618, %v3482
    %v3515 = vadd.f32 %v2619, %v3483
    %v3516 = vadd.f32 %v2620, %v3484
    %v3517 = vadd.f32 %v2621, %v3485
    %v3518 = vadd.f32 %v2622, %v3486
    %v3519 = vadd.f32 %v2623, %v3487
    %v3520 = vadd.f32 %v2624, %v3488
    %v3521 = vadd.f32 %v2625, %v3489
    %v3522 = vadd.f32 %v2626, %v3490
    %v3523 = vadd.f32 %v2627, %v3491
    %v3524 = vadd.f32 %v2628, %v3492
    %v3525 = vadd.f32 %v2629, %v3493
    %v3526 = vadd.f32 %v2630, %v3494
    %v3527 = vadd.f32 %v2631, %v3495
    %v3528 = vadd.f32 %v2632, %v3496
    %v3529 = vadd.f32 %v2633, %v3497
    %v3530 = vadd.f32 %v2634, %v3498
    %v3531 = vadd.f32 %v2635, %v3499
    %v3532 = vadd.f32 %v2636, %v3500
    %v3533 = vadd.f32 %v2637, %v3501
    %v3534 = vadd.f32 %v2638, %v3502
    %v3535 = vadd.f32 %v2639, %v3503
    %v3536 = vadd.f32 %v2640, %v3504
    %v3537 = vadd.f32 %v2641, %v3505
    %v3538 = vadd.f32 %v2642, %v2867
    %v3539 = vadd.f32 %v2643, %v2869
    %v3540 = vadd.f32 %v2644, %v2871
    %v3541 = vadd.f32 %v2645, %v2873
    %v3542 = vadd.f32 %v2646, %v2875
    %v3543 = vadd.f32 %v2647, %v2877
    %v3544 = vadd.f32 %v2648, %v2879
    %v3545 = vadd.f32 %v2649, %v2881
    %v3546 = vadd.f32 %v2650, %v2883
    %v3547 = vadd.f32 %v2651, %v2885
    %v3548 = vadd.f32 %v2652, %v2887
    %v3549 = vadd.f32 %v2653, %v2889
    %v3550 = vadd.f32 %v2654, %v2891
    %v3551 = vadd.f32 %v2655, %v2893
    %v3552 = vadd.f32 %v2656, %v2895
    %v3553 = vadd.f32 %v2657, %v2897
    %v3554 = vadd.f32 %v2658, %v2899
    %v3555 = vadd.f32 %v2659, %v2901
    %v3556 = vadd.f32 %v2660, %v2903
    %v3557 = vadd.f32 %v2661, %v2905
    %v3558 = vadd.f32 %v2662, %v2907
    %v3559 = vadd.f32 %v2663, %v2909
    %v3560 = vadd.f32 %v2664, %v2911
    %v3561 = vadd.f32 %v2665, %v2913
    %v3562 = vadd.f32 %v2666, %v2915
    %v3563 = vadd.f32 %v2667, %v2917
    %v3564 = vadd.f32 %v2668, %v2919
    %v3565 = vadd.f32 %v2669, %v2921
    %v3566 = vadd.f32 %v2670, %v2923
    %v3567 = vadd.f32 %v2671, %v2925
    %v3568 = vadd.f32 %v2672, %v2927
    %v3569 = vadd.f32 %v2673, %v2929
    %vm3570 = vcmp.gt.f32.partialorder %v753, %v2740
    %vm3571 = vcmp.gt.f32.partialorder %v754, %v2743
    %vm3572 = vcmp.gt.f32.partialorder %v755, %v2746
    %vm3573 = vcmp.gt.f32.partialorder %v756, %v2749
    %vm3574 = vcmp.gt.f32.partialorder %v757, %v2752
    %vm3575 = vcmp.gt.f32.partialorder %v758, %v2755
    %vm3576 = vcmp.gt.f32.partialorder %v759, %v2758
    %vm3577 = vcmp.gt.f32.partialorder %v760, %v2761
    %vm3578 = vcmp.gt.f32.partialorder %v761, %v2764
    %vm3579 = vcmp.gt.f32.partialorder %v762, %v2767
    %vm3580 = vcmp.gt.f32.partialorder %v763, %v2770
    %vm3581 = vcmp.gt.f32.partialorder %v764, %v2773
    %vm3582 = vcmp.gt.f32.partialorder %v765, %v2776
    %vm3583 = vcmp.gt.f32.partialorder %v766, %v2779
    %vm3584 = vcmp.gt.f32.partialorder %v767, %v2782
    %vm3585 = vcmp.gt.f32.partialorder %v768, %v2785
    %vm3586 = vcmp.gt.f32.partialorder %v769, %v2788
    %vm3587 = vcmp.gt.f32.partialorder %v770, %v2791
    %vm3588 = vcmp.gt.f32.partialorder %v771, %v2794
    %vm3589 = vcmp.gt.f32.partialorder %v772, %v2797
    %vm3590 = vcmp.gt.f32.partialorder %v773, %v2800
    %vm3591 = vcmp.gt.f32.partialorder %v774, %v2803
    %vm3592 = vcmp.gt.f32.partialorder %v775, %v2806
    %vm3593 = vcmp.gt.f32.partialorder %v776, %v2809
    %vm3594 = vcmp.gt.f32.partialorder %v777, %v2812
    %vm3595 = vcmp.gt.f32.partialorder %v778, %v2815
    %vm3596 = vcmp.gt.f32.partialorder %v779, %v2818
    %vm3597 = vcmp.gt.f32.partialorder %v780, %v2821
    %vm3598 = vcmp.gt.f32.partialorder %v781, %v2824
    %vm3599 = vcmp.gt.f32.partialorder %v782, %v2827
    %vm3600 = vcmp.gt.f32.partialorder %v783, %v2830
    %vm3601 = vcmp.gt.f32.partialorder %v784, %v2833
    %v3602 = vsel %vm3570, %v753, inf
    %v3603 = vsel %vm3571, %v754, inf
    %v3604 = vsel %vm3572, %v755, inf
    %v3605 = vsel %vm3573, %v756, inf
    %v3606 = vsel %vm3574, %v757, inf
    %v3607 = vsel %vm3575, %v758, inf
    %v3608 = vsel %vm3576, %v759, inf
    %v3609 = vsel %vm3577, %v760, inf
    %v3610 = vsel %vm3578, %v761, inf
    %v3611 = vsel %vm3579, %v762, inf
    %v3612 = vsel %vm3580, %v763, inf
    %v3613 = vsel %vm3581, %v764, inf
    %v3614 = vsel %vm3582, %v765, inf
    %v3615 = vsel %vm3583, %v766, inf
    %v3616 = vsel %vm3584, %v767, inf
    %v3617 = vsel %vm3585, %v768, inf
    %v3618 = vsel %vm3586, %v769, inf
    %v3619 = vsel %vm3587, %v770, inf
    %v3620 = vsel %vm3588, %v771, inf
    %v3621 = vsel %vm3589, %v772, inf
    %v3622 = vsel %vm3590, %v773, inf
    %v3623 = vsel %vm3591, %v774, inf
    %v3624 = vsel %vm3592, %v775, inf
    %v3625 = vsel %vm3593, %v776, inf
    %v3626 = vsel %vm3594, %v777, inf
    %v3627 = vsel %vm3595, %v778, inf
    %v3628 = vsel %vm3596, %v779, inf
    %v3629 = vsel %vm3597, %v780, inf
    %v3630 = vsel %vm3598, %v781, inf
    %v3631 = vsel %vm3599, %v782, inf
    %v3632 = vsel %vm3600, %v783, inf
    %v3633 = vsel %vm3601, %v784, inf
    %v3634 = vsel %vm785, %v3602, inf
    %3635 = vmin.xlane.f32.xlu0 %v3634
    %v3636 = vpop.xlane.xlu0 %3635
    %v3637 = vsel %vm785, %v3603, inf
    %3638 = vmin.xlane.f32.xlu0 %v3637
    %v3639 = vpop.xlane.xlu0 %3638
    %v3640 = vsel %vm785, %v3604, inf
    %3641 = vmin.xlane.f32.xlu0 %v3640
    %v3642 = vpop.xlane.xlu0 %3641
    %v3643 = vsel %vm785, %v3605, inf
    %3644 = vmin.xlane.f32.xlu0 %v3643
    %v3645 = vpop.xlane.xlu0 %3644
    %v3646 = vsel %vm785, %v3606, inf
    %3647 = vmin.xlane.f32.xlu0 %v3646
    %v3648 = vpop.xlane.xlu0 %3647
    %v3649 = vsel %vm785, %v3607, inf
    %3650 = vmin.xlane.f32.xlu0 %v3649
    %v3651 = vpop.xlane.xlu0 %3650
    %v3652 = vsel %vm785, %v3608, inf
    %3653 = vmin.xlane.f32.xlu0 %v3652
    %v3654 = vpop.xlane.xlu0 %3653
    %v3655 = vsel %vm785, %v3609, inf
    %3656 = vmin.xlane.f32.xlu0 %v3655
    %v3657 = vpop.xlane.xlu0 %3656
    %v3658 = vsel %vm785, %v3610, inf
    %3659 = vmin.xlane.f32.xlu0 %v3658
    %v3660 = vpop.xlane.xlu0 %3659
    %v3661 = vsel %vm785, %v3611, inf
    %3662 = vmin.xlane.f32.xlu0 %v3661
    %v3663 = vpop.xlane.xlu0 %3662
    %v3664 = vsel %vm785, %v3612, inf
    %3665 = vmin.xlane.f32.xlu0 %v3664
    %v3666 = vpop.xlane.xlu0 %3665
    %v3667 = vsel %vm785, %v3613, inf
    %3668 = vmin.xlane.f32.xlu0 %v3667
    %v3669 = vpop.xlane.xlu0 %3668
    %v3670 = vsel %vm785, %v3614, inf
    %3671 = vmin.xlane.f32.xlu0 %v3670
    %v3672 = vpop.xlane.xlu0 %3671
    %v3673 = vsel %vm785, %v3615, inf
    %3674 = vmin.xlane.f32.xlu0 %v3673
    %v3675 = vpop.xlane.xlu0 %3674
    %v3676 = vsel %vm785, %v3616, inf
    %3677 = vmin.xlane.f32.xlu0 %v3676
    %v3678 = vpop.xlane.xlu0 %3677
    %v3679 = vsel %vm785, %v3617, inf
    %3680 = vmin.xlane.f32.xlu0 %v3679
    %v3681 = vpop.xlane.xlu0 %3680
    %v3682 = vsel %vm785, %v3618, inf
    %3683 = vmin.xlane.f32.xlu0 %v3682
    %v3684 = vpop.xlane.xlu0 %3683
    %v3685 = vsel %vm785, %v3619, inf
    %3686 = vmin.xlane.f32.xlu0 %v3685
    %v3687 = vpop.xlane.xlu0 %3686
    %v3688 = vsel %vm785, %v3620, inf
    %3689 = vmin.xlane.f32.xlu0 %v3688
    %v3690 = vpop.xlane.xlu0 %3689
    %v3691 = vsel %vm785, %v3621, inf
    %3692 = vmin.xlane.f32.xlu0 %v3691
    %v3693 = vpop.xlane.xlu0 %3692
    %v3694 = vsel %vm785, %v3622, inf
    %3695 = vmin.xlane.f32.xlu0 %v3694
    %v3696 = vpop.xlane.xlu0 %3695
    %v3697 = vsel %vm785, %v3623, inf
    %3698 = vmin.xlane.f32.xlu0 %v3697
    %v3699 = vpop.xlane.xlu0 %3698
    %v3700 = vsel %vm785, %v3624, inf
    %3701 = vmin.xlane.f32.xlu0 %v3700
    %v3702 = vpop.xlane.xlu0 %3701
    %v3703 = vsel %vm785, %v3625, inf
    %3704 = vmin.xlane.f32.xlu0 %v3703
    %v3705 = vpop.xlane.xlu0 %3704
    %v3706 = vsel %vm785, %v3626, inf
    %3707 = vmin.xlane.f32.xlu0 %v3706
    %v3708 = vpop.xlane.xlu0 %3707
    %v3709 = vsel %vm785, %v3627, inf
    %3710 = vmin.xlane.f32.xlu0 %v3709
    %v3711 = vpop.xlane.xlu0 %3710
    %v3712 = vsel %vm785, %v3628, inf
    %3713 = vmin.xlane.f32.xlu0 %v3712
    %v3714 = vpop.xlane.xlu0 %3713
    %v3715 = vsel %vm785, %v3629, inf
    %3716 = vmin.xlane.f32.xlu0 %v3715
    %v3717 = vpop.xlane.xlu0 %3716
    %v3718 = vsel %vm785, %v3630, inf
    %3719 = vmin.xlane.f32.xlu0 %v3718
    %v3720 = vpop.xlane.xlu0 %3719
    %v3721 = vsel %vm785, %v3631, inf
    %3722 = vmin.xlane.f32.xlu0 %v3721
    %v3723 = vpop.xlane.xlu0 %3722
    %v3724 = vsel %vm785, %v3632, inf
    %3725 = vmin.xlane.f32.xlu0 %v3724
    %v3726 = vpop.xlane.xlu0 %3725
    %v3727 = vsel %vm785, %v3633, inf
    %3728 = vmin.xlane.f32.xlu0 %v3727
    %v3729 = vpop.xlane.xlu0 %3728
    %v3730 = vsub.f32 %v788, %v3636
    %v3731 = vsub.f32 %v791, %v3639
    %v3732 = vsub.f32 %v794, %v3642
    %v3733 = vsub.f32 %v797, %v3645
    %v3734 = vsub.f32 %v800, %v3648
    %v3735 = vsub.f32 %v803, %v3651
    %v3736 = vsub.f32 %v806, %v3654
    %v3737 = vsub.f32 %v809, %v3657
    %v3738 = vsub.f32 %v812, %v3660
    %v3739 = vsub.f32 %v815, %v3663
    %v3740 = vsub.f32 %v818, %v3666
    %v3741 = vsub.f32 %v821, %v3669
    %v3742 = vsub.f32 %v824, %v3672
    %v3743 = vsub.f32 %v827, %v3675
    %v3744 = vsub.f32 %v830, %v3678
    %v3745 = vsub.f32 %v833, %v3681
    %v3746 = vsub.f32 %v836, %v3684
    %v3747 = vsub.f32 %v839, %v3687
    %v3748 = vsub.f32 %v842, %v3690
    %v3749 = vsub.f32 %v845, %v3693
    %v3750 = vsub.f32 %v848, %v3696
    %v3751 = vsub.f32 %v851, %v3699
    %v3752 = vsub.f32 %v854, %v3702
    %v3753 = vsub.f32 %v857, %v3705
    %v3754 = vsub.f32 %v860, %v3708
    %v3755 = vsub.f32 %v863, %v3711
    %v3756 = vsub.f32 %v866, %v3714
    %v3757 = vsub.f32 %v869, %v3717
    %v3758 = vsub.f32 %v872, %v3720
    %v3759 = vsub.f32 %v875, %v3723
    %v3760 = vsub.f32 %v878, %v3726
    %v3761 = vsub.f32 %v881, %v3729
    %v3762 = vmul.f32 %v3730, 1.442695
    %v3763 = vpow.pop %v3762
    %v3764 = vmul.f32 %v3731, 1.442695
    %v3765 = vpow.pop %v3764
    %v3766 = vmul.f32 %v3732, 1.442695
    %v3767 = vpow.pop %v3766
    %v3768 = vmul.f32 %v3733, 1.442695
    %v3769 = vpow.pop %v3768
    %v3770 = vmul.f32 %v3734, 1.442695
    %v3771 = vpow.pop %v3770
    %v3772 = vmul.f32 %v3735, 1.442695
    %v3773 = vpow.pop %v3772
    %v3774 = vmul.f32 %v3736, 1.442695
    %v3775 = vpow.pop %v3774
    %v3776 = vmul.f32 %v3737, 1.442695
    %v3777 = vpow.pop %v3776
    %v3778 = vmul.f32 %v3738, 1.442695
    %v3779 = vpow.pop %v3778
    %v3780 = vmul.f32 %v3739, 1.442695
    %v3781 = vpow.pop %v3780
    %v3782 = vmul.f32 %v3740, 1.442695
    %v3783 = vpow.pop %v3782
    %v3784 = vmul.f32 %v3741, 1.442695
    %v3785 = vpow.pop %v3784
    %v3786 = vmul.f32 %v3742, 1.442695
    %v3787 = vpow.pop %v3786
    %v3788 = vmul.f32 %v3743, 1.442695
    %v3789 = vpow.pop %v3788
    %v3790 = vmul.f32 %v3744, 1.442695
    %v3791 = vpow.pop %v3790
    %v3792 = vmul.f32 %v3745, 1.442695
    %v3793 = vpow.pop %v3792
    %v3794 = vmul.f32 %v3746, 1.442695
    %v3795 = vpow.pop %v3794
    %v3796 = vmul.f32 %v3747, 1.442695
    %v3797 = vpow.pop %v3796
    %v3798 = vmul.f32 %v3748, 1.442695
    %v3799 = vpow.pop %v3798
    %v3800 = vmul.f32 %v3749, 1.442695
    %v3801 = vpow.pop %v3800
    %v3802 = vmul.f32 %v3750, 1.442695
    %v3803 = vpow.pop %v3802
    %v3804 = vmul.f32 %v3751, 1.442695
    %v3805 = vpow.pop %v3804
    %v3806 = vmul.f32 %v3752, 1.442695
    %v3807 = vpow.pop %v3806
    %v3808 = vmul.f32 %v3753, 1.442695
    %v3809 = vpow.pop %v3808
    %v3810 = vmul.f32 %v3754, 1.442695
    %v3811 = vpow.pop %v3810
    %v3812 = vmul.f32 %v3755, 1.442695
    %v3813 = vpow.pop %v3812
    %v3814 = vmul.f32 %v3756, 1.442695
    %v3815 = vpow.pop %v3814
    %v3816 = vmul.f32 %v3757, 1.442695
    %v3817 = vpow.pop %v3816
    %v3818 = vmul.f32 %v3758, 1.442695
    %v3819 = vpow.pop %v3818
    %v3820 = vmul.f32 %v3759, 1.442695
    %v3821 = vpow.pop %v3820
    %v3822 = vmul.f32 %v3760, 1.442695
    %v3823 = vpow.pop %v3822
    %v3824 = vmul.f32 %v3761, 1.442695
    %v3825 = vpow.pop %v3824
    %vm3826 = vcmp.eq.f32.partialorder %v753, %v3636
    %vm3827 = vcmp.eq.f32.partialorder %v754, %v3639
    %vm3828 = vcmp.eq.f32.partialorder %v755, %v3642
    %vm3829 = vcmp.eq.f32.partialorder %v756, %v3645
    %vm3830 = vcmp.eq.f32.partialorder %v757, %v3648
    %vm3831 = vcmp.eq.f32.partialorder %v758, %v3651
    %vm3832 = vcmp.eq.f32.partialorder %v759, %v3654
    %vm3833 = vcmp.eq.f32.partialorder %v760, %v3657
    %vm3834 = vcmp.eq.f32.partialorder %v761, %v3660
    %vm3835 = vcmp.eq.f32.partialorder %v762, %v3663
    %vm3836 = vcmp.eq.f32.partialorder %v763, %v3666
    %vm3837 = vcmp.eq.f32.partialorder %v764, %v3669
    %vm3838 = vcmp.eq.f32.partialorder %v765, %v3672
    %vm3839 = vcmp.eq.f32.partialorder %v766, %v3675
    %vm3840 = vcmp.eq.f32.partialorder %v767, %v3678
    %vm3841 = vcmp.eq.f32.partialorder %v768, %v3681
    %vm3842 = vcmp.eq.f32.partialorder %v769, %v3684
    %vm3843 = vcmp.eq.f32.partialorder %v770, %v3687
    %vm3844 = vcmp.eq.f32.partialorder %v771, %v3690
    %vm3845 = vcmp.eq.f32.partialorder %v772, %v3693
    %vm3846 = vcmp.eq.f32.partialorder %v773, %v3696
    %vm3847 = vcmp.eq.f32.partialorder %v774, %v3699
    %vm3848 = vcmp.eq.f32.partialorder %v775, %v3702
    %vm3849 = vcmp.eq.f32.partialorder %v776, %v3705
    %vm3850 = vcmp.eq.f32.partialorder %v777, %v3708
    %vm3851 = vcmp.eq.f32.partialorder %v778, %v3711
    %vm3852 = vcmp.eq.f32.partialorder %v779, %v3714
    %vm3853 = vcmp.eq.f32.partialorder %v780, %v3717
    %vm3854 = vcmp.eq.f32.partialorder %v781, %v3720
    %vm3855 = vcmp.eq.f32.partialorder %v782, %v3723
    %vm3856 = vcmp.eq.f32.partialorder %v783, %v3726
    %vm3857 = vcmp.eq.f32.partialorder %v784, %v3729
    %v3858 = vsel %vm3826, %v210, 0.0
    %v3859 = vsel %vm3827, %v210, 0.0
    %v3860 = vsel %vm3828, %v210, 0.0
    %v3861 = vsel %vm3829, %v210, 0.0
    %v3862 = vsel %vm3830, %v210, 0.0
    %v3863 = vsel %vm3831, %v210, 0.0
    %v3864 = vsel %vm3832, %v210, 0.0
    %v3865 = vsel %vm3833, %v210, 0.0
    %v3866 = vsel %vm3834, %v210, 0.0
    %v3867 = vsel %vm3835, %v210, 0.0
    %v3868 = vsel %vm3836, %v210, 0.0
    %v3869 = vsel %vm3837, %v210, 0.0
    %v3870 = vsel %vm3838, %v210, 0.0
    %v3871 = vsel %vm3839, %v210, 0.0
    %v3872 = vsel %vm3840, %v210, 0.0
    %v3873 = vsel %vm3841, %v210, 0.0
    %v3874 = vsel %vm3842, %v214, 0.0
    %v3875 = vsel %vm3843, %v214, 0.0
    %v3876 = vsel %vm3844, %v214, 0.0
    %v3877 = vsel %vm3845, %v214, 0.0
    %v3878 = vsel %vm3846, %v214, 0.0
    %v3879 = vsel %vm3847, %v214, 0.0
    %v3880 = vsel %vm3848, %v214, 0.0
    %v3881 = vsel %vm3849, %v214, 0.0
    %v3882 = vsel %vm3850, %v214, 0.0
    %v3883 = vsel %vm3851, %v214, 0.0
    %v3884 = vsel %vm3852, %v214, 0.0
    %v3885 = vsel %vm3853, %v214, 0.0
    %v3886 = vsel %vm3854, %v214, 0.0
    %v3887 = vsel %vm3855, %v214, 0.0
    %v3888 = vsel %vm3856, %v214, 0.0
    %v3889 = vsel %vm3857, %v214, 0.0
    %v3890 = vsel %vm785, %v3858, 0.0
    %3891 = vadd.xlane.f32.xlu0 %v3890
    %v3892 = vpop.xlane.xlu0 %3891
    %v3893 = vsel %vm785, %v3859, 0.0
    %3894 = vadd.xlane.f32.xlu0 %v3893
    %v3895 = vpop.xlane.xlu0 %3894
    %v3896 = vsel %vm785, %v3860, 0.0
    %3897 = vadd.xlane.f32.xlu0 %v3896
    %v3898 = vpop.xlane.xlu0 %3897
    %v3899 = vsel %vm785, %v3861, 0.0
    %3900 = vadd.xlane.f32.xlu0 %v3899
    %v3901 = vpop.xlane.xlu0 %3900
    %v3902 = vsel %vm785, %v3862, 0.0
    %3903 = vadd.xlane.f32.xlu0 %v3902
    %v3904 = vpop.xlane.xlu0 %3903
    %v3905 = vsel %vm785, %v3863, 0.0
    %3906 = vadd.xlane.f32.xlu0 %v3905
    %v3907 = vpop.xlane.xlu0 %3906
    %v3908 = vsel %vm785, %v3864, 0.0
    %3909 = vadd.xlane.f32.xlu0 %v3908
    %v3910 = vpop.xlane.xlu0 %3909
    %v3911 = vsel %vm785, %v3865, 0.0
    %3912 = vadd.xlane.f32.xlu0 %v3911
    %v3913 = vpop.xlane.xlu0 %3912
    %v3914 = vsel %vm785, %v3866, 0.0
    %3915 = vadd.xlane.f32.xlu0 %v3914
    %v3916 = vpop.xlane.xlu0 %3915
    %v3917 = vsel %vm785, %v3867, 0.0
    %3918 = vadd.xlane.f32.xlu0 %v3917
    %v3919 = vpop.xlane.xlu0 %3918
    %v3920 = vsel %vm785, %v3868, 0.0
    %3921 = vadd.xlane.f32.xlu0 %v3920
    %v3922 = vpop.xlane.xlu0 %3921
    %v3923 = vsel %vm785, %v3869, 0.0
    %3924 = vadd.xlane.f32.xlu0 %v3923
    %v3925 = vpop.xlane.xlu0 %3924
    %v3926 = vsel %vm785, %v3870, 0.0
    %3927 = vadd.xlane.f32.xlu0 %v3926
    %v3928 = vpop.xlane.xlu0 %3927
    %v3929 = vsel %vm785, %v3871, 0.0
    %3930 = vadd.xlane.f32.xlu0 %v3929
    %v3931 = vpop.xlane.xlu0 %3930
    %v3932 = vsel %vm785, %v3872, 0.0
    %3933 = vadd.xlane.f32.xlu0 %v3932
    %v3934 = vpop.xlane.xlu0 %3933
    %v3935 = vsel %vm785, %v3873, 0.0
    %3936 = vadd.xlane.f32.xlu0 %v3935
    %v3937 = vpop.xlane.xlu0 %3936
    %v3938 = vsel %vm785, %v3874, 0.0
    %3939 = vadd.xlane.f32.xlu0 %v3938
    %v3940 = vpop.xlane.xlu0 %3939
    %v3941 = vsel %vm785, %v3875, 0.0
    %3942 = vadd.xlane.f32.xlu0 %v3941
    %v3943 = vpop.xlane.xlu0 %3942
    %v3944 = vsel %vm785, %v3876, 0.0
    %3945 = vadd.xlane.f32.xlu0 %v3944
    %v3946 = vpop.xlane.xlu0 %3945
    %v3947 = vsel %vm785, %v3877, 0.0
    %3948 = vadd.xlane.f32.xlu0 %v3947
    %v3949 = vpop.xlane.xlu0 %3948
    %v3950 = vsel %vm785, %v3878, 0.0
    %3951 = vadd.xlane.f32.xlu0 %v3950
    %v3952 = vpop.xlane.xlu0 %3951
    %v3953 = vsel %vm785, %v3879, 0.0
    %3954 = vadd.xlane.f32.xlu0 %v3953
    %v3955 = vpop.xlane.xlu0 %3954
    %v3956 = vsel %vm785, %v3880, 0.0
    %3957 = vadd.xlane.f32.xlu0 %v3956
    %v3958 = vpop.xlane.xlu0 %3957
    %v3959 = vsel %vm785, %v3881, 0.0
    %3960 = vadd.xlane.f32.xlu0 %v3959
    %v3961 = vpop.xlane.xlu0 %3960
    %v3962 = vsel %vm785, %v3882, 0.0
    %3963 = vadd.xlane.f32.xlu0 %v3962
    %v3964 = vpop.xlane.xlu0 %3963
    %v3965 = vsel %vm785, %v3883, 0.0
    %3966 = vadd.xlane.f32.xlu0 %v3965
    %v3967 = vpop.xlane.xlu0 %3966
    %v3968 = vsel %vm785, %v3884, 0.0
    %3969 = vadd.xlane.f32.xlu0 %v3968
    %v3970 = vpop.xlane.xlu0 %3969
    %v3971 = vsel %vm785, %v3885, 0.0
    %3972 = vadd.xlane.f32.xlu0 %v3971
    %v3973 = vpop.xlane.xlu0 %3972
    %v3974 = vsel %vm785, %v3886, 0.0
    %3975 = vadd.xlane.f32.xlu0 %v3974
    %v3976 = vpop.xlane.xlu0 %3975
    %v3977 = vsel %vm785, %v3887, 0.0
    %3978 = vadd.xlane.f32.xlu0 %v3977
    %v3979 = vpop.xlane.xlu0 %3978
    %v3980 = vsel %vm785, %v3888, 0.0
    %3981 = vadd.xlane.f32.xlu0 %v3980
    %v3982 = vpop.xlane.xlu0 %3981
    %v3983 = vsel %vm785, %v3889, 0.0
    %3984 = vadd.xlane.f32.xlu0 %v3983
    %v3985 = vpop.xlane.xlu0 %3984
    %v3986 = vmul.f32 %v3763, %v3892
    %v3987 = vmul.f32 %v3765, %v3895
    %v3988 = vmul.f32 %v3767, %v3898
    %v3989 = vmul.f32 %v3769, %v3901
    %v3990 = vmul.f32 %v3771, %v3904
    %v3991 = vmul.f32 %v3773, %v3907
    %v3992 = vmul.f32 %v3775, %v3910
    %v3993 = vmul.f32 %v3777, %v3913
    %v3994 = vmul.f32 %v3779, %v3916
    %v3995 = vmul.f32 %v3781, %v3919
    %v3996 = vmul.f32 %v3783, %v3922
    %v3997 = vmul.f32 %v3785, %v3925
    %v3998 = vmul.f32 %v3787, %v3928
    %v3999 = vmul.f32 %v3789, %v3931
    %v4000 = vmul.f32 %v3791, %v3934
    %v4001 = vmul.f32 %v3793, %v3937
    %v4002 = vmul.f32 %v3795, %v3940
    %v4003 = vmul.f32 %v3797, %v3943
    %v4004 = vmul.f32 %v3799, %v3946
    %v4005 = vmul.f32 %v3801, %v3949
    %v4006 = vmul.f32 %v3803, %v3952
    %v4007 = vmul.f32 %v3805, %v3955
    %v4008 = vmul.f32 %v3807, %v3958
    %v4009 = vmul.f32 %v3809, %v3961
    %v4010 = vmul.f32 %v3811, %v3964
    %v4011 = vmul.f32 %v3813, %v3967
    %v4012 = vmul.f32 %v3815, %v3970
    %v4013 = vmul.f32 %v3817, %v3973
    %v4014 = vmul.f32 %v3819, %v3976
    %v4015 = vmul.f32 %v3821, %v3979
    %v4016 = vmul.f32 %v3823, %v3982
    %v4017 = vmul.f32 %v3825, %v3985
    %v4018 = vadd.f32 %v3122, %v3986
    %v4019 = vadd.f32 %v3123, %v3987
    %v4020 = vadd.f32 %v3124, %v3988
    %v4021 = vadd.f32 %v3125, %v3989
    %v4022 = vadd.f32 %v3126, %v3990
    %v4023 = vadd.f32 %v3127, %v3991
    %v4024 = vadd.f32 %v3128, %v3992
    %v4025 = vadd.f32 %v3129, %v3993
    %v4026 = vadd.f32 %v3130, %v3994
    %v4027 = vadd.f32 %v3131, %v3995
    %v4028 = vadd.f32 %v3132, %v3996
    %v4029 = vadd.f32 %v3133, %v3997
    %v4030 = vadd.f32 %v3134, %v3998
    %v4031 = vadd.f32 %v3135, %v3999
    %v4032 = vadd.f32 %v3136, %v4000
    %v4033 = vadd.f32 %v3137, %v4001
    %v4034 = vadd.f32 %v3138, %v4002
    %v4035 = vadd.f32 %v3139, %v4003
    %v4036 = vadd.f32 %v3140, %v4004
    %v4037 = vadd.f32 %v3141, %v4005
    %v4038 = vadd.f32 %v3142, %v4006
    %v4039 = vadd.f32 %v3143, %v4007
    %v4040 = vadd.f32 %v3144, %v4008
    %v4041 = vadd.f32 %v3145, %v4009
    %v4042 = vadd.f32 %v3146, %v4010
    %v4043 = vadd.f32 %v3147, %v4011
    %v4044 = vadd.f32 %v3148, %v4012
    %v4045 = vadd.f32 %v3149, %v4013
    %v4046 = vadd.f32 %v3150, %v4014
    %v4047 = vadd.f32 %v3151, %v4015
    %v4048 = vadd.f32 %v3152, %v4016
    %v4049 = vadd.f32 %v3153, %v4017
    %v4050 = vsel %vm3826, %v409, 0.0
    %v4051 = vsel %vm3827, %v409, 0.0
    %v4052 = vsel %vm3828, %v409, 0.0
    %v4053 = vsel %vm3829, %v409, 0.0
    %v4054 = vsel %vm3830, %v409, 0.0
    %v4055 = vsel %vm3831, %v409, 0.0
    %v4056 = vsel %vm3832, %v409, 0.0
    %v4057 = vsel %vm3833, %v409, 0.0
    %v4058 = vsel %vm3834, %v409, 0.0
    %v4059 = vsel %vm3835, %v409, 0.0
    %v4060 = vsel %vm3836, %v409, 0.0
    %v4061 = vsel %vm3837, %v409, 0.0
    %v4062 = vsel %vm3838, %v409, 0.0
    %v4063 = vsel %vm3839, %v409, 0.0
    %v4064 = vsel %vm3840, %v409, 0.0
    %v4065 = vsel %vm3841, %v409, 0.0
    %v4066 = vsel %vm3842, %v413, 0.0
    %v4067 = vsel %vm3843, %v413, 0.0
    %v4068 = vsel %vm3844, %v413, 0.0
    %v4069 = vsel %vm3845, %v413, 0.0
    %v4070 = vsel %vm3846, %v413, 0.0
    %v4071 = vsel %vm3847, %v413, 0.0
    %v4072 = vsel %vm3848, %v413, 0.0
    %v4073 = vsel %vm3849, %v413, 0.0
    %v4074 = vsel %vm3850, %v413, 0.0
    %v4075 = vsel %vm3851, %v413, 0.0
    %v4076 = vsel %vm3852, %v413, 0.0
    %v4077 = vsel %vm3853, %v413, 0.0
    %v4078 = vsel %vm3854, %v413, 0.0
    %v4079 = vsel %vm3855, %v413, 0.0
    %v4080 = vsel %vm3856, %v413, 0.0
    %v4081 = vsel %vm3857, %v413, 0.0
    %v4082 = vsel %vm785, %v4050, 0.0
    %4083 = vadd.xlane.f32.xlu0 %v4082
    %v4084 = vpop.xlane.xlu0 %4083
    %v4085 = vsel %vm785, %v4051, 0.0
    %4086 = vadd.xlane.f32.xlu0 %v4085
    %v4087 = vpop.xlane.xlu0 %4086
    %v4088 = vsel %vm785, %v4052, 0.0
    %4089 = vadd.xlane.f32.xlu0 %v4088
    %v4090 = vpop.xlane.xlu0 %4089
    %v4091 = vsel %vm785, %v4053, 0.0
    %4092 = vadd.xlane.f32.xlu0 %v4091
    %v4093 = vpop.xlane.xlu0 %4092
    %v4094 = vsel %vm785, %v4054, 0.0
    %4095 = vadd.xlane.f32.xlu0 %v4094
    %v4096 = vpop.xlane.xlu0 %4095
    %v4097 = vsel %vm785, %v4055, 0.0
    %4098 = vadd.xlane.f32.xlu0 %v4097
    %v4099 = vpop.xlane.xlu0 %4098
    %v4100 = vsel %vm785, %v4056, 0.0
    %4101 = vadd.xlane.f32.xlu0 %v4100
    %v4102 = vpop.xlane.xlu0 %4101
    %v4103 = vsel %vm785, %v4057, 0.0
    %4104 = vadd.xlane.f32.xlu0 %v4103
    %v4105 = vpop.xlane.xlu0 %4104
    %v4106 = vsel %vm785, %v4058, 0.0
    %4107 = vadd.xlane.f32.xlu0 %v4106
    %v4108 = vpop.xlane.xlu0 %4107
    %v4109 = vsel %vm785, %v4059, 0.0
    %4110 = vadd.xlane.f32.xlu0 %v4109
    %v4111 = vpop.xlane.xlu0 %4110
    %v4112 = vsel %vm785, %v4060, 0.0
    %4113 = vadd.xlane.f32.xlu0 %v4112
    %v4114 = vpop.xlane.xlu0 %4113
    %v4115 = vsel %vm785, %v4061, 0.0
    %4116 = vadd.xlane.f32.xlu0 %v4115
    %v4117 = vpop.xlane.xlu0 %4116
    %v4118 = vsel %vm785, %v4062, 0.0
    %4119 = vadd.xlane.f32.xlu0 %v4118
    %v4120 = vpop.xlane.xlu0 %4119
    %v4121 = vsel %vm785, %v4063, 0.0
    %4122 = vadd.xlane.f32.xlu0 %v4121
    %v4123 = vpop.xlane.xlu0 %4122
    %v4124 = vsel %vm785, %v4064, 0.0
    %4125 = vadd.xlane.f32.xlu0 %v4124
    %v4126 = vpop.xlane.xlu0 %4125
    %v4127 = vsel %vm785, %v4065, 0.0
    %4128 = vadd.xlane.f32.xlu0 %v4127
    %v4129 = vpop.xlane.xlu0 %4128
    %v4130 = vsel %vm785, %v4066, 0.0
    %4131 = vadd.xlane.f32.xlu0 %v4130
    %v4132 = vpop.xlane.xlu0 %4131
    %v4133 = vsel %vm785, %v4067, 0.0
    %4134 = vadd.xlane.f32.xlu0 %v4133
    %v4135 = vpop.xlane.xlu0 %4134
    %v4136 = vsel %vm785, %v4068, 0.0
    %4137 = vadd.xlane.f32.xlu0 %v4136
    %v4138 = vpop.xlane.xlu0 %4137
    %v4139 = vsel %vm785, %v4069, 0.0
    %4140 = vadd.xlane.f32.xlu0 %v4139
    %v4141 = vpop.xlane.xlu0 %4140
    %v4142 = vsel %vm785, %v4070, 0.0
    %4143 = vadd.xlane.f32.xlu0 %v4142
    %v4144 = vpop.xlane.xlu0 %4143
    %v4145 = vsel %vm785, %v4071, 0.0
    %4146 = vadd.xlane.f32.xlu0 %v4145
    %v4147 = vpop.xlane.xlu0 %4146
    %v4148 = vsel %vm785, %v4072, 0.0
    %4149 = vadd.xlane.f32.xlu0 %v4148
    %v4150 = vpop.xlane.xlu0 %4149
    %v4151 = vsel %vm785, %v4073, 0.0
    %4152 = vadd.xlane.f32.xlu0 %v4151
    %v4153 = vpop.xlane.xlu0 %4152
    %v4154 = vsel %vm785, %v4074, 0.0
    %4155 = vadd.xlane.f32.xlu0 %v4154
    %v4156 = vpop.xlane.xlu0 %4155
    %v4157 = vsel %vm785, %v4075, 0.0
    %4158 = vadd.xlane.f32.xlu0 %v4157
    %v4159 = vpop.xlane.xlu0 %4158
    %v4160 = vsel %vm785, %v4076, 0.0
    %4161 = vadd.xlane.f32.xlu0 %v4160
    %v4162 = vpop.xlane.xlu0 %4161
    %v4163 = vsel %vm785, %v4077, 0.0
    %4164 = vadd.xlane.f32.xlu0 %v4163
    %v4165 = vpop.xlane.xlu0 %4164
    %v4166 = vsel %vm785, %v4078, 0.0
    %4167 = vadd.xlane.f32.xlu0 %v4166
    %v4168 = vpop.xlane.xlu0 %4167
    %v4169 = vsel %vm785, %v4079, 0.0
    %4170 = vadd.xlane.f32.xlu0 %v4169
    %v4171 = vpop.xlane.xlu0 %4170
    %v4172 = vsel %vm785, %v4080, 0.0
    %4173 = vadd.xlane.f32.xlu0 %v4172
    %v4174 = vpop.xlane.xlu0 %4173
    %v4175 = vsel %vm785, %v4081, 0.0
    %4176 = vadd.xlane.f32.xlu0 %v4175
    %v4177 = vpop.xlane.xlu0 %4176
    %v4178 = vmul.f32 %v3763, %v4084
    %v4179 = vmul.f32 %v3765, %v4087
    %v4180 = vmul.f32 %v3767, %v4090
    %v4181 = vmul.f32 %v3769, %v4093
    %v4182 = vmul.f32 %v3771, %v4096
    %v4183 = vmul.f32 %v3773, %v4099
    %v4184 = vmul.f32 %v3775, %v4102
    %v4185 = vmul.f32 %v3777, %v4105
    %v4186 = vmul.f32 %v3779, %v4108
    %v4187 = vmul.f32 %v3781, %v4111
    %v4188 = vmul.f32 %v3783, %v4114
    %v4189 = vmul.f32 %v3785, %v4117
    %v4190 = vmul.f32 %v3787, %v4120
    %v4191 = vmul.f32 %v3789, %v4123
    %v4192 = vmul.f32 %v3791, %v4126
    %v4193 = vmul.f32 %v3793, %v4129
    %v4194 = vmul.f32 %v3795, %v4132
    %v4195 = vmul.f32 %v3797, %v4135
    %v4196 = vmul.f32 %v3799, %v4138
    %v4197 = vmul.f32 %v3801, %v4141
    %v4198 = vmul.f32 %v3803, %v4144
    %v4199 = vmul.f32 %v3805, %v4147
    %v4200 = vmul.f32 %v3807, %v4150
    %v4201 = vmul.f32 %v3809, %v4153
    %v4202 = vmul.f32 %v3811, %v4156
    %v4203 = vmul.f32 %v3813, %v4159
    %v4204 = vmul.f32 %v3815, %v4162
    %v4205 = vmul.f32 %v3817, %v4165
    %v4206 = vmul.f32 %v3819, %v4168
    %v4207 = vmul.f32 %v3821, %v4171
    %v4208 = vmul.f32 %v3823, %v4174
    %v4209 = vmul.f32 %v3825, %v4177
    %v4210 = vadd.f32 %v3314, %v4178
    %v4211 = vadd.f32 %v3315, %v4179
    %v4212 = vadd.f32 %v3316, %v4180
    %v4213 = vadd.f32 %v3317, %v4181
    %v4214 = vadd.f32 %v3318, %v4182
    %v4215 = vadd.f32 %v3319, %v4183
    %v4216 = vadd.f32 %v3320, %v4184
    %v4217 = vadd.f32 %v3321, %v4185
    %v4218 = vadd.f32 %v3322, %v4186
    %v4219 = vadd.f32 %v3323, %v4187
    %v4220 = vadd.f32 %v3324, %v4188
    %v4221 = vadd.f32 %v3325, %v4189
    %v4222 = vadd.f32 %v3326, %v4190
    %v4223 = vadd.f32 %v3327, %v4191
    %v4224 = vadd.f32 %v3328, %v4192
    %v4225 = vadd.f32 %v3329, %v4193
    %v4226 = vadd.f32 %v3330, %v4194
    %v4227 = vadd.f32 %v3331, %v4195
    %v4228 = vadd.f32 %v3332, %v4196
    %v4229 = vadd.f32 %v3333, %v4197
    %v4230 = vadd.f32 %v3334, %v4198
    %v4231 = vadd.f32 %v3335, %v4199
    %v4232 = vadd.f32 %v3336, %v4200
    %v4233 = vadd.f32 %v3337, %v4201
    %v4234 = vadd.f32 %v3338, %v4202
    %v4235 = vadd.f32 %v3339, %v4203
    %v4236 = vadd.f32 %v3340, %v4204
    %v4237 = vadd.f32 %v3341, %v4205
    %v4238 = vadd.f32 %v3342, %v4206
    %v4239 = vadd.f32 %v3343, %v4207
    %v4240 = vadd.f32 %v3344, %v4208
    %v4241 = vadd.f32 %v3345, %v4209
    %v4242 = vsel %vm3826, %v640, 0.0
    %v4243 = vsel %vm3827, %v640, 0.0
    %v4244 = vsel %vm3828, %v640, 0.0
    %v4245 = vsel %vm3829, %v640, 0.0
    %v4246 = vsel %vm3830, %v640, 0.0
    %v4247 = vsel %vm3831, %v640, 0.0
    %v4248 = vsel %vm3832, %v640, 0.0
    %v4249 = vsel %vm3833, %v640, 0.0
    %v4250 = vsel %vm3834, %v640, 0.0
    %v4251 = vsel %vm3835, %v640, 0.0
    %v4252 = vsel %vm3836, %v640, 0.0
    %v4253 = vsel %vm3837, %v640, 0.0
    %v4254 = vsel %vm3838, %v640, 0.0
    %v4255 = vsel %vm3839, %v640, 0.0
    %v4256 = vsel %vm3840, %v640, 0.0
    %v4257 = vsel %vm3841, %v640, 0.0
    %v4258 = vsel %vm3842, %v644, 0.0
    %v4259 = vsel %vm3843, %v644, 0.0
    %v4260 = vsel %vm3844, %v644, 0.0
    %v4261 = vsel %vm3845, %v644, 0.0
    %v4262 = vsel %vm3846, %v644, 0.0
    %v4263 = vsel %vm3847, %v644, 0.0
    %v4264 = vsel %vm3848, %v644, 0.0
    %v4265 = vsel %vm3849, %v644, 0.0
    %v4266 = vsel %vm3850, %v644, 0.0
    %v4267 = vsel %vm3851, %v644, 0.0
    %v4268 = vsel %vm3852, %v644, 0.0
    %v4269 = vsel %vm3853, %v644, 0.0
    %v4270 = vsel %vm3854, %v644, 0.0
    %v4271 = vsel %vm3855, %v644, 0.0
    %v4272 = vsel %vm3856, %v644, 0.0
    %v4273 = vsel %vm3857, %v644, 0.0
    %v4274 = vsel %vm785, %v4242, 0.0
    %4275 = vadd.xlane.f32.xlu0 %v4274
    %v4276 = vpop.xlane.xlu0 %4275
    %v4277 = vsel %vm785, %v4243, 0.0
    %4278 = vadd.xlane.f32.xlu0 %v4277
    %v4279 = vpop.xlane.xlu0 %4278
    %v4280 = vsel %vm785, %v4244, 0.0
    %4281 = vadd.xlane.f32.xlu0 %v4280
    %v4282 = vpop.xlane.xlu0 %4281
    %v4283 = vsel %vm785, %v4245, 0.0
    %4284 = vadd.xlane.f32.xlu0 %v4283
    %v4285 = vpop.xlane.xlu0 %4284
    %v4286 = vsel %vm785, %v4246, 0.0
    %4287 = vadd.xlane.f32.xlu0 %v4286
    %v4288 = vpop.xlane.xlu0 %4287
    %v4289 = vsel %vm785, %v4247, 0.0
    %4290 = vadd.xlane.f32.xlu0 %v4289
    %v4291 = vpop.xlane.xlu0 %4290
    %v4292 = vsel %vm785, %v4248, 0.0
    %4293 = vadd.xlane.f32.xlu0 %v4292
    %v4294 = vpop.xlane.xlu0 %4293
    %v4295 = vsel %vm785, %v4249, 0.0
    %4296 = vadd.xlane.f32.xlu0 %v4295
    %v4297 = vpop.xlane.xlu0 %4296
    %v4298 = vsel %vm785, %v4250, 0.0
    %4299 = vadd.xlane.f32.xlu0 %v4298
    %v4300 = vpop.xlane.xlu0 %4299
    %v4301 = vsel %vm785, %v4251, 0.0
    %4302 = vadd.xlane.f32.xlu0 %v4301
    %v4303 = vpop.xlane.xlu0 %4302
    %v4304 = vsel %vm785, %v4252, 0.0
    %4305 = vadd.xlane.f32.xlu0 %v4304
    %v4306 = vpop.xlane.xlu0 %4305
    %v4307 = vsel %vm785, %v4253, 0.0
    %4308 = vadd.xlane.f32.xlu0 %v4307
    %v4309 = vpop.xlane.xlu0 %4308
    %v4310 = vsel %vm785, %v4254, 0.0
    %4311 = vadd.xlane.f32.xlu0 %v4310
    %v4312 = vpop.xlane.xlu0 %4311
    %v4313 = vsel %vm785, %v4255, 0.0
    %4314 = vadd.xlane.f32.xlu0 %v4313
    %v4315 = vpop.xlane.xlu0 %4314
    %v4316 = vsel %vm785, %v4256, 0.0
    %4317 = vadd.xlane.f32.xlu0 %v4316
    %v4318 = vpop.xlane.xlu0 %4317
    %v4319 = vsel %vm785, %v4257, 0.0
    %4320 = vadd.xlane.f32.xlu0 %v4319
    %v4321 = vpop.xlane.xlu0 %4320
    %v4322 = vsel %vm785, %v4258, 0.0
    %4323 = vadd.xlane.f32.xlu0 %v4322
    %v4324 = vpop.xlane.xlu0 %4323
    %v4325 = vsel %vm785, %v4259, 0.0
    %4326 = vadd.xlane.f32.xlu0 %v4325
    %v4327 = vpop.xlane.xlu0 %4326
    %v4328 = vsel %vm785, %v4260, 0.0
    %4329 = vadd.xlane.f32.xlu0 %v4328
    %v4330 = vpop.xlane.xlu0 %4329
    %v4331 = vsel %vm785, %v4261, 0.0
    %4332 = vadd.xlane.f32.xlu0 %v4331
    %v4333 = vpop.xlane.xlu0 %4332
    %v4334 = vsel %vm785, %v4262, 0.0
    %4335 = vadd.xlane.f32.xlu0 %v4334
    %v4336 = vpop.xlane.xlu0 %4335
    %v4337 = vsel %vm785, %v4263, 0.0
    %4338 = vadd.xlane.f32.xlu0 %v4337
    %v4339 = vpop.xlane.xlu0 %4338
    %v4340 = vsel %vm785, %v4264, 0.0
    %4341 = vadd.xlane.f32.xlu0 %v4340
    %v4342 = vpop.xlane.xlu0 %4341
    %v4343 = vsel %vm785, %v4265, 0.0
    %4344 = vadd.xlane.f32.xlu0 %v4343
    %v4345 = vpop.xlane.xlu0 %4344
    %v4346 = vsel %vm785, %v4266, 0.0
    %4347 = vadd.xlane.f32.xlu0 %v4346
    %v4348 = vpop.xlane.xlu0 %4347
    %v4349 = vsel %vm785, %v4267, 0.0
    %4350 = vadd.xlane.f32.xlu0 %v4349
    %v4351 = vpop.xlane.xlu0 %4350
    %v4352 = vsel %vm785, %v4268, 0.0
    %4353 = vadd.xlane.f32.xlu0 %v4352
    %v4354 = vpop.xlane.xlu0 %4353
    %v4355 = vsel %vm785, %v4269, 0.0
    %4356 = vadd.xlane.f32.xlu0 %v4355
    %v4357 = vpop.xlane.xlu0 %4356
    %v4358 = vsel %vm785, %v4270, 0.0
    %4359 = vadd.xlane.f32.xlu0 %v4358
    %v4360 = vpop.xlane.xlu0 %4359
    %v4361 = vsel %vm785, %v4271, 0.0
    %4362 = vadd.xlane.f32.xlu0 %v4361
    %v4363 = vpop.xlane.xlu0 %4362
    %v4364 = vsel %vm785, %v4272, 0.0
    %4365 = vadd.xlane.f32.xlu0 %v4364
    %v4366 = vpop.xlane.xlu0 %4365
    %v4367 = vsel %vm785, %v4273, 0.0
    %4368 = vadd.xlane.f32.xlu0 %v4367
    %v4369 = vpop.xlane.xlu0 %4368
    %v4370 = vmul.f32 %v3763, %v4276
    %v4371 = vmul.f32 %v3765, %v4279
    %v4372 = vmul.f32 %v3767, %v4282
    %v4373 = vmul.f32 %v3769, %v4285
    %v4374 = vmul.f32 %v3771, %v4288
    %v4375 = vmul.f32 %v3773, %v4291
    %v4376 = vmul.f32 %v3775, %v4294
    %v4377 = vmul.f32 %v3777, %v4297
    %v4378 = vmul.f32 %v3779, %v4300
    %v4379 = vmul.f32 %v3781, %v4303
    %v4380 = vmul.f32 %v3783, %v4306
    %v4381 = vmul.f32 %v3785, %v4309
    %v4382 = vmul.f32 %v3787, %v4312
    %v4383 = vmul.f32 %v3789, %v4315
    %v4384 = vmul.f32 %v3791, %v4318
    %v4385 = vmul.f32 %v3793, %v4321
    %v4386 = vmul.f32 %v3795, %v4324
    %v4387 = vmul.f32 %v3797, %v4327
    %v4388 = vmul.f32 %v3799, %v4330
    %v4389 = vmul.f32 %v3801, %v4333
    %v4390 = vmul.f32 %v3803, %v4336
    %v4391 = vmul.f32 %v3805, %v4339
    %v4392 = vmul.f32 %v3807, %v4342
    %v4393 = vmul.f32 %v3809, %v4345
    %v4394 = vmul.f32 %v3811, %v4348
    %v4395 = vmul.f32 %v3813, %v4351
    %v4396 = vmul.f32 %v3815, %v4354
    %v4397 = vmul.f32 %v3817, %v4357
    %v4398 = vmul.f32 %v3819, %v4360
    %v4399 = vmul.f32 %v3821, %v4363
    %v4400 = vmul.f32 %v3823, %v4366
    %v4401 = vmul.f32 %v3825, %v4369
    %v4402 = vadd.f32 %v3506, %v4370
    %v4403 = vadd.f32 %v3507, %v4371
    %v4404 = vadd.f32 %v3508, %v4372
    %v4405 = vadd.f32 %v3509, %v4373
    %v4406 = vadd.f32 %v3510, %v4374
    %v4407 = vadd.f32 %v3511, %v4375
    %v4408 = vadd.f32 %v3512, %v4376
    %v4409 = vadd.f32 %v3513, %v4377
    %v4410 = vadd.f32 %v3514, %v4378
    %v4411 = vadd.f32 %v3515, %v4379
    %v4412 = vadd.f32 %v3516, %v4380
    %v4413 = vadd.f32 %v3517, %v4381
    %v4414 = vadd.f32 %v3518, %v4382
    %v4415 = vadd.f32 %v3519, %v4383
    %v4416 = vadd.f32 %v3520, %v4384
    %v4417 = vadd.f32 %v3521, %v4385
    %v4418 = vadd.f32 %v3522, %v4386
    %v4419 = vadd.f32 %v3523, %v4387
    %v4420 = vadd.f32 %v3524, %v4388
    %v4421 = vadd.f32 %v3525, %v4389
    %v4422 = vadd.f32 %v3526, %v4390
    %v4423 = vadd.f32 %v3527, %v4391
    %v4424 = vadd.f32 %v3528, %v4392
    %v4425 = vadd.f32 %v3529, %v4393
    %v4426 = vadd.f32 %v3530, %v4394
    %v4427 = vadd.f32 %v3531, %v4395
    %v4428 = vadd.f32 %v3532, %v4396
    %v4429 = vadd.f32 %v3533, %v4397
    %v4430 = vadd.f32 %v3534, %v4398
    %v4431 = vadd.f32 %v3535, %v4399
    %v4432 = vadd.f32 %v3536, %v4400
    %v4433 = vadd.f32 %v3537, %v4401
    %v4434 = vadd.f32 %v3538, %v3763
    %v4435 = vadd.f32 %v3539, %v3765
    %v4436 = vadd.f32 %v3540, %v3767
    %v4437 = vadd.f32 %v3541, %v3769
    %v4438 = vadd.f32 %v3542, %v3771
    %v4439 = vadd.f32 %v3543, %v3773
    %v4440 = vadd.f32 %v3544, %v3775
    %v4441 = vadd.f32 %v3545, %v3777
    %v4442 = vadd.f32 %v3546, %v3779
    %v4443 = vadd.f32 %v3547, %v3781
    %v4444 = vadd.f32 %v3548, %v3783
    %v4445 = vadd.f32 %v3549, %v3785
    %v4446 = vadd.f32 %v3550, %v3787
    %v4447 = vadd.f32 %v3551, %v3789
    %v4448 = vadd.f32 %v3552, %v3791
    %v4449 = vadd.f32 %v3553, %v3793
    %v4450 = vadd.f32 %v3554, %v3795
    %v4451 = vadd.f32 %v3555, %v3797
    %v4452 = vadd.f32 %v3556, %v3799
    %v4453 = vadd.f32 %v3557, %v3801
    %v4454 = vadd.f32 %v3558, %v3803
    %v4455 = vadd.f32 %v3559, %v3805
    %v4456 = vadd.f32 %v3560, %v3807
    %v4457 = vadd.f32 %v3561, %v3809
    %v4458 = vadd.f32 %v3562, %v3811
    %v4459 = vadd.f32 %v3563, %v3813
    %v4460 = vadd.f32 %v3564, %v3815
    %v4461 = vadd.f32 %v3565, %v3817
    %v4462 = vadd.f32 %v3566, %v3819
    %v4463 = vadd.f32 %v3567, %v3821
    %v4464 = vadd.f32 %v3568, %v3823
    %v4465 = vadd.f32 %v3569, %v3825
    %v4466 = vrcp.pop %v4434
    %v4467 = vmul.f32 1.0, %v4466
    %v4468 = vrcp.pop %v4435
    %v4469 = vmul.f32 1.0, %v4468
    %v4470 = vrcp.pop %v4436
    %v4471 = vmul.f32 1.0, %v4470
    %v4472 = vrcp.pop %v4437
    %v4473 = vmul.f32 1.0, %v4472
    %v4474 = vrcp.pop %v4438
    %v4475 = vmul.f32 1.0, %v4474
    %v4476 = vrcp.pop %v4439
    %v4477 = vmul.f32 1.0, %v4476
    %v4478 = vrcp.pop %v4440
    %v4479 = vmul.f32 1.0, %v4478
    %v4480 = vrcp.pop %v4441
    %v4481 = vmul.f32 1.0, %v4480
    %v4482 = vrcp.pop %v4442
    %v4483 = vmul.f32 1.0, %v4482
    %v4484 = vrcp.pop %v4443
    %v4485 = vmul.f32 1.0, %v4484
    %v4486 = vrcp.pop %v4444
    %v4487 = vmul.f32 1.0, %v4486
    %v4488 = vrcp.pop %v4445
    %v4489 = vmul.f32 1.0, %v4488
    %v4490 = vrcp.pop %v4446
    %v4491 = vmul.f32 1.0, %v4490
    %v4492 = vrcp.pop %v4447
    %v4493 = vmul.f32 1.0, %v4492
    %v4494 = vrcp.pop %v4448
    %v4495 = vmul.f32 1.0, %v4494
    %v4496 = vrcp.pop %v4449
    %v4497 = vmul.f32 1.0, %v4496
    %v4498 = vrcp.pop %v4450
    %v4499 = vmul.f32 1.0, %v4498
    %v4500 = vrcp.pop %v4451
    %v4501 = vmul.f32 1.0, %v4500
    %v4502 = vrcp.pop %v4452
    %v4503 = vmul.f32 1.0, %v4502
    %v4504 = vrcp.pop %v4453
    %v4505 = vmul.f32 1.0, %v4504
    %v4506 = vrcp.pop %v4454
    %v4507 = vmul.f32 1.0, %v4506
    %v4508 = vrcp.pop %v4455
    %v4509 = vmul.f32 1.0, %v4508
    %v4510 = vrcp.pop %v4456
    %v4511 = vmul.f32 1.0, %v4510
    %v4512 = vrcp.pop %v4457
    %v4513 = vmul.f32 1.0, %v4512
    %v4514 = vrcp.pop %v4458
    %v4515 = vmul.f32 1.0, %v4514
    %v4516 = vrcp.pop %v4459
    %v4517 = vmul.f32 1.0, %v4516
    %v4518 = vrcp.pop %v4460
    %v4519 = vmul.f32 1.0, %v4518
    %v4520 = vrcp.pop %v4461
    %v4521 = vmul.f32 1.0, %v4520
    %v4522 = vrcp.pop %v4462
    %v4523 = vmul.f32 1.0, %v4522
    %v4524 = vrcp.pop %v4463
    %v4525 = vmul.f32 1.0, %v4524
    %v4526 = vrcp.pop %v4464
    %v4527 = vmul.f32 1.0, %v4526
    %v4528 = vrcp.pop %v4465
    %v4529 = vmul.f32 1.0, %v4528
    %v4530 = vmul.f32 %v4018, %v4467
    %v4531 = vmul.f32 %v4019, %v4469
    %v4532 = vmul.f32 %v4020, %v4471
    %v4533 = vmul.f32 %v4021, %v4473
    %v4534 = vmul.f32 %v4022, %v4475
    %v4535 = vmul.f32 %v4023, %v4477
    %v4536 = vmul.f32 %v4024, %v4479
    %v4537 = vmul.f32 %v4025, %v4481
    %v4538 = vmul.f32 %v4026, %v4483
    %v4539 = vmul.f32 %v4027, %v4485
    %v4540 = vmul.f32 %v4028, %v4487
    %v4541 = vmul.f32 %v4029, %v4489
    %v4542 = vmul.f32 %v4030, %v4491
    %v4543 = vmul.f32 %v4031, %v4493
    %v4544 = vmul.f32 %v4032, %v4495
    %v4545 = vmul.f32 %v4033, %v4497
    %v4546 = vmul.f32 %v4034, %v4499
    %v4547 = vmul.f32 %v4035, %v4501
    %v4548 = vmul.f32 %v4036, %v4503
    %v4549 = vmul.f32 %v4037, %v4505
    %v4550 = vmul.f32 %v4038, %v4507
    %v4551 = vmul.f32 %v4039, %v4509
    %v4552 = vmul.f32 %v4040, %v4511
    %v4553 = vmul.f32 %v4041, %v4513
    %v4554 = vmul.f32 %v4042, %v4515
    %v4555 = vmul.f32 %v4043, %v4517
    %v4556 = vmul.f32 %v4044, %v4519
    %v4557 = vmul.f32 %v4045, %v4521
    %v4558 = vmul.f32 %v4046, %v4523
    %v4559 = vmul.f32 %v4047, %v4525
    %v4560 = vmul.f32 %v4048, %v4527
    %v4561 = vmul.f32 %v4049, %v4529
    %v4594 = vlaneseq
    %v4595 = vand.u32 %v4594, 127
    %v4596 = vlaneseq
    %v4597 = vshrl.u32 %v4596, 7
    %v4598 = vsub.s32 %v4595, %v4597
    %v4599 = vrot.slane %v4530, %v4598
    %v4600 = vadd.s32 %v4595, 4294967288
    %v4601 = vlaneseq
    %v4602 = vshrl.u32 %v4601, 7
    %v4603 = vsub.s32 %v4600, %v4602
    %v4604 = vrot.slane %v4531, %v4603
    %vm4605 = vcmask 130112
    %v4606 = vsel %vm4605, %v4604, %v4599
    %v4607 = vadd.s32 %v4595, 4294967280
    %v4608 = vlaneseq
    %v4609 = vshrl.u32 %v4608, 7
    %v4610 = vsub.s32 %v4607, %v4609
    %v4611 = vrot.slane %v4532, %v4610
    %vm4612 = vcmask 195712
    %v4613 = vsel %vm4612, %v4611, %v4606
    %v4614 = vadd.s32 %v4595, 4294967272
    %v4615 = vlaneseq
    %v4616 = vshrl.u32 %v4615, 7
    %v4617 = vsub.s32 %v4614, %v4616
    %v4618 = vrot.slane %v4533, %v4617
    %vm4619 = vcmask 261312
    %v4620 = vsel %vm4619, %v4618, %v4613
    %v4621 = vadd.s32 %v4595, 4294967264
    %v4622 = vlaneseq
    %v4623 = vshrl.u32 %v4622, 7
    %v4624 = vsub.s32 %v4621, %v4623
    %v4625 = vrot.slane %v4534, %v4624
    %vm4626 = vcmask 326912
    %v4627 = vsel %vm4626, %v4625, %v4620
    %v4628 = vadd.s32 %v4595, 4294967256
    %v4629 = vlaneseq
    %v4630 = vshrl.u32 %v4629, 7
    %v4631 = vsub.s32 %v4628, %v4630
    %v4632 = vrot.slane %v4535, %v4631
    %vm4633 = vcmask 392512
    %v4634 = vsel %vm4633, %v4632, %v4627
    %v4635 = vadd.s32 %v4595, 4294967248
    %v4636 = vlaneseq
    %v4637 = vshrl.u32 %v4636, 7
    %v4638 = vsub.s32 %v4635, %v4637
    %v4639 = vrot.slane %v4536, %v4638
    %vm4640 = vcmask 458112
    %v4641 = vsel %vm4640, %v4639, %v4634
    %v4642 = vadd.s32 %v4595, 4294967240
    %v4643 = vlaneseq
    %v4644 = vshrl.u32 %v4643, 7
    %v4645 = vsub.s32 %v4642, %v4644
    %v4646 = vrot.slane %v4537, %v4645
    %vm4647 = vcmask 523712
    %v4648 = vsel %vm4647, %v4646, %v4641
    %v4649 = vadd.s32 %v4595, 4294967232
    %v4650 = vlaneseq
    %v4651 = vshrl.u32 %v4650, 7
    %v4652 = vsub.s32 %v4649, %v4651
    %v4653 = vrot.slane %v4538, %v4652
    %vm4654 = vcmask 589312
    %v4655 = vsel %vm4654, %v4653, %v4648
    %v4656 = vadd.s32 %v4595, 4294967224
    %v4657 = vlaneseq
    %v4658 = vshrl.u32 %v4657, 7
    %v4659 = vsub.s32 %v4656, %v4658
    %v4660 = vrot.slane %v4539, %v4659
    %vm4661 = vcmask 654912
    %v4662 = vsel %vm4661, %v4660, %v4655
    %v4663 = vadd.s32 %v4595, 4294967216
    %v4664 = vlaneseq
    %v4665 = vshrl.u32 %v4664, 7
    %v4666 = vsub.s32 %v4663, %v4665
    %v4667 = vrot.slane %v4540, %v4666
    %vm4668 = vcmask 720512
    %v4669 = vsel %vm4668, %v4667, %v4662
    %v4670 = vadd.s32 %v4595, 4294967208
    %v4671 = vlaneseq
    %v4672 = vshrl.u32 %v4671, 7
    %v4673 = vsub.s32 %v4670, %v4672
    %v4674 = vrot.slane %v4541, %v4673
    %vm4675 = vcmask 786112
    %v4676 = vsel %vm4675, %v4674, %v4669
    %v4677 = vadd.s32 %v4595, 4294967200
    %v4678 = vlaneseq
    %v4679 = vshrl.u32 %v4678, 7
    %v4680 = vsub.s32 %v4677, %v4679
    %v4681 = vrot.slane %v4542, %v4680
    %vm4682 = vcmask 851712
    %v4683 = vsel %vm4682, %v4681, %v4676
    %v4684 = vadd.s32 %v4595, 4294967192
    %v4685 = vlaneseq
    %v4686 = vshrl.u32 %v4685, 7
    %v4687 = vsub.s32 %v4684, %v4686
    %v4688 = vrot.slane %v4543, %v4687
    %vm4689 = vcmask 917312
    %v4690 = vsel %vm4689, %v4688, %v4683
    %v4691 = vadd.s32 %v4595, 4294967184
    %v4692 = vlaneseq
    %v4693 = vshrl.u32 %v4692, 7
    %v4694 = vsub.s32 %v4691, %v4693
    %v4695 = vrot.slane %v4544, %v4694
    %vm4696 = vcmask 982912
    %v4697 = vsel %vm4696, %v4695, %v4690
    %v4698 = vadd.s32 %v4595, 4294967176
    %v4699 = vlaneseq
    %v4700 = vshrl.u32 %v4699, 7
    %v4701 = vsub.s32 %v4698, %v4700
    %v4702 = vrot.slane %v4545, %v4701
    %vm4703 = vcmask 1048512
    %v4704 = vsel %vm4703, %v4702, %v4697
    %v4705 = vlaneseq
    %v4706 = vshrl.u32 %v4705, 7
    %v4707 = vsub.s32 %v4595, %v4706
    %v4708 = vrot.slane %v4546, %v4707
    %v4709 = vlaneseq
    %v4710 = vshrl.u32 %v4709, 7
    %v4711 = vsub.s32 %v4600, %v4710
    %v4712 = vrot.slane %v4547, %v4711
    %v4713 = vsel %vm4605, %v4712, %v4708
    %v4714 = vlaneseq
    %v4715 = vshrl.u32 %v4714, 7
    %v4716 = vsub.s32 %v4607, %v4715
    %v4717 = vrot.slane %v4548, %v4716
    %v4718 = vsel %vm4612, %v4717, %v4713
    %v4719 = vlaneseq
    %v4720 = vshrl.u32 %v4719, 7
    %v4721 = vsub.s32 %v4614, %v4720
    %v4722 = vrot.slane %v4549, %v4721
    %v4723 = vsel %vm4619, %v4722, %v4718
    %v4724 = vlaneseq
    %v4725 = vshrl.u32 %v4724, 7
    %v4726 = vsub.s32 %v4621, %v4725
    %v4727 = vrot.slane %v4550, %v4726
    %v4728 = vsel %vm4626, %v4727, %v4723
    %v4729 = vlaneseq
    %v4730 = vshrl.u32 %v4729, 7
    %v4731 = vsub.s32 %v4628, %v4730
    %v4732 = vrot.slane %v4551, %v4731
    %v4733 = vsel %vm4633, %v4732, %v4728
    %v4734 = vlaneseq
    %v4735 = vshrl.u32 %v4734, 7
    %v4736 = vsub.s32 %v4635, %v4735
    %v4737 = vrot.slane %v4552, %v4736
    %v4738 = vsel %vm4640, %v4737, %v4733
    %v4739 = vlaneseq
    %v4740 = vshrl.u32 %v4739, 7
    %v4741 = vsub.s32 %v4642, %v4740
    %v4742 = vrot.slane %v4553, %v4741
    %v4743 = vsel %vm4647, %v4742, %v4738
    %v4744 = vlaneseq
    %v4745 = vshrl.u32 %v4744, 7
    %v4746 = vsub.s32 %v4649, %v4745
    %v4747 = vrot.slane %v4554, %v4746
    %v4748 = vsel %vm4654, %v4747, %v4743
    %v4749 = vlaneseq
    %v4750 = vshrl.u32 %v4749, 7
    %v4751 = vsub.s32 %v4656, %v4750
    %v4752 = vrot.slane %v4555, %v4751
    %v4753 = vsel %vm4661, %v4752, %v4748
    %v4754 = vlaneseq
    %v4755 = vshrl.u32 %v4754, 7
    %v4756 = vsub.s32 %v4663, %v4755
    %v4757 = vrot.slane %v4556, %v4756
    %v4758 = vsel %vm4668, %v4757, %v4753
    %v4759 = vlaneseq
    %v4760 = vshrl.u32 %v4759, 7
    %v4761 = vsub.s32 %v4670, %v4760
    %v4762 = vrot.slane %v4557, %v4761
    %v4763 = vsel %vm4675, %v4762, %v4758
    %v4764 = vlaneseq
    %v4765 = vshrl.u32 %v4764, 7
    %v4766 = vsub.s32 %v4677, %v4765
    %v4767 = vrot.slane %v4558, %v4766
    %v4768 = vsel %vm4682, %v4767, %v4763
    %v4769 = vlaneseq
    %v4770 = vshrl.u32 %v4769, 7
    %v4771 = vsub.s32 %v4684, %v4770
    %v4772 = vrot.slane %v4559, %v4771
    %v4773 = vsel %vm4689, %v4772, %v4768
    %v4774 = vlaneseq
    %v4775 = vshrl.u32 %v4774, 7
    %v4776 = vsub.s32 %v4691, %v4775
    %v4777 = vrot.slane %v4560, %v4776
    %v4778 = vsel %vm4696, %v4777, %v4773
    %v4779 = vlaneseq
    %v4780 = vshrl.u32 %v4779, 7
    %v4781 = vsub.s32 %v4698, %v4780
    %v4782 = vrot.slane %v4561, %v4781
    %v4783 = vsel %vm4703, %v4782, %v4778
    %vm4784 = vcmask 1041409
    %v4785 = vsel %vm4784, %v4783, %v4704
    %4787 = vst [vmem:[#allocation2] sm:$0x3] %v4785
    %v4788 = vmul.f32 %v4210, %v4467
    %v4789 = vmul.f32 %v4211, %v4469
    %v4790 = vmul.f32 %v4212, %v4471
    %v4791 = vmul.f32 %v4213, %v4473
    %v4792 = vmul.f32 %v4214, %v4475
    %v4793 = vmul.f32 %v4215, %v4477
    %v4794 = vmul.f32 %v4216, %v4479
    %v4795 = vmul.f32 %v4217, %v4481
    %v4796 = vmul.f32 %v4218, %v4483
    %v4797 = vmul.f32 %v4219, %v4485
    %v4798 = vmul.f32 %v4220, %v4487
    %v4799 = vmul.f32 %v4221, %v4489
    %v4800 = vmul.f32 %v4222, %v4491
    %v4801 = vmul.f32 %v4223, %v4493
    %v4802 = vmul.f32 %v4224, %v4495
    %v4803 = vmul.f32 %v4225, %v4497
    %v4804 = vmul.f32 %v4226, %v4499
    %v4805 = vmul.f32 %v4227, %v4501
    %v4806 = vmul.f32 %v4228, %v4503
    %v4807 = vmul.f32 %v4229, %v4505
    %v4808 = vmul.f32 %v4230, %v4507
    %v4809 = vmul.f32 %v4231, %v4509
    %v4810 = vmul.f32 %v4232, %v4511
    %v4811 = vmul.f32 %v4233, %v4513
    %v4812 = vmul.f32 %v4234, %v4515
    %v4813 = vmul.f32 %v4235, %v4517
    %v4814 = vmul.f32 %v4236, %v4519
    %v4815 = vmul.f32 %v4237, %v4521
    %v4816 = vmul.f32 %v4238, %v4523
    %v4817 = vmul.f32 %v4239, %v4525
    %v4818 = vmul.f32 %v4240, %v4527
    %v4819 = vmul.f32 %v4241, %v4529
    %v4852 = vlaneseq
    %v4853 = vshrl.u32 %v4852, 7
    %v4854 = vsub.s32 %v4595, %v4853
    %v4855 = vrot.slane %v4788, %v4854
    %v4856 = vlaneseq
    %v4857 = vshrl.u32 %v4856, 7
    %v4858 = vsub.s32 %v4600, %v4857
    %v4859 = vrot.slane %v4789, %v4858
    %v4860 = vsel %vm4605, %v4859, %v4855
    %v4861 = vlaneseq
    %v4862 = vshrl.u32 %v4861, 7
    %v4863 = vsub.s32 %v4607, %v4862
    %v4864 = vrot.slane %v4790, %v4863
    %v4865 = vsel %vm4612, %v4864, %v4860
    %v4866 = vlaneseq
    %v4867 = vshrl.u32 %v4866, 7
    %v4868 = vsub.s32 %v4614, %v4867
    %v4869 = vrot.slane %v4791, %v4868
    %v4870 = vsel %vm4619, %v4869, %v4865
    %v4871 = vlaneseq
    %v4872 = vshrl.u32 %v4871, 7
    %v4873 = vsub.s32 %v4621, %v4872
    %v4874 = vrot.slane %v4792, %v4873
    %v4875 = vsel %vm4626, %v4874, %v4870
    %v4876 = vlaneseq
    %v4877 = vshrl.u32 %v4876, 7
    %v4878 = vsub.s32 %v4628, %v4877
    %v4879 = vrot.slane %v4793, %v4878
    %v4880 = vsel %vm4633, %v4879, %v4875
    %v4881 = vlaneseq
    %v4882 = vshrl.u32 %v4881, 7
    %v4883 = vsub.s32 %v4635, %v4882
    %v4884 = vrot.slane %v4794, %v4883
    %v4885 = vsel %vm4640, %v4884, %v4880
    %v4886 = vlaneseq
    %v4887 = vshrl.u32 %v4886, 7
    %v4888 = vsub.s32 %v4642, %v4887
    %v4889 = vrot.slane %v4795, %v4888
    %v4890 = vsel %vm4647, %v4889, %v4885
    %v4891 = vlaneseq
    %v4892 = vshrl.u32 %v4891, 7
    %v4893 = vsub.s32 %v4649, %v4892
    %v4894 = vrot.slane %v4796, %v4893
    %v4895 = vsel %vm4654, %v4894, %v4890
    %v4896 = vlaneseq
    %v4897 = vshrl.u32 %v4896, 7
    %v4898 = vsub.s32 %v4656, %v4897
    %v4899 = vrot.slane %v4797, %v4898
    %v4900 = vsel %vm4661, %v4899, %v4895
    %v4901 = vlaneseq
    %v4902 = vshrl.u32 %v4901, 7
    %v4903 = vsub.s32 %v4663, %v4902
    %v4904 = vrot.slane %v4798, %v4903
    %v4905 = vsel %vm4668, %v4904, %v4900
    %v4906 = vlaneseq
    %v4907 = vshrl.u32 %v4906, 7
    %v4908 = vsub.s32 %v4670, %v4907
    %v4909 = vrot.slane %v4799, %v4908
    %v4910 = vsel %vm4675, %v4909, %v4905
    %v4911 = vlaneseq
    %v4912 = vshrl.u32 %v4911, 7
    %v4913 = vsub.s32 %v4677, %v4912
    %v4914 = vrot.slane %v4800, %v4913
    %v4915 = vsel %vm4682, %v4914, %v4910
    %v4916 = vlaneseq
    %v4917 = vshrl.u32 %v4916, 7
    %v4918 = vsub.s32 %v4684, %v4917
    %v4919 = vrot.slane %v4801, %v4918
    %v4920 = vsel %vm4689, %v4919, %v4915
    %v4921 = vlaneseq
    %v4922 = vshrl.u32 %v4921, 7
    %v4923 = vsub.s32 %v4691, %v4922
    %v4924 = vrot.slane %v4802, %v4923
    %v4925 = vsel %vm4696, %v4924, %v4920
    %v4926 = vlaneseq
    %v4927 = vshrl.u32 %v4926, 7
    %v4928 = vsub.s32 %v4698, %v4927
    %v4929 = vrot.slane %v4803, %v4928
    %v4930 = vsel %vm4703, %v4929, %v4925
    %v4931 = vlaneseq
    %v4932 = vshrl.u32 %v4931, 7
    %v4933 = vsub.s32 %v4595, %v4932
    %v4934 = vrot.slane %v4804, %v4933
    %v4935 = vlaneseq
    %v4936 = vshrl.u32 %v4935, 7
    %v4937 = vsub.s32 %v4600, %v4936
    %v4938 = vrot.slane %v4805, %v4937
    %v4939 = vsel %vm4605, %v4938, %v4934
    %v4940 = vlaneseq
    %v4941 = vshrl.u32 %v4940, 7
    %v4942 = vsub.s32 %v4607, %v4941
    %v4943 = vrot.slane %v4806, %v4942
    %v4944 = vsel %vm4612, %v4943, %v4939
    %v4945 = vlaneseq
    %v4946 = vshrl.u32 %v4945, 7
    %v4947 = vsub.s32 %v4614, %v4946
    %v4948 = vrot.slane %v4807, %v4947
    %v4949 = vsel %vm4619, %v4948, %v4944
    %v4950 = vlaneseq
    %v4951 = vshrl.u32 %v4950, 7
    %v4952 = vsub.s32 %v4621, %v4951
    %v4953 = vrot.slane %v4808, %v4952
    %v4954 = vsel %vm4626, %v4953, %v4949
    %v4955 = vlaneseq
    %v4956 = vshrl.u32 %v4955, 7
    %v4957 = vsub.s32 %v4628, %v4956
    %v4958 = vrot.slane %v4809, %v4957
    %v4959 = vsel %vm4633, %v4958, %v4954
    %v4960 = vlaneseq
    %v4961 = vshrl.u32 %v4960, 7
    %v4962 = vsub.s32 %v4635, %v4961
    %v4963 = vrot.slane %v4810, %v4962
    %v4964 = vsel %vm4640, %v4963, %v4959
    %v4965 = vlaneseq
    %v4966 = vshrl.u32 %v4965, 7
    %v4967 = vsub.s32 %v4642, %v4966
    %v4968 = vrot.slane %v4811, %v4967
    %v4969 = vsel %vm4647, %v4968, %v4964
    %v4970 = vlaneseq
    %v4971 = vshrl.u32 %v4970, 7
    %v4972 = vsub.s32 %v4649, %v4971
    %v4973 = vrot.slane %v4812, %v4972
    %v4974 = vsel %vm4654, %v4973, %v4969
    %v4975 = vlaneseq
    %v4976 = vshrl.u32 %v4975, 7
    %v4977 = vsub.s32 %v4656, %v4976
    %v4978 = vrot.slane %v4813, %v4977
    %v4979 = vsel %vm4661, %v4978, %v4974
    %v4980 = vlaneseq
    %v4981 = vshrl.u32 %v4980, 7
    %v4982 = vsub.s32 %v4663, %v4981
    %v4983 = vrot.slane %v4814, %v4982
    %v4984 = vsel %vm4668, %v4983, %v4979
    %v4985 = vlaneseq
    %v4986 = vshrl.u32 %v4985, 7
    %v4987 = vsub.s32 %v4670, %v4986
    %v4988 = vrot.slane %v4815, %v4987
    %v4989 = vsel %vm4675, %v4988, %v4984
    %v4990 = vlaneseq
    %v4991 = vshrl.u32 %v4990, 7
    %v4992 = vsub.s32 %v4677, %v4991
    %v4993 = vrot.slane %v4816, %v4992
    %v4994 = vsel %vm4682, %v4993, %v4989
    %v4995 = vlaneseq
    %v4996 = vshrl.u32 %v4995, 7
    %v4997 = vsub.s32 %v4684, %v4996
    %v4998 = vrot.slane %v4817, %v4997
    %v4999 = vsel %vm4689, %v4998, %v4994
    %v5000 = vlaneseq
    %v5001 = vshrl.u32 %v5000, 7
    %v5002 = vsub.s32 %v4691, %v5001
    %v5003 = vrot.slane %v4818, %v5002
    %v5004 = vsel %vm4696, %v5003, %v4999
    %v5005 = vlaneseq
    %v5006 = vshrl.u32 %v5005, 7
    %v5007 = vsub.s32 %v4698, %v5006
    %v5008 = vrot.slane %v4819, %v5007
    %v5009 = vsel %vm4703, %v5008, %v5004
    %v5010 = vsel %vm4784, %v5009, %v4930
    %s5012 = scalar_lea.vmem [#allocation2], 2
    %5013 = vst [vmem:[%s5012] sm:$0x3] %v5010
    %v5014 = vmul.f32 %v4402, %v4467
    %v5015 = vmul.f32 %v4403, %v4469
    %v5016 = vmul.f32 %v4404, %v4471
    %v5017 = vmul.f32 %v4405, %v4473
    %v5018 = vmul.f32 %v4406, %v4475
    %v5019 = vmul.f32 %v4407, %v4477
    %v5020 = vmul.f32 %v4408, %v4479
    %v5021 = vmul.f32 %v4409, %v4481
    %v5022 = vmul.f32 %v4410, %v4483
    %v5023 = vmul.f32 %v4411, %v4485
    %v5024 = vmul.f32 %v4412, %v4487
    %v5025 = vmul.f32 %v4413, %v4489
    %v5026 = vmul.f32 %v4414, %v4491
    %v5027 = vmul.f32 %v4415, %v4493
    %v5028 = vmul.f32 %v4416, %v4495
    %v5029 = vmul.f32 %v4417, %v4497
    %v5030 = vmul.f32 %v4418, %v4499
    %v5031 = vmul.f32 %v4419, %v4501
    %v5032 = vmul.f32 %v4420, %v4503
    %v5033 = vmul.f32 %v4421, %v4505
    %v5034 = vmul.f32 %v4422, %v4507
    %v5035 = vmul.f32 %v4423, %v4509
    %v5036 = vmul.f32 %v4424, %v4511
    %v5037 = vmul.f32 %v4425, %v4513
    %v5038 = vmul.f32 %v4426, %v4515
    %v5039 = vmul.f32 %v4427, %v4517
    %v5040 = vmul.f32 %v4428, %v4519
    %v5041 = vmul.f32 %v4429, %v4521
    %v5042 = vmul.f32 %v4430, %v4523
    %v5043 = vmul.f32 %v4431, %v4525
    %v5044 = vmul.f32 %v4432, %v4527
    %v5045 = vmul.f32 %v4433, %v4529
    %v5078 = vlaneseq
    %v5079 = vshrl.u32 %v5078, 7
    %v5080 = vsub.s32 %v4595, %v5079
    %v5081 = vrot.slane %v5014, %v5080
    %v5082 = vlaneseq
    %v5083 = vshrl.u32 %v5082, 7
    %v5084 = vsub.s32 %v4600, %v5083
    %v5085 = vrot.slane %v5015, %v5084
    %v5086 = vsel %vm4605, %v5085, %v5081
    %v5087 = vlaneseq
    %v5088 = vshrl.u32 %v5087, 7
    %v5089 = vsub.s32 %v4607, %v5088
    %v5090 = vrot.slane %v5016, %v5089
    %v5091 = vsel %vm4612, %v5090, %v5086
    %v5092 = vlaneseq
    %v5093 = vshrl.u32 %v5092, 7
    %v5094 = vsub.s32 %v4614, %v5093
    %v5095 = vrot.slane %v5017, %v5094
    %v5096 = vsel %vm4619, %v5095, %v5091
    %v5097 = vlaneseq
    %v5098 = vshrl.u32 %v5097, 7
    %v5099 = vsub.s32 %v4621, %v5098
    %v5100 = vrot.slane %v5018, %v5099
    %v5101 = vsel %vm4626, %v5100, %v5096
    %v5102 = vlaneseq
    %v5103 = vshrl.u32 %v5102, 7
    %v5104 = vsub.s32 %v4628, %v5103
    %v5105 = vrot.slane %v5019, %v5104
    %v5106 = vsel %vm4633, %v5105, %v5101
    %v5107 = vlaneseq
    %v5108 = vshrl.u32 %v5107, 7
    %v5109 = vsub.s32 %v4635, %v5108
    %v5110 = vrot.slane %v5020, %v5109
    %v5111 = vsel %vm4640, %v5110, %v5106
    %v5112 = vlaneseq
    %v5113 = vshrl.u32 %v5112, 7
    %v5114 = vsub.s32 %v4642, %v5113
    %v5115 = vrot.slane %v5021, %v5114
    %v5116 = vsel %vm4647, %v5115, %v5111
    %v5117 = vlaneseq
    %v5118 = vshrl.u32 %v5117, 7
    %v5119 = vsub.s32 %v4649, %v5118
    %v5120 = vrot.slane %v5022, %v5119
    %v5121 = vsel %vm4654, %v5120, %v5116
    %v5122 = vlaneseq
    %v5123 = vshrl.u32 %v5122, 7
    %v5124 = vsub.s32 %v4656, %v5123
    %v5125 = vrot.slane %v5023, %v5124
    %v5126 = vsel %vm4661, %v5125, %v5121
    %v5127 = vlaneseq
    %v5128 = vshrl.u32 %v5127, 7
    %v5129 = vsub.s32 %v4663, %v5128
    %v5130 = vrot.slane %v5024, %v5129
    %v5131 = vsel %vm4668, %v5130, %v5126
    %v5132 = vlaneseq
    %v5133 = vshrl.u32 %v5132, 7
    %v5134 = vsub.s32 %v4670, %v5133
    %v5135 = vrot.slane %v5025, %v5134
    %v5136 = vsel %vm4675, %v5135, %v5131
    %v5137 = vlaneseq
    %v5138 = vshrl.u32 %v5137, 7
    %v5139 = vsub.s32 %v4677, %v5138
    %v5140 = vrot.slane %v5026, %v5139
    %v5141 = vsel %vm4682, %v5140, %v5136
    %v5142 = vlaneseq
    %v5143 = vshrl.u32 %v5142, 7
    %v5144 = vsub.s32 %v4684, %v5143
    %v5145 = vrot.slane %v5027, %v5144
    %v5146 = vsel %vm4689, %v5145, %v5141
    %v5147 = vlaneseq
    %v5148 = vshrl.u32 %v5147, 7
    %v5149 = vsub.s32 %v4691, %v5148
    %v5150 = vrot.slane %v5028, %v5149
    %v5151 = vsel %vm4696, %v5150, %v5146
    %v5152 = vlaneseq
    %v5153 = vshrl.u32 %v5152, 7
    %v5154 = vsub.s32 %v4698, %v5153
    %v5155 = vrot.slane %v5029, %v5154
    %v5156 = vsel %vm4703, %v5155, %v5151
    %v5157 = vlaneseq
    %v5158 = vshrl.u32 %v5157, 7
    %v5159 = vsub.s32 %v4595, %v5158
    %v5160 = vrot.slane %v5030, %v5159
    %v5161 = vlaneseq
    %v5162 = vshrl.u32 %v5161, 7
    %v5163 = vsub.s32 %v4600, %v5162
    %v5164 = vrot.slane %v5031, %v5163
    %v5165 = vsel %vm4605, %v5164, %v5160
    %v5166 = vlaneseq
    %v5167 = vshrl.u32 %v5166, 7
    %v5168 = vsub.s32 %v4607, %v5167
    %v5169 = vrot.slane %v5032, %v5168
    %v5170 = vsel %vm4612, %v5169, %v5165
    %v5171 = vlaneseq
    %v5172 = vshrl.u32 %v5171, 7
    %v5173 = vsub.s32 %v4614, %v5172
    %v5174 = vrot.slane %v5033, %v5173
    %v5175 = vsel %vm4619, %v5174, %v5170
    %v5176 = vlaneseq
    %v5177 = vshrl.u32 %v5176, 7
    %v5178 = vsub.s32 %v4621, %v5177
    %v5179 = vrot.slane %v5034, %v5178
    %v5180 = vsel %vm4626, %v5179, %v5175
    %v5181 = vlaneseq
    %v5182 = vshrl.u32 %v5181, 7
    %v5183 = vsub.s32 %v4628, %v5182
    %v5184 = vrot.slane %v5035, %v5183
    %v5185 = vsel %vm4633, %v5184, %v5180
    %v5186 = vlaneseq
    %v5187 = vshrl.u32 %v5186, 7
    %v5188 = vsub.s32 %v4635, %v5187
    %v5189 = vrot.slane %v5036, %v5188
    %v5190 = vsel %vm4640, %v5189, %v5185
    %v5191 = vlaneseq
    %v5192 = vshrl.u32 %v5191, 7
    %v5193 = vsub.s32 %v4642, %v5192
    %v5194 = vrot.slane %v5037, %v5193
    %v5195 = vsel %vm4647, %v5194, %v5190
    %v5196 = vlaneseq
    %v5197 = vshrl.u32 %v5196, 7
    %v5198 = vsub.s32 %v4649, %v5197
    %v5199 = vrot.slane %v5038, %v5198
    %v5200 = vsel %vm4654, %v5199, %v5195
    %v5201 = vlaneseq
    %v5202 = vshrl.u32 %v5201, 7
    %v5203 = vsub.s32 %v4656, %v5202
    %v5204 = vrot.slane %v5039, %v5203
    %v5205 = vsel %vm4661, %v5204, %v5200
    %v5206 = vlaneseq
    %v5207 = vshrl.u32 %v5206, 7
    %v5208 = vsub.s32 %v4663, %v5207
    %v5209 = vrot.slane %v5040, %v5208
    %v5210 = vsel %vm4668, %v5209, %v5205
    %v5211 = vlaneseq
    %v5212 = vshrl.u32 %v5211, 7
    %v5213 = vsub.s32 %v4670, %v5212
    %v5214 = vrot.slane %v5041, %v5213
    %v5215 = vsel %vm4675, %v5214, %v5210
    %v5216 = vlaneseq
    %v5217 = vshrl.u32 %v5216, 7
    %v5218 = vsub.s32 %v4677, %v5217
    %v5219 = vrot.slane %v5042, %v5218
    %v5220 = vsel %vm4682, %v5219, %v5215
    %v5221 = vlaneseq
    %v5222 = vshrl.u32 %v5221, 7
    %v5223 = vsub.s32 %v4684, %v5222
    %v5224 = vrot.slane %v5043, %v5223
    %v5225 = vsel %vm4689, %v5224, %v5220
    %v5226 = vlaneseq
    %v5227 = vshrl.u32 %v5226, 7
    %v5228 = vsub.s32 %v4691, %v5227
    %v5229 = vrot.slane %v5044, %v5228
    %v5230 = vsel %vm4696, %v5229, %v5225
    %v5231 = vlaneseq
    %v5232 = vshrl.u32 %v5231, 7
    %v5233 = vsub.s32 %v4698, %v5232
    %v5234 = vrot.slane %v5045, %v5233
    %v5235 = vsel %vm4703, %v5234, %v5230
    %v5236 = vsel %vm4784, %v5235, %v5156
    %s5238 = scalar_lea.vmem [#allocation2], 4
    %5239 = vst [vmem:[%s5238] sm:$0x3] %v5236
    // Predicated region
    $region10: #{contact_samplenet_forward.3} parent=1 // pred_check
      _
    $region11: #{contact_samplenet_forward.3} parent=1 // pred_check_branch
      %5241 = sbr.rel (0) target = $region13
    $region12: #{contact_samplenet_forward.3} parent=1 // pred_region
      %s5243 = ssub.s32 96, 96
      %5244 = vsyncadd [#allocation3], %s5243
      %s5245 = sshll.u32 [#allocation2], 4
      %s5246 = int_to_ptr.vmem [resolvable:$true] %s5245
      %5251 = dma.vmem_to_hbm [thread:$0]  %s5246, 96, %s2, [#allocation3], 32, 32, 2
    $region13: #{contact_samplenet_forward.3} parent=1 // pred_fallthru
      _
    // Predicated region
    $region14: #{contact_samplenet_forward.3} parent=1 // pred_check
      _
    $region15: #{contact_samplenet_forward.3} parent=1 // pred_check_branch
      %5253 = sbr.rel (0) target = $region17
    $region16: #{contact_samplenet_forward.3} parent=1 // pred_region
      %5254 = dma.done [#allocation3], 96
    $region17: #{contact_samplenet_forward.3} parent=1 // pred_fallthru
      _
    %5255 = vsyncpa [#allocation3], 1

</llo_original>
